<compile_context>
chip_gen: v6e
topology: v6e:2x2x1
jax: 0.10.0
libtpu: 0.0.40
codegen_flags: <defaults>
</compile_context>

<pallas_src>
import functools

import numpy as np
import jax
import jax.numpy as jnp
from jax import lax
from jax.experimental import pallas as pl
from jax.experimental.pallas import tpu as pltpu


_MXU_DTYPE = jnp.bfloat16  # bf16 MXU inputs, f32 accumulation


# ------------------------- in-kernel math helpers -------------------------

def _dot(a, b):
    # b always comes from the bf16 slab; cast only the activation side.
    return jnp.dot(a.astype(_MXU_DTYPE), b, preferred_element_type=jnp.float32)


def _sigmoid(z):
    # exact sigmoid (review flagged approx reciprocal as a correctness risk)
    return 1.0 / (1.0 + jnp.exp(-z))


def _bn_relu(x, gamma, beta):
    # training-mode BatchNorm over rows (biased var, eps=1e-5) + ReLU,
    # two-pass variance (cancellation-safe for post-ReLU activations).
    mean = jnp.mean(x, axis=0, keepdims=True)
    xc = x - mean
    var = jnp.mean(xc * xc, axis=0, keepdims=True)
    return jnp.maximum(xc * lax.rsqrt(var + 1e-5) * gamma + beta, 0.0)


def _neint(x, agg, wla1, wla2, bla, f0):
    # NodeEdgeInt: relu([x,agg] @ Wl + bl) * sigmoid([x,agg] @ Wa + ba)
    # [Wl | Wa] are merged host-side into one (d, f0+1) weight; the attention
    # column rides in otherwise-padded MXU output lanes (no operand concat).
    h = _dot(x, wla1) + _dot(agg, wla2) + bla
    return jnp.maximum(h[:, :f0], 0.0) * _sigmoid(h[:, f0:f0 + 1])


def _lag2_bn_relu(x, L_b, w0, w1, b, gamma, beta):
    # HodgeLaguerreConv K=2:  x @ W0 + (x - Lx) @ W1 + b, fused with BN + ReLU.
    lx = _dot(L_b, x)
    y = _dot(x, w0) + _dot(x - lx, w1) + b
    return _bn_relu(y, gamma, beta)


# ------------------------------ slab packing ------------------------------

def _pack_slab(named, dtype, row_align):
    """Pack 2D arrays into one (rows, 128) slab; each tensor starts at a
    row_align-aligned row offset, lanes are zero-padded to 128."""
    layout = {}
    rows = 0
    for name, a in named:
        layout[name] = (rows, int(a.shape[0]), int(a.shape[1]))
        rows += ((int(a.shape[0]) + row_align - 1) // row_align) * row_align
    rows = max(rows, row_align)
    slab = jnp.zeros((rows, 128), dtype)
    for name, a in named:
        off, r, c = layout[name]
        slab = slab.at[off:off + r, :c].set(a.astype(dtype))
    return slab, layout


def _build_slabs(params, x_t, x_s, L0, L1, Babs, D, n_blocks):
    # fold degree / 0.5 scaling into the aggregation operators host-side
    d_inv = jnp.where(D > 0, 1.0 / D, 0.0).reshape(-1, 1).astype(jnp.float32)
    Babs_scaled = Babs * d_inv            # (N, E): edge -> node, / deg
    BabsT_scaled = 0.5 * Babs.T           # (E, N): node -> edge, / 2

    a_list = [
        ('x_t', x_t), ('x_s', x_s),
        ('L0', L0), ('L1', L1),
        ('Babs', Babs_scaled), ('BabsT', BabsT_scaled),
        ('w_init_t', params['init']['t']['w']),
        ('w_init_s', params['init']['s']['w']),
    ]
    for j, blk in enumerate(params['blocks']):
        for side in ('t', 's'):
            p = blk['neint'][side]
            a_list += [(f'wla1_{side}{j}', p['wla1']),
                       (f'wla2_{side}{j}', p['wla2'])]
            q = blk['neconv'][side]
            a_list += [(f'w0_{side}{j}', q['w0']),
                       (f'w1_{side}{j}', q['w1'])]
    for side in ('t', 's'):
        p = params['neatt'][side]
        a_list += [(f'wa1_{side}', p['wa1']), (f'wa2_{side}', p['wa2'])]

    b_list = []
    for side in ('t', 's'):
        p = params['init'][side]
        b_list += [(f'b_init_{side}', p['b']),
                   (f'g_init_{side}', p['gamma']),
                   (f'be_init_{side}', p['beta'])]
    for j, blk in enumerate(params['blocks']):
        for side in ('t', 's'):
            b_list += [(f'bla_{side}{j}', blk['neint'][side]['bla'])]
        for side in ('t', 's'):
            q = blk['neconv'][side]
            b_list += [(f'b_conv_{side}{j}', q['b']),
                       (f'g_conv_{side}{j}', q['gamma']),
                       (f'be_conv_{side}{j}', q['beta'])]
    for side in ('t', 's'):
        b_list += [(f'ba_{side}', params['neatt'][side]['ba'])]

    slab_a, lay_a = _pack_slab(a_list, _MXU_DTYPE, row_align=16)  # bf16 tile = (16,128)
    slab_b, lay_b = _pack_slab(b_list, jnp.float32, row_align=8)  # f32  tile = (8,128)
    return slab_a, lay_a, slab_b, lay_b


# ------------------------------ fused kernel ------------------------------

def _make_fused_kernel(lay_a, lay_b, n_blocks, f0, n_nodes, n_edges, n_pad):
    def kernel(slab_a_ref, slab_b_ref, out_ref, xt0_scr, xs0_scr):
        def A(name):                       # bf16 matmul operand (static slice)
            off, r, c = lay_a[name]
            return slab_a_ref[off:off + r, 0:c]

        def B(name):                       # f32 bias / BN vector (static slice)
            off, r, c = lay_b[name]
            return slab_b_ref[off:off + r, 0:c]

        # HL_init_conv: K=1 Laguerre conv -> BN -> ReLU (dropout p=0 omitted)
        h_t = _dot(A('x_t'), A('w_init_t')) + B('b_init_t')
        h_s = _dot(A('x_s'), A('w_init_s')) + B('b_init_s')
        xt0_scr[:, 0:f0] = _bn_relu(h_t, B('g_init_t'),
                                    B('be_init_t')).astype(xt0_scr.dtype)
        xs0_scr[:, 0:f0] = _bn_relu(h_s, B('g_init_s'),
                                    B('be_init_s')).astype(xs0_scr.dtype)

        # i == pool_loc == 0 branch of the outer loop (unrolled at trace time)
        for j in range(n_blocks):
            d = (j + 1) * f0
            x_t0 = xt0_scr[:, 0:d]                      # bf16 live prefix
            x_s0 = xs0_scr[:, 0:d]

            x_st = _dot(A('Babs'), x_s0)                # edge -> node (already /deg)
            x_ts = _dot(A('BabsT'), x_t0)               # node -> edge (already /2)

            x_t = _neint(x_t0, x_st, A(f'wla1_t{j}'), A(f'wla2_t{j}'),
                         B(f'bla_t{j}'), f0)
            x_s = _neint(x_s0, x_ts, A(f'wla1_s{j}'), A(f'wla2_s{j}'),
                         B(f'bla_s{j}'), f0)

            x_t = _lag2_bn_relu(x_t, A('L0'), A(f'w0_t{j}'), A(f'w1_t{j}'),
                                B(f'b_conv_t{j}'), B(f'g_conv_t{j}'),
                                B(f'be_conv_t{j}'))
            x_s = _lag2_bn_relu(x_s, A('L1'), A(f'w0_s{j}'), A(f'w1_s{j}'),
                                B(f'b_conv_s{j}'), B(f'g_conv_s{j}'),
                                B(f'be_conv_s{j}'))

            # feature growth at a fixed lane offset (no concat / re-layout)
            xt0_scr[:, d:d + f0] = x_t.astype(xt0_scr.dtype)
            xs0_scr[:, d:d + f0] = x_s.astype(xs0_scr.dtype)

        # NEAtt0 (only_att=True) -> early return of the PyTorch forward
        d = (n_blocks + 1) * f0
        x_t0 = xt0_scr[:, 0:d]
        x_s0 = xs0_scr[:, 0:d]
        x_st = _dot(A('Babs'), x_s0)
        x_ts = _dot(A('BabsT'), x_t0)
        att_t = _sigmoid(_dot(x_t0, A('wa1_t')) + _dot(x_st, A('wa2_t'))
                         + B('ba_t'))                   # (N, 1)
        att_s = _sigmoid(_dot(x_s0, A('wa1_s')) + _dot(x_ts, A('wa2_s'))
                         + B('ba_s'))                   # (E, 1)

        # single lane-dense output slab: rows [0,N) = att_t, [n_pad, n_pad+E) = att_s
        out_ref[...] = jnp.zeros_like(out_ref)
        out_ref[0:n_nodes, :] = jnp.broadcast_to(att_t, (n_nodes, 128))
        out_ref[n_pad:n_pad + n_edges, :] = jnp.broadcast_to(att_s, (n_edges, 128))

    return kernel


# ------------------------------- parameters -------------------------------

def init_params(key, node_in, edge_in, f0, n_blocks):
    keys = iter(jax.random.split(key, 128))

    def glorot(shape):
        return (jax.random.normal(next(keys), shape, jnp.float32)
                / jnp.sqrt(jnp.float32(shape[0])))

    def bn(c):
        return {'gamma': jnp.ones((1, c), jnp.float32),
                'beta': jnp.zeros((1, c), jnp.float32)}

    params = {
        'init': {
            't': {'w': glorot((node_in, f0)),
                  'b': jnp.zeros((1, f0), jnp.float32), **bn(f0)},
            's': {'w': glorot((edge_in, f0)),
                  'b': jnp.zeros((1, f0), jnp.float32), **bn(f0)},
        },
        'blocks': [],
    }

    d = f0
    for _ in range(n_blocks):
        def int_side(dd):
            # merged [Wl | Wa] (dd, f0+1) and merged bias [bl | ba]
            return {'wla1': glorot((dd, f0 + 1)),
                    'wla2': glorot((dd, f0 + 1)),
                    'bla': jnp.zeros((1, f0 + 1), jnp.float32)}

        def conv_side():
            # separate W0, W1 (two dots inside the kernel, no operand concat)
            return {'w0': glorot((f0, f0)), 'w1': glorot((f0, f0)),
                    'b': jnp.zeros((1, f0), jnp.float32), **bn(f0)}

        params['blocks'].append({
            'neint': {'t': int_side(d), 's': int_side(d)},
            'neconv': {'t': conv_side(), 's': conv_side()},
        })
        d += f0

    def att_side(dd):
        return {'wa1': glorot((dd, 1)), 'wa2': glorot((dd, 1)),
                'ba': jnp.zeros((1, 1), jnp.float32)}

    params['neatt'] = {'t': att_side(d), 's': att_side(d)}
    return params


# --------------------------------- forward ---------------------------------

def hl_hgat_forward(params, x_t_full, x_s_full, L0, L1, Babs, D, *, n_blocks, f0):
    # drop positional column (x[:, 0]) exactly like the PyTorch forward
    x_t = x_t_full[:, 1:].astype(jnp.float32)
    x_s = x_s_full[:, 1:].astype(jnp.float32)
    n_nodes, n_edges = x_t.shape[0], x_s.shape[0]
    n_pad = ((n_nodes + 7) // 8) * 8
    e_pad = ((n_edges + 7) // 8) * 8
    out_rows = n_pad + e_pad

    slab_a, lay_a, slab_b, lay_b = _build_slabs(
        params, x_t, x_s, L0, L1, Babs, D, n_blocks)

    kernel = _make_fused_kernel(lay_a, lay_b, n_blocks, f0,
                                n_nodes, n_edges, n_pad)

    out = pl.pallas_call(
        kernel,
        out_shape=jax.ShapeDtypeStruct((out_rows, 128), jnp.float32),
        grid=(1,),
        in_specs=[pl.BlockSpec(slab_a.shape, lambda i: (0, 0)),
                  pl.BlockSpec(slab_b.shape, lambda i: (0, 0))],
        out_specs=pl.BlockSpec((out_rows, 128), lambda i: (0, 0)),
        scratch_shapes=[pltpu.VMEM((n_nodes, 128), _MXU_DTYPE),   # x_t0 growth
                        pltpu.VMEM((n_edges, 128), _MXU_DTYPE)],  # x_s0 growth
        compiler_params=pltpu.CompilerParams(
            dimension_semantics=("arbitrary",)),
    )(slab_a, slab_b)

    att_t = out[:n_nodes, 0:1]
    att_s = out[n_pad:n_pad + n_edges, 0:1]
    return att_t, att_s


# ------------------------------ graph helpers ------------------------------

def build_grid_graph(rows, cols):
    src, dst = [], []

    def nid(r, c):
        return r * cols + c

    for r in range(rows):
        for c in range(cols):
            if c + 1 < cols:
                src.append(nid(r, c)); dst.append(nid(r, c + 1))
            if r + 1 < rows:
                src.append(nid(r, c)); dst.append(nid(r + 1, c))
    return np.stack([np.asarray(src), np.asarray(dst)], axis=0).astype(np.int32)


def adj2par1_dense(edge_index, n_nodes, n_edges):
    # boundary operator par_1: [num_nodes, num_edges], -1 at source, +1 at target
    B = jnp.zeros((n_nodes, n_edges), jnp.float32)
    e = jnp.arange(n_edges)
    B = B.at[edge_index[0], e].set(-1.0)
    B = B.at[edge_index[1], e].set(1.0)
    return B


def degree(edge_index, n_nodes):
    return jnp.zeros((n_nodes,), jnp.float32).at[edge_index.reshape(-1)].add(1.0)


# ----------------------------------- main -----------------------------------

if __name__ == "__main__":
    # small superpixel-like grid graph
    rows, cols = 4, 8
    N = rows * cols                     # 32 nodes
    edge_index = jnp.asarray(build_grid_graph(rows, cols))
    E = int(edge_index.shape[1])        # 52 edges

    node_dim, edge_dim, keig = 5, 4, 10
    F0 = 32                             # filters[0]
    CH0 = 2                             # channels[0]

    key = jax.random.PRNGKey(0)
    k_xt, k_xs, k_par = jax.random.split(key, 3)

    # column 0 is the positional index column dropped by the forward ([:, 1:])
    x_t = jnp.concatenate(
        [jnp.arange(N, dtype=jnp.float32)[:, None],
         jax.random.normal(k_xt, (N, node_dim + keig), jnp.float32)], axis=1)
    x_s = jnp.concatenate(
        [jnp.arange(E, dtype=jnp.float32)[:, None],
         jax.random.normal(k_xs, (E, edge_dim + keig), jnp.float32)], axis=1)

    B = adj2par1_dense(edge_index, N, E)
    Babs = jnp.abs(B)
    D = degree(edge_index, N)

    # dense Hodge Laplacians (stand-ins for the sparse edge_index_t/weight_t and
    # edge_index_s/weight_s propagation), scaled to a modest spectral range
    scale = 1.0 / (2.0 * jnp.max(D))
    L0 = (B @ B.T) * scale              # node (0-)Laplacian
    L1 = (B.T @ B) * scale              # edge (1-)Laplacian

    params = init_params(k_par, node_dim + keig, edge_dim + keig, F0, CH0)

    fwd = jax.jit(functools.partial(hl_hgat_forward, n_blocks=CH0, f0=F0))
    att_t, att_s = fwd(params, x_t, x_s, L0, L1, Babs, D)
    jax.block_until_ready((att_t, att_s))

    assert att_t.shape == (N, 1) and att_s.shape == (E, 1)
    assert bool(jnp.all(jnp.isfinite(att_t))) and bool(jnp.all(jnp.isfinite(att_s)))
    assert bool(jnp.all(att_t >= 0.0)) and bool(jnp.all(att_t <= 1.0))
    assert bool(jnp.all(att_s >= 0.0)) and bool(jnp.all(att_s <= 1.0))
    print("KERNEL_OK")
</pallas_src>

<mosaic_0001>
module attributes {stable_mosaic.version = 11 : i64} {
  func.func @kernel(%arg0: i32, %arg1: memref<1344x128xbf16, #tpu.memory_space<vmem>>, %arg2: memref<192x128xf32, #tpu.memory_space<vmem>>, %arg3: memref<88x128xf32, #tpu.memory_space<vmem>>, %arg4: memref<32x128xbf16, #tpu.memory_space<vmem>>, %arg5: memref<52x128xbf16, #tpu.memory_space<vmem>>) attributes {dimension_semantics = [#tpu.dimension_semantics<arbitrary>], iteration_bounds = array<i64: 1>, scalar_prefetch = 0 : i64, scratch_operands = 2 : i64, tpu.core_type = #tpu.core_type<tc>, window_params = [{pipeline_mode = #tpu.pipeline_mode<synchronous>, transform_indices = @transform_0, window_bounds = array<i64: 1344, 128>}, {pipeline_mode = #tpu.pipeline_mode<synchronous>, transform_indices = @transform_1, window_bounds = array<i64: 192, 128>}, {pipeline_mode = #tpu.pipeline_mode<synchronous>, transform_indices = @transform_2, window_bounds = array<i64: 88, 128>}]} {
    %c0 = arith.constant 0 : index
    %c0_0 = arith.constant 0 : index
    %0 = vector.load %arg1[%c0, %c0_0] : memref<1344x128xbf16, #tpu.memory_space<vmem>>, vector<32x15xbf16>
    %c288 = arith.constant 288 : index
    %c0_1 = arith.constant 0 : index
    %1 = vector.load %arg1[%c288, %c0_1] : memref<1344x128xbf16, #tpu.memory_space<vmem>>, vector<15x32xbf16>
    %cst = arith.constant dense<0.000000e+00> : vector<32x32xf32>
    %2 = tpu.matmul %0, %1, %cst {dimension_numbers = #tpu.dot_dimension_numbers<[1], [0], [0], [1], [0, 0, 1, 1], [], []>} : vector<32x15xbf16>, vector<15x32xbf16>, vector<32x32xf32> -> vector<32x32xf32>
    %c0_2 = arith.constant 0 : index
    %c0_3 = arith.constant 0 : index
    %3 = vector.load %arg2[%c0_2, %c0_3] : memref<192x128xf32, #tpu.memory_space<vmem>>, vector<1x32xf32>
    %4 = vector.broadcast %3 : vector<1x32xf32> to vector<32x32xf32>
    %5 = arith.addf %2, %4 : vector<32x32xf32>
    %c32 = arith.constant 32 : index
    %c0_4 = arith.constant 0 : index
    %6 = vector.load %arg1[%c32, %c0_4] : memref<1344x128xbf16, #tpu.memory_space<vmem>>, vector<52x14xbf16>
    %c304 = arith.constant 304 : index
    %c0_5 = arith.constant 0 : index
    %7 = vector.load %arg1[%c304, %c0_5] : memref<1344x128xbf16, #tpu.memory_space<vmem>>, vector<14x32xbf16>
    %cst_6 = arith.constant dense<0.000000e+00> : vector<52x32xf32>
    %8 = tpu.matmul %6, %7, %cst_6 {dimension_numbers = #tpu.dot_dimension_numbers<[1], [0], [0], [1], [0, 0, 1, 1], [], []>} : vector<52x14xbf16>, vector<14x32xbf16>, vector<52x32xf32> -> vector<52x32xf32>
    %c24 = arith.constant 24 : index
    %c0_7 = arith.constant 0 : index
    %9 = vector.load %arg2[%c24, %c0_7] : memref<192x128xf32, #tpu.memory_space<vmem>>, vector<1x32xf32>
    %10 = vector.broadcast %9 : vector<1x32xf32> to vector<52x32xf32>
    %11 = arith.addf %8, %10 : vector<52x32xf32>
    %c8 = arith.constant 8 : index
    %c0_8 = arith.constant 0 : index
    %12 = vector.load %arg2[%c8, %c0_8] : memref<192x128xf32, #tpu.memory_space<vmem>>, vector<1x32xf32>
    %c16 = arith.constant 16 : index
    %c0_9 = arith.constant 0 : index
    %13 = vector.load %arg2[%c16, %c0_9] : memref<192x128xf32, #tpu.memory_space<vmem>>, vector<1x32xf32>
    %cst_10 = arith.constant dense<0.000000e+00> : vector<32xf32>
    %14 = vector.multi_reduction <add>, %5, %cst_10 [0] : vector<32x32xf32> to vector<32xf32>
    %15 = vector.shape_cast %14 : vector<32xf32> to vector<1x32xf32>
    %cst_11 = arith.constant 3.200000e+01 : f32
    %16 = vector.broadcast %cst_11 : f32 to vector<1x32xf32>
    %17 = arith.divf %15, %16 : vector<1x32xf32>
    %18 = vector.broadcast %17 : vector<1x32xf32> to vector<32x32xf32>
    %19 = arith.subf %5, %18 : vector<32x32xf32>
    %20 = arith.mulf %19, %19 : vector<32x32xf32>
    %cst_12 = arith.constant dense<0.000000e+00> : vector<32xf32>
    %21 = vector.multi_reduction <add>, %20, %cst_12 [0] : vector<32x32xf32> to vector<32xf32>
    %22 = vector.shape_cast %21 : vector<32xf32> to vector<1x32xf32>
    %cst_13 = arith.constant 3.200000e+01 : f32
    %23 = vector.broadcast %cst_13 : f32 to vector<1x32xf32>
    %24 = arith.divf %22, %23 : vector<1x32xf32>
    %cst_14 = arith.constant 9.99999974E-6 : f32
    %25 = vector.broadcast %cst_14 : f32 to vector<1x32xf32>
    %26 = arith.addf %24, %25 : vector<1x32xf32>
    %27 = math.rsqrt %26 : vector<1x32xf32>
    %28 = vector.broadcast %27 : vector<1x32xf32> to vector<32x32xf32>
    %29 = arith.mulf %19, %28 : vector<32x32xf32>
    %30 = vector.broadcast %12 : vector<1x32xf32> to vector<32x32xf32>
    %31 = arith.mulf %29, %30 : vector<32x32xf32>
    %32 = vector.broadcast %13 : vector<1x32xf32> to vector<32x32xf32>
    %33 = arith.addf %31, %32 : vector<32x32xf32>
    %cst_15 = arith.constant 0.000000e+00 : f32
    %34 = vector.broadcast %cst_15 : f32 to vector<32x32xf32>
    %35 = arith.maximumf %33, %34 : vector<32x32xf32>
    %36 = arith.truncf %35 : vector<32x32xf32> to vector<32x32xbf16>
    %c0_16 = arith.constant 0 : index
    %c0_17 = arith.constant 0 : index
    %37 = vector.load %arg4[%c0_16, %c0_17] : memref<32x128xbf16, #tpu.memory_space<vmem>>, vector<32x32xbf16>
    tpu.vector_store %arg4[%c0_16, %c0_17], %36 {strides = array<i32>} : memref<32x128xbf16, #tpu.memory_space<vmem>>, vector<32x32xbf16>,
    %c32_18 = arith.constant 32 : index
    %c0_19 = arith.constant 0 : index
    %38 = vector.load %arg2[%c32_18, %c0_19] : memref<192x128xf32, #tpu.memory_space<vmem>>, vector<1x32xf32>
    %c40 = arith.constant 40 : index
    %c0_20 = arith.constant 0 : index
    %39 = vector.load %arg2[%c40, %c0_20] : memref<192x128xf32, #tpu.memory_space<vmem>>, vector<1x32xf32>
    %cst_21 = arith.constant dense<0.000000e+00> : vector<32xf32>
    %40 = vector.multi_reduction <add>, %11, %cst_21 [0] : vector<52x32xf32> to vector<32xf32>
    %41 = vector.shape_cast %40 : vector<32xf32> to vector<1x32xf32>
    %cst_22 = arith.constant 5.200000e+01 : f32
    %42 = vector.broadcast %cst_22 : f32 to vector<1x32xf32>
    %43 = arith.divf %41, %42 : vector<1x32xf32>
    %44 = vector.broadcast %43 : vector<1x32xf32> to vector<52x32xf32>
    %45 = arith.subf %11, %44 : vector<52x32xf32>
    %46 = arith.mulf %45, %45 : vector<52x32xf32>
    %cst_23 = arith.constant dense<0.000000e+00> : vector<32xf32>
    %47 = vector.multi_reduction <add>, %46, %cst_23 [0] : vector<52x32xf32> to vector<32xf32>
    %48 = vector.shape_cast %47 : vector<32xf32> to vector<1x32xf32>
    %cst_24 = arith.constant 5.200000e+01 : f32
    %49 = vector.broadcast %cst_24 : f32 to vector<1x32xf32>
    %50 = arith.divf %48, %49 : vector<1x32xf32>
    %cst_25 = arith.constant 9.99999974E-6 : f32
    %51 = vector.broadcast %cst_25 : f32 to vector<1x32xf32>
    %52 = arith.addf %50, %51 : vector<1x32xf32>
    %53 = math.rsqrt %52 : vector<1x32xf32>
    %54 = vector.broadcast %53 : vector<1x32xf32> to vector<52x32xf32>
    %55 = arith.mulf %45, %54 : vector<52x32xf32>
    %56 = vector.broadcast %38 : vector<1x32xf32> to vector<52x32xf32>
    %57 = arith.mulf %55, %56 : vector<52x32xf32>
    %58 = vector.broadcast %39 : vector<1x32xf32> to vector<52x32xf32>
    %59 = arith.addf %57, %58 : vector<52x32xf32>
    %cst_26 = arith.constant 0.000000e+00 : f32
    %60 = vector.broadcast %cst_26 : f32 to vector<52x32xf32>
    %61 = arith.maximumf %59, %60 : vector<52x32xf32>
    %62 = arith.truncf %61 : vector<52x32xf32> to vector<52x32xbf16>
    %c0_27 = arith.constant 0 : index
    %c0_28 = arith.constant 0 : index
    %63 = vector.load %arg5[%c0_27, %c0_28] : memref<52x128xbf16, #tpu.memory_space<vmem>>, vector<52x32xbf16>
    tpu.vector_store %arg5[%c0_27, %c0_28], %62 {strides = array<i32>} : memref<52x128xbf16, #tpu.memory_space<vmem>>, vector<52x32xbf16>,
    %c0_29 = arith.constant 0 : index
    %c0_30 = arith.constant 0 : index
    %64 = vector.load %arg4[%c0_29, %c0_30] : memref<32x128xbf16, #tpu.memory_space<vmem>>, vector<32x32xbf16>
    %c0_31 = arith.constant 0 : index
    %c0_32 = arith.constant 0 : index
    %65 = vector.load %arg5[%c0_31, %c0_32] : memref<52x128xbf16, #tpu.memory_space<vmem>>, vector<52x32xbf16>
    %c192 = arith.constant 192 : index
    %c0_33 = arith.constant 0 : index
    %66 = vector.load %arg1[%c192, %c0_33] : memref<1344x128xbf16, #tpu.memory_space<vmem>>, vector<32x52xbf16>
    %cst_34 = arith.constant dense<0.000000e+00> : vector<32x32xf32>
    %67 = tpu.matmul %66, %65, %cst_34 {dimension_numbers = #tpu.dot_dimension_numbers<[1], [0], [0], [1], [0, 0, 1, 1], [], []>} : vector<32x52xbf16>, vector<52x32xbf16>, vector<32x32xf32> -> vector<32x32xf32>
    %c224 = arith.constant 224 : index
    %c0_35 = arith.constant 0 : index
    %68 = vector.load %arg1[%c224, %c0_35] : memref<1344x128xbf16, #tpu.memory_space<vmem>>, vector<52x32xbf16>
    %cst_36 = arith.constant dense<0.000000e+00> : vector<52x32xf32>
    %69 = tpu.matmul %68, %64, %cst_36 {dimension_numbers = #tpu.dot_dimension_numbers<[1], [0], [0], [1], [0, 0, 1, 1], [], []>} : vector<52x32xbf16>, vector<32x32xbf16>, vector<52x32xf32> -> vector<52x32xf32>
    %c320 = arith.constant 320 : index
    %c0_37 = arith.constant 0 : index
    %70 = vector.load %arg1[%c320, %c0_37] : memref<1344x128xbf16, #tpu.memory_space<vmem>>, vector<32x33xbf16>
    %c352 = arith.constant 352 : index
    %c0_38 = arith.constant 0 : index
    %71 = vector.load %arg1[%c352, %c0_38] : memref<1344x128xbf16, #tpu.memory_space<vmem>>, vector<32x33xbf16>
    %c48 = arith.constant 48 : index
    %c0_39 = arith.constant 0 : index
    %72 = vector.load %arg2[%c48, %c0_39] : memref<192x128xf32, #tpu.memory_space<vmem>>, vector<1x33xf32>
    %cst_40 = arith.constant dense<0.000000e+00> : vector<32x33xf32>
    %73 = tpu.matmul %64, %70, %cst_40 {dimension_numbers = #tpu.dot_dimension_numbers<[1], [0], [0], [1], [0, 0, 1, 1], [], []>} : vector<32x32xbf16>, vector<32x33xbf16>, vector<32x33xf32> -> vector<32x33xf32>
    %74 = arith.truncf %67 : vector<32x32xf32> to vector<32x32xbf16>
    %cst_41 = arith.constant dense<0.000000e+00> : vector<32x33xf32>
    %75 = tpu.matmul %74, %71, %cst_41 {dimension_numbers = #tpu.dot_dimension_numbers<[1], [0], [0], [1], [0, 0, 1, 1], [], []>} : vector<32x32xbf16>, vector<32x33xbf16>, vector<32x33xf32> -> vector<32x33xf32>
    %76 = arith.addf %73, %75 : vector<32x33xf32>
    %77 = vector.broadcast %72 : vector<1x33xf32> to vector<32x33xf32>
    %78 = arith.addf %76, %77 : vector<32x33xf32>
    %79 = vector.extract_strided_slice %78 {offsets = [0, 0], sizes = [32, 32], strides = [1, 1]} : vector<32x33xf32> to vector<32x32xf32>
    %cst_42 = arith.constant 0.000000e+00 : f32
    %80 = vector.broadcast %cst_42 : f32 to vector<32x32xf32>
    %81 = arith.maximumf %79, %80 : vector<32x32xf32>
    %82 = vector.extract_strided_slice %78 {offsets = [0, 32], sizes = [32, 1], strides = [1, 1]} : vector<32x33xf32> to vector<32x1xf32>
    %cst_43 = arith.constant 0.000000e+00 : f32
    %83 = vector.broadcast %cst_43 : f32 to vector<32x1xf32>
    %84 = arith.subf %83, %82 : vector<32x1xf32>
    %85 = math.exp %84 : vector<32x1xf32>
    %cst_44 = arith.constant 1.000000e+00 : f32
    %86 = vector.broadcast %cst_44 : f32 to vector<32x1xf32>
    %87 = arith.addf %86, %85 : vector<32x1xf32>
    %cst_45 = arith.constant 1.000000e+00 : f32
    %88 = vector.broadcast %cst_45 : f32 to vector<32x1xf32>
    %89 = arith.divf %88, %87 : vector<32x1xf32>
    %90 = vector.broadcast %89 : vector<32x1xf32> to vector<32x32xf32>
    %91 = arith.mulf %81, %90 : vector<32x32xf32>
    %c448 = arith.constant 448 : index
    %c0_46 = arith.constant 0 : index
    %92 = vector.load %arg1[%c448, %c0_46] : memref<1344x128xbf16, #tpu.memory_space<vmem>>, vector<32x33xbf16>
    %c480 = arith.constant 480 : index
    %c0_47 = arith.constant 0 : index
    %93 = vector.load %arg1[%c480, %c0_47] : memref<1344x128xbf16, #tpu.memory_space<vmem>>, vector<32x33xbf16>
    %c56 = arith.constant 56 : index
    %c0_48 = arith.constant 0 : index
    %94 = vector.load %arg2[%c56, %c0_48] : memref<192x128xf32, #tpu.memory_space<vmem>>, vector<1x33xf32>
    %cst_49 = arith.constant dense<0.000000e+00> : vector<52x33xf32>
    %95 = tpu.matmul %65, %92, %cst_49 {dimension_numbers = #tpu.dot_dimension_numbers<[1], [0], [0], [1], [0, 0, 1, 1], [], []>} : vector<52x32xbf16>, vector<32x33xbf16>, vector<52x33xf32> -> vector<52x33xf32>
    %96 = arith.truncf %69 : vector<52x32xf32> to vector<52x32xbf16>
    %cst_50 = arith.constant dense<0.000000e+00> : vector<52x33xf32>
    %97 = tpu.matmul %96, %93, %cst_50 {dimension_numbers = #tpu.dot_dimension_numbers<[1], [0], [0], [1], [0, 0, 1, 1], [], []>} : vector<52x32xbf16>, vector<32x33xbf16>, vector<52x33xf32> -> vector<52x33xf32>
    %98 = arith.addf %95, %97 : vector<52x33xf32>
    %99 = vector.broadcast %94 : vector<1x33xf32> to vector<52x33xf32>
    %100 = arith.addf %98, %99 : vector<52x33xf32>
    %101 = vector.extract_strided_slice %100 {offsets = [0, 0], sizes = [52, 32], strides = [1, 1]} : vector<52x33xf32> to vector<52x32xf32>
    %cst_51 = arith.constant 0.000000e+00 : f32
    %102 = vector.broadcast %cst_51 : f32 to vector<52x32xf32>
    %103 = arith.maximumf %101, %102 : vector<52x32xf32>
    %104 = vector.extract_strided_slice %100 {offsets = [0, 32], sizes = [52, 1], strides = [1, 1]} : vector<52x33xf32> to vector<52x1xf32>
    %cst_52 = arith.constant 0.000000e+00 : f32
    %105 = vector.broadcast %cst_52 : f32 to vector<52x1xf32>
    %106 = arith.subf %105, %104 : vector<52x1xf32>
    %107 = math.exp %106 : vector<52x1xf32>
    %cst_53 = arith.constant 1.000000e+00 : f32
    %108 = vector.broadcast %cst_53 : f32 to vector<52x1xf32>
    %109 = arith.addf %108, %107 : vector<52x1xf32>
    %cst_54 = arith.constant 1.000000e+00 : f32
    %110 = vector.broadcast %cst_54 : f32 to vector<52x1xf32>
    %111 = arith.divf %110, %109 : vector<52x1xf32>
    %112 = vector.broadcast %111 : vector<52x1xf32> to vector<52x32xf32>
    %113 = arith.mulf %103, %112 : vector<52x32xf32>
    %c96 = arith.constant 96 : index
    %c0_55 = arith.constant 0 : index
    %114 = vector.load %arg1[%c96, %c0_55] : memref<1344x128xbf16, #tpu.memory_space<vmem>>, vector<32x32xbf16>
    %c384 = arith.constant 384 : index
    %c0_56 = arith.constant 0 : index
    %115 = vector.load %arg1[%c384, %c0_56] : memref<1344x128xbf16, #tpu.memory_space<vmem>>, vector<32x32xbf16>
    %c416 = arith.constant 416 : index
    %c0_57 = arith.constant 0 : index
    %116 = vector.load %arg1[%c416, %c0_57] : memref<1344x128xbf16, #tpu.memory_space<vmem>>, vector<32x32xbf16>
    %c64 = arith.constant 64 : index
    %c0_58 = arith.constant 0 : index
    %117 = vector.load %arg2[%c64, %c0_58] : memref<192x128xf32, #tpu.memory_space<vmem>>, vector<1x32xf32>
    %c72 = arith.constant 72 : index
    %c0_59 = arith.constant 0 : index
    %118 = vector.load %arg2[%c72, %c0_59] : memref<192x128xf32, #tpu.memory_space<vmem>>, vector<1x32xf32>
    %c80 = arith.constant 80 : index
    %c0_60 = arith.constant 0 : index
    %119 = vector.load %arg2[%c80, %c0_60] : memref<192x128xf32, #tpu.memory_space<vmem>>, vector<1x32xf32>
    %cst_61 = arith.constant dense<0.000000e+00> : vector<32x32xf32>
    %120 = tpu.matmul %114, %91, %cst_61 {dimension_numbers = #tpu.dot_dimension_numbers<[1], [0], [0], [1], [0, 0, 1, 1], [], []>} : vector<32x32xbf16>, vector<32x32xf32>, vector<32x32xf32> -> vector<32x32xf32>
    %121 = arith.truncf %91 : vector<32x32xf32> to vector<32x32xbf16>
    %cst_62 = arith.constant dense<0.000000e+00> : vector<32x32xf32>
    %122 = tpu.matmul %121, %115, %cst_62 {dimension_numbers = #tpu.dot_dimension_numbers<[1], [0], [0], [1], [0, 0, 1, 1], [], []>} : vector<32x32xbf16>, vector<32x32xbf16>, vector<32x32xf32> -> vector<32x32xf32>
    %123 = arith.subf %91, %120 : vector<32x32xf32>
    %124 = arith.truncf %123 : vector<32x32xf32> to vector<32x32xbf16>
    %cst_63 = arith.constant dense<0.000000e+00> : vector<32x32xf32>
    %125 = tpu.matmul %124, %116, %cst_63 {dimension_numbers = #tpu.dot_dimension_numbers<[1], [0], [0], [1], [0, 0, 1, 1], [], []>} : vector<32x32xbf16>, vector<32x32xbf16>, vector<32x32xf32> -> vector<32x32xf32>
    %126 = arith.addf %122, %125 : vector<32x32xf32>
    %127 = vector.broadcast %117 : vector<1x32xf32> to vector<32x32xf32>
    %128 = arith.addf %126, %127 : vector<32x32xf32>
    %cst_64 = arith.constant dense<0.000000e+00> : vector<32xf32>
    %129 = vector.multi_reduction <add>, %128, %cst_64 [0] : vector<32x32xf32> to vector<32xf32>
    %130 = vector.shape_cast %129 : vector<32xf32> to vector<1x32xf32>
    %cst_65 = arith.constant 3.200000e+01 : f32
    %131 = vector.broadcast %cst_65 : f32 to vector<1x32xf32>
    %132 = arith.divf %130, %131 : vector<1x32xf32>
    %133 = vector.broadcast %132 : vector<1x32xf32> to vector<32x32xf32>
    %134 = arith.subf %128, %133 : vector<32x32xf32>
    %135 = arith.mulf %134, %134 : vector<32x32xf32>
    %cst_66 = arith.constant dense<0.000000e+00> : vector<32xf32>
    %136 = vector.multi_reduction <add>, %135, %cst_66 [0] : vector<32x32xf32> to vector<32xf32>
    %137 = vector.shape_cast %136 : vector<32xf32> to vector<1x32xf32>
    %cst_67 = arith.constant 3.200000e+01 : f32
    %138 = vector.broadcast %cst_67 : f32 to vector<1x32xf32>
    %139 = arith.divf %137, %138 : vector<1x32xf32>
    %cst_68 = arith.constant 9.99999974E-6 : f32
    %140 = vector.broadcast %cst_68 : f32 to vector<1x32xf32>
    %141 = arith.addf %139, %140 : vector<1x32xf32>
    %142 = math.rsqrt %141 : vector<1x32xf32>
    %143 = vector.broadcast %142 : vector<1x32xf32> to vector<32x32xf32>
    %144 = arith.mulf %134, %143 : vector<32x32xf32>
    %145 = vector.broadcast %118 : vector<1x32xf32> to vector<32x32xf32>
    %146 = arith.mulf %144, %145 : vector<32x32xf32>
    %147 = vector.broadcast %119 : vector<1x32xf32> to vector<32x32xf32>
    %148 = arith.addf %146, %147 : vector<32x32xf32>
    %cst_69 = arith.constant 0.000000e+00 : f32
    %149 = vector.broadcast %cst_69 : f32 to vector<32x32xf32>
    %150 = arith.maximumf %148, %149 : vector<32x32xf32>
    %c128 = arith.constant 128 : index
    %c0_70 = arith.constant 0 : index
    %151 = vector.load %arg1[%c128, %c0_70] : memref<1344x128xbf16, #tpu.memory_space<vmem>>, vector<52x52xbf16>
    %c512 = arith.constant 512 : index
    %c0_71 = arith.constant 0 : index
    %152 = vector.load %arg1[%c512, %c0_71] : memref<1344x128xbf16, #tpu.memory_space<vmem>>, vector<32x32xbf16>
    %c544 = arith.constant 544 : index
    %c0_72 = arith.constant 0 : index
    %153 = vector.load %arg1[%c544, %c0_72] : memref<1344x128xbf16, #tpu.memory_space<vmem>>, vector<32x32xbf16>
    %c88 = arith.constant 88 : index
    %c0_73 = arith.constant 0 : index
    %154 = vector.load %arg2[%c88, %c0_73] : memref<192x128xf32, #tpu.memory_space<vmem>>, vector<1x32xf32>
    %c96_74 = arith.constant 96 : index
    %c0_75 = arith.constant 0 : index
    %155 = vector.load %arg2[%c96_74, %c0_75] : memref<192x128xf32, #tpu.memory_space<vmem>>, vector<1x32xf32>
    %c104 = arith.constant 104 : index
    %c0_76 = arith.constant 0 : index
    %156 = vector.load %arg2[%c104, %c0_76] : memref<192x128xf32, #tpu.memory_space<vmem>>, vector<1x32xf32>
    %cst_77 = arith.constant dense<0.000000e+00> : vector<52x32xf32>
    %157 = tpu.matmul %151, %113, %cst_77 {dimension_numbers = #tpu.dot_dimension_numbers<[1], [0], [0], [1], [0, 0, 1, 1], [], []>} : vector<52x52xbf16>, vector<52x32xf32>, vector<52x32xf32> -> vector<52x32xf32>
    %158 = arith.truncf %113 : vector<52x32xf32> to vector<52x32xbf16>
    %cst_78 = arith.constant dense<0.000000e+00> : vector<52x32xf32>
    %159 = tpu.matmul %158, %152, %cst_78 {dimension_numbers = #tpu.dot_dimension_numbers<[1], [0], [0], [1], [0, 0, 1, 1], [], []>} : vector<52x32xbf16>, vector<32x32xbf16>, vector<52x32xf32> -> vector<52x32xf32>
    %160 = arith.subf %113, %157 : vector<52x32xf32>
    %161 = arith.truncf %160 : vector<52x32xf32> to vector<52x32xbf16>
    %cst_79 = arith.constant dense<0.000000e+00> : vector<52x32xf32>
    %162 = tpu.matmul %161, %153, %cst_79 {dimension_numbers = #tpu.dot_dimension_numbers<[1], [0], [0], [1], [0, 0, 1, 1], [], []>} : vector<52x32xbf16>, vector<32x32xbf16>, vector<52x32xf32> -> vector<52x32xf32>
    %163 = arith.addf %159, %162 : vector<52x32xf32>
    %164 = vector.broadcast %154 : vector<1x32xf32> to vector<52x32xf32>
    %165 = arith.addf %163, %164 : vector<52x32xf32>
    %cst_80 = arith.constant dense<0.000000e+00> : vector<32xf32>
    %166 = vector.multi_reduction <add>, %165, %cst_80 [0] : vector<52x32xf32> to vector<32xf32>
    %167 = vector.shape_cast %166 : vector<32xf32> to vector<1x32xf32>
    %cst_81 = arith.constant 5.200000e+01 : f32
    %168 = vector.broadcast %cst_81 : f32 to vector<1x32xf32>
    %169 = arith.divf %167, %168 : vector<1x32xf32>
    %170 = vector.broadcast %169 : vector<1x32xf32> to vector<52x32xf32>
    %171 = arith.subf %165, %170 : vector<52x32xf32>
    %172 = arith.mulf %171, %171 : vector<52x32xf32>
    %cst_82 = arith.constant dense<0.000000e+00> : vector<32xf32>
    %173 = vector.multi_reduction <add>, %172, %cst_82 [0] : vector<52x32xf32> to vector<32xf32>
    %174 = vector.shape_cast %173 : vector<32xf32> to vector<1x32xf32>
    %cst_83 = arith.constant 5.200000e+01 : f32
    %175 = vector.broadcast %cst_83 : f32 to vector<1x32xf32>
    %176 = arith.divf %174, %175 : vector<1x32xf32>
    %cst_84 = arith.constant 9.99999974E-6 : f32
    %177 = vector.broadcast %cst_84 : f32 to vector<1x32xf32>
    %178 = arith.addf %176, %177 : vector<1x32xf32>
    %179 = math.rsqrt %178 : vector<1x32xf32>
    %180 = vector.broadcast %179 : vector<1x32xf32> to vector<52x32xf32>
    %181 = arith.mulf %171, %180 : vector<52x32xf32>
    %182 = vector.broadcast %155 : vector<1x32xf32> to vector<52x32xf32>
    %183 = arith.mulf %181, %182 : vector<52x32xf32>
    %184 = vector.broadcast %156 : vector<1x32xf32> to vector<52x32xf32>
    %185 = arith.addf %183, %184 : vector<52x32xf32>
    %cst_85 = arith.constant 0.000000e+00 : f32
    %186 = vector.broadcast %cst_85 : f32 to vector<52x32xf32>
    %187 = arith.maximumf %185, %186 : vector<52x32xf32>
    %188 = arith.truncf %150 : vector<32x32xf32> to vector<32x32xbf16>
    %c0_86 = arith.constant 0 : index
    %c32_87 = arith.constant 32 : index
    %189 = vector.load %arg4[%c0_86, %c32_87] : memref<32x128xbf16, #tpu.memory_space<vmem>>, vector<32x32xbf16>
    tpu.vector_store %arg4[%c0_86, %c32_87], %188 {strides = array<i32>} : memref<32x128xbf16, #tpu.memory_space<vmem>>, vector<32x32xbf16>,
    %190 = arith.truncf %187 : vector<52x32xf32> to vector<52x32xbf16>
    %c0_88 = arith.constant 0 : index
    %c32_89 = arith.constant 32 : index
    %191 = vector.load %arg5[%c0_88, %c32_89] : memref<52x128xbf16, #tpu.memory_space<vmem>>, vector<52x32xbf16>
    tpu.vector_store %arg5[%c0_88, %c32_89], %190 {strides = array<i32>} : memref<52x128xbf16, #tpu.memory_space<vmem>>, vector<52x32xbf16>,
    %c0_90 = arith.constant 0 : index
    %c0_91 = arith.constant 0 : index
    %192 = vector.load %arg4[%c0_90, %c0_91] : memref<32x128xbf16, #tpu.memory_space<vmem>>, vector<32x64xbf16>
    %c0_92 = arith.constant 0 : index
    %c0_93 = arith.constant 0 : index
    %193 = vector.load %arg5[%c0_92, %c0_93] : memref<52x128xbf16, #tpu.memory_space<vmem>>, vector<52x64xbf16>
    %c192_94 = arith.constant 192 : index
    %c0_95 = arith.constant 0 : index
    %194 = vector.load %arg1[%c192_94, %c0_95] : memref<1344x128xbf16, #tpu.memory_space<vmem>>, vector<32x52xbf16>
    %cst_96 = arith.constant dense<0.000000e+00> : vector<32x64xf32>
    %195 = tpu.matmul %194, %193, %cst_96 {dimension_numbers = #tpu.dot_dimension_numbers<[1], [0], [0], [1], [0, 0, 1, 1], [], []>} : vector<32x52xbf16>, vector<52x64xbf16>, vector<32x64xf32> -> vector<32x64xf32>
    %c224_97 = arith.constant 224 : index
    %c0_98 = arith.constant 0 : index
    %196 = vector.load %arg1[%c224_97, %c0_98] : memref<1344x128xbf16, #tpu.memory_space<vmem>>, vector<52x32xbf16>
    %cst_99 = arith.constant dense<0.000000e+00> : vector<52x64xf32>
    %197 = tpu.matmul %196, %192, %cst_99 {dimension_numbers = #tpu.dot_dimension_numbers<[1], [0], [0], [1], [0, 0, 1, 1], [], []>} : vector<52x32xbf16>, vector<32x64xbf16>, vector<52x64xf32> -> vector<52x64xf32>
    %c576 = arith.constant 576 : index
    %c0_100 = arith.constant 0 : index
    %198 = vector.load %arg1[%c576, %c0_100] : memref<1344x128xbf16, #tpu.memory_space<vmem>>, vector<64x33xbf16>
    %c640 = arith.constant 640 : index
    %c0_101 = arith.constant 0 : index
    %199 = vector.load %arg1[%c640, %c0_101] : memref<1344x128xbf16, #tpu.memory_space<vmem>>, vector<64x33xbf16>
    %c112 = arith.constant 112 : index
    %c0_102 = arith.constant 0 : index
    %200 = vector.load %arg2[%c112, %c0_102] : memref<192x128xf32, #tpu.memory_space<vmem>>, vector<1x33xf32>
    %cst_103 = arith.constant dense<0.000000e+00> : vector<32x33xf32>
    %201 = tpu.matmul %192, %198, %cst_103 {dimension_numbers = #tpu.dot_dimension_numbers<[1], [0], [0], [1], [0, 0, 1, 1], [], []>} : vector<32x64xbf16>, vector<64x33xbf16>, vector<32x33xf32> -> vector<32x33xf32>
    %202 = arith.truncf %195 : vector<32x64xf32> to vector<32x64xbf16>
    %cst_104 = arith.constant dense<0.000000e+00> : vector<32x33xf32>
    %203 = tpu.matmul %202, %199, %cst_104 {dimension_numbers = #tpu.dot_dimension_numbers<[1], [0], [0], [1], [0, 0, 1, 1], [], []>} : vector<32x64xbf16>, vector<64x33xbf16>, vector<32x33xf32> -> vector<32x33xf32>
    %204 = arith.addf %201, %203 : vector<32x33xf32>
    %205 = vector.broadcast %200 : vector<1x33xf32> to vector<32x33xf32>
    %206 = arith.addf %204, %205 : vector<32x33xf32>
    %207 = vector.extract_strided_slice %206 {offsets = [0, 0], sizes = [32, 32], strides = [1, 1]} : vector<32x33xf32> to vector<32x32xf32>
    %cst_105 = arith.constant 0.000000e+00 : f32
    %208 = vector.broadcast %cst_105 : f32 to vector<32x32xf32>
    %209 = arith.maximumf %207, %208 : vector<32x32xf32>
    %210 = vector.extract_strided_slice %206 {offsets = [0, 32], sizes = [32, 1], strides = [1, 1]} : vector<32x33xf32> to vector<32x1xf32>
    %cst_106 = arith.constant 0.000000e+00 : f32
    %211 = vector.broadcast %cst_106 : f32 to vector<32x1xf32>
    %212 = arith.subf %211, %210 : vector<32x1xf32>
    %213 = math.exp %212 : vector<32x1xf32>
    %cst_107 = arith.constant 1.000000e+00 : f32
    %214 = vector.broadcast %cst_107 : f32 to vector<32x1xf32>
    %215 = arith.addf %214, %213 : vector<32x1xf32>
    %cst_108 = arith.constant 1.000000e+00 : f32
    %216 = vector.broadcast %cst_108 : f32 to vector<32x1xf32>
    %217 = arith.divf %216, %215 : vector<32x1xf32>
    %218 = vector.broadcast %217 : vector<32x1xf32> to vector<32x32xf32>
    %219 = arith.mulf %209, %218 : vector<32x32xf32>
    %c768 = arith.constant 768 : index
    %c0_109 = arith.constant 0 : index
    %220 = vector.load %arg1[%c768, %c0_109] : memref<1344x128xbf16, #tpu.memory_space<vmem>>, vector<64x33xbf16>
    %c832 = arith.constant 832 : index
    %c0_110 = arith.constant 0 : index
    %221 = vector.load %arg1[%c832, %c0_110] : memref<1344x128xbf16, #tpu.memory_space<vmem>>, vector<64x33xbf16>
    %c120 = arith.constant 120 : index
    %c0_111 = arith.constant 0 : index
    %222 = vector.load %arg2[%c120, %c0_111] : memref<192x128xf32, #tpu.memory_space<vmem>>, vector<1x33xf32>
    %cst_112 = arith.constant dense<0.000000e+00> : vector<52x33xf32>
    %223 = tpu.matmul %193, %220, %cst_112 {dimension_numbers = #tpu.dot_dimension_numbers<[1], [0], [0], [1], [0, 0, 1, 1], [], []>} : vector<52x64xbf16>, vector<64x33xbf16>, vector<52x33xf32> -> vector<52x33xf32>
    %224 = arith.truncf %197 : vector<52x64xf32> to vector<52x64xbf16>
    %cst_113 = arith.constant dense<0.000000e+00> : vector<52x33xf32>
    %225 = tpu.matmul %224, %221, %cst_113 {dimension_numbers = #tpu.dot_dimension_numbers<[1], [0], [0], [1], [0, 0, 1, 1], [], []>} : vector<52x64xbf16>, vector<64x33xbf16>, vector<52x33xf32> -> vector<52x33xf32>
    %226 = arith.addf %223, %225 : vector<52x33xf32>
    %227 = vector.broadcast %222 : vector<1x33xf32> to vector<52x33xf32>
    %228 = arith.addf %226, %227 : vector<52x33xf32>
    %229 = vector.extract_strided_slice %228 {offsets = [0, 0], sizes = [52, 32], strides = [1, 1]} : vector<52x33xf32> to vector<52x32xf32>
    %cst_114 = arith.constant 0.000000e+00 : f32
    %230 = vector.broadcast %cst_114 : f32 to vector<52x32xf32>
    %231 = arith.maximumf %229, %230 : vector<52x32xf32>
    %232 = vector.extract_strided_slice %228 {offsets = [0, 32], sizes = [52, 1], strides = [1, 1]} : vector<52x33xf32> to vector<52x1xf32>
    %cst_115 = arith.constant 0.000000e+00 : f32
    %233 = vector.broadcast %cst_115 : f32 to vector<52x1xf32>
    %234 = arith.subf %233, %232 : vector<52x1xf32>
    %235 = math.exp %234 : vector<52x1xf32>
    %cst_116 = arith.constant 1.000000e+00 : f32
    %236 = vector.broadcast %cst_116 : f32 to vector<52x1xf32>
    %237 = arith.addf %236, %235 : vector<52x1xf32>
    %cst_117 = arith.constant 1.000000e+00 : f32
    %238 = vector.broadcast %cst_117 : f32 to vector<52x1xf32>
    %239 = arith.divf %238, %237 : vector<52x1xf32>
    %240 = vector.broadcast %239 : vector<52x1xf32> to vector<52x32xf32>
    %241 = arith.mulf %231, %240 : vector<52x32xf32>
    %c96_118 = arith.constant 96 : index
    %c0_119 = arith.constant 0 : index
    %242 = vector.load %arg1[%c96_118, %c0_119] : memref<1344x128xbf16, #tpu.memory_space<vmem>>, vector<32x32xbf16>
    %c704 = arith.constant 704 : index
    %c0_120 = arith.constant 0 : index
    %243 = vector.load %arg1[%c704, %c0_120] : memref<1344x128xbf16, #tpu.memory_space<vmem>>, vector<32x32xbf16>
    %c736 = arith.constant 736 : index
    %c0_121 = arith.constant 0 : index
    %244 = vector.load %arg1[%c736, %c0_121] : memref<1344x128xbf16, #tpu.memory_space<vmem>>, vector<32x32xbf16>
    %c128_122 = arith.constant 128 : index
    %c0_123 = arith.constant 0 : index
    %245 = vector.load %arg2[%c128_122, %c0_123] : memref<192x128xf32, #tpu.memory_space<vmem>>, vector<1x32xf32>
    %c136 = arith.constant 136 : index
    %c0_124 = arith.constant 0 : index
    %246 = vector.load %arg2[%c136, %c0_124] : memref<192x128xf32, #tpu.memory_space<vmem>>, vector<1x32xf32>
    %c144 = arith.constant 144 : index
    %c0_125 = arith.constant 0 : index
    %247 = vector.load %arg2[%c144, %c0_125] : memref<192x128xf32, #tpu.memory_space<vmem>>, vector<1x32xf32>
    %cst_126 = arith.constant dense<0.000000e+00> : vector<32x32xf32>
    %248 = tpu.matmul %242, %219, %cst_126 {dimension_numbers = #tpu.dot_dimension_numbers<[1], [0], [0], [1], [0, 0, 1, 1], [], []>} : vector<32x32xbf16>, vector<32x32xf32>, vector<32x32xf32> -> vector<32x32xf32>
    %249 = arith.truncf %219 : vector<32x32xf32> to vector<32x32xbf16>
    %cst_127 = arith.constant dense<0.000000e+00> : vector<32x32xf32>
    %250 = tpu.matmul %249, %243, %cst_127 {dimension_numbers = #tpu.dot_dimension_numbers<[1], [0], [0], [1], [0, 0, 1, 1], [], []>} : vector<32x32xbf16>, vector<32x32xbf16>, vector<32x32xf32> -> vector<32x32xf32>
    %251 = arith.subf %219, %248 : vector<32x32xf32>
    %252 = arith.truncf %251 : vector<32x32xf32> to vector<32x32xbf16>
    %cst_128 = arith.constant dense<0.000000e+00> : vector<32x32xf32>
    %253 = tpu.matmul %252, %244, %cst_128 {dimension_numbers = #tpu.dot_dimension_numbers<[1], [0], [0], [1], [0, 0, 1, 1], [], []>} : vector<32x32xbf16>, vector<32x32xbf16>, vector<32x32xf32> -> vector<32x32xf32>
    %254 = arith.addf %250, %253 : vector<32x32xf32>
    %255 = vector.broadcast %245 : vector<1x32xf32> to vector<32x32xf32>
    %256 = arith.addf %254, %255 : vector<32x32xf32>
    %cst_129 = arith.constant dense<0.000000e+00> : vector<32xf32>
    %257 = vector.multi_reduction <add>, %256, %cst_129 [0] : vector<32x32xf32> to vector<32xf32>
    %258 = vector.shape_cast %257 : vector<32xf32> to vector<1x32xf32>
    %cst_130 = arith.constant 3.200000e+01 : f32
    %259 = vector.broadcast %cst_130 : f32 to vector<1x32xf32>
    %260 = arith.divf %258, %259 : vector<1x32xf32>
    %261 = vector.broadcast %260 : vector<1x32xf32> to vector<32x32xf32>
    %262 = arith.subf %256, %261 : vector<32x32xf32>
    %263 = arith.mulf %262, %262 : vector<32x32xf32>
    %cst_131 = arith.constant dense<0.000000e+00> : vector<32xf32>
    %264 = vector.multi_reduction <add>, %263, %cst_131 [0] : vector<32x32xf32> to vector<32xf32>
    %265 = vector.shape_cast %264 : vector<32xf32> to vector<1x32xf32>
    %cst_132 = arith.constant 3.200000e+01 : f32
    %266 = vector.broadcast %cst_132 : f32 to vector<1x32xf32>
    %267 = arith.divf %265, %266 : vector<1x32xf32>
    %cst_133 = arith.constant 9.99999974E-6 : f32
    %268 = vector.broadcast %cst_133 : f32 to vector<1x32xf32>
    %269 = arith.addf %267, %268 : vector<1x32xf32>
    %270 = math.rsqrt %269 : vector<1x32xf32>
    %271 = vector.broadcast %270 : vector<1x32xf32> to vector<32x32xf32>
    %272 = arith.mulf %262, %271 : vector<32x32xf32>
    %273 = vector.broadcast %246 : vector<1x32xf32> to vector<32x32xf32>
    %274 = arith.mulf %272, %273 : vector<32x32xf32>
    %275 = vector.broadcast %247 : vector<1x32xf32> to vector<32x32xf32>
    %276 = arith.addf %274, %275 : vector<32x32xf32>
    %cst_134 = arith.constant 0.000000e+00 : f32
    %277 = vector.broadcast %cst_134 : f32 to vector<32x32xf32>
    %278 = arith.maximumf %276, %277 : vector<32x32xf32>
    %c128_135 = arith.constant 128 : index
    %c0_136 = arith.constant 0 : index
    %279 = vector.load %arg1[%c128_135, %c0_136] : memref<1344x128xbf16, #tpu.memory_space<vmem>>, vector<52x52xbf16>
    %c896 = arith.constant 896 : index
    %c0_137 = arith.constant 0 : index
    %280 = vector.load %arg1[%c896, %c0_137] : memref<1344x128xbf16, #tpu.memory_space<vmem>>, vector<32x32xbf16>
    %c928 = arith.constant 928 : index
    %c0_138 = arith.constant 0 : index
    %281 = vector.load %arg1[%c928, %c0_138] : memref<1344x128xbf16, #tpu.memory_space<vmem>>, vector<32x32xbf16>
    %c152 = arith.constant 152 : index
    %c0_139 = arith.constant 0 : index
    %282 = vector.load %arg2[%c152, %c0_139] : memref<192x128xf32, #tpu.memory_space<vmem>>, vector<1x32xf32>
    %c160 = arith.constant 160 : index
    %c0_140 = arith.constant 0 : index
    %283 = vector.load %arg2[%c160, %c0_140] : memref<192x128xf32, #tpu.memory_space<vmem>>, vector<1x32xf32>
    %c168 = arith.constant 168 : index
    %c0_141 = arith.constant 0 : index
    %284 = vector.load %arg2[%c168, %c0_141] : memref<192x128xf32, #tpu.memory_space<vmem>>, vector<1x32xf32>
    %cst_142 = arith.constant dense<0.000000e+00> : vector<52x32xf32>
    %285 = tpu.matmul %279, %241, %cst_142 {dimension_numbers = #tpu.dot_dimension_numbers<[1], [0], [0], [1], [0, 0, 1, 1], [], []>} : vector<52x52xbf16>, vector<52x32xf32>, vector<52x32xf32> -> vector<52x32xf32>
    %286 = arith.truncf %241 : vector<52x32xf32> to vector<52x32xbf16>
    %cst_143 = arith.constant dense<0.000000e+00> : vector<52x32xf32>
    %287 = tpu.matmul %286, %280, %cst_143 {dimension_numbers = #tpu.dot_dimension_numbers<[1], [0], [0], [1], [0, 0, 1, 1], [], []>} : vector<52x32xbf16>, vector<32x32xbf16>, vector<52x32xf32> -> vector<52x32xf32>
    %288 = arith.subf %241, %285 : vector<52x32xf32>
    %289 = arith.truncf %288 : vector<52x32xf32> to vector<52x32xbf16>
    %cst_144 = arith.constant dense<0.000000e+00> : vector<52x32xf32>
    %290 = tpu.matmul %289, %281, %cst_144 {dimension_numbers = #tpu.dot_dimension_numbers<[1], [0], [0], [1], [0, 0, 1, 1], [], []>} : vector<52x32xbf16>, vector<32x32xbf16>, vector<52x32xf32> -> vector<52x32xf32>
    %291 = arith.addf %287, %290 : vector<52x32xf32>
    %292 = vector.broadcast %282 : vector<1x32xf32> to vector<52x32xf32>
    %293 = arith.addf %291, %292 : vector<52x32xf32>
    %cst_145 = arith.constant dense<0.000000e+00> : vector<32xf32>
    %294 = vector.multi_reduction <add>, %293, %cst_145 [0] : vector<52x32xf32> to vector<32xf32>
    %295 = vector.shape_cast %294 : vector<32xf32> to vector<1x32xf32>
    %cst_146 = arith.constant 5.200000e+01 : f32
    %296 = vector.broadcast %cst_146 : f32 to vector<1x32xf32>
    %297 = arith.divf %295, %296 : vector<1x32xf32>
    %298 = vector.broadcast %297 : vector<1x32xf32> to vector<52x32xf32>
    %299 = arith.subf %293, %298 : vector<52x32xf32>
    %300 = arith.mulf %299, %299 : vector<52x32xf32>
    %cst_147 = arith.constant dense<0.000000e+00> : vector<32xf32>
    %301 = vector.multi_reduction <add>, %300, %cst_147 [0] : vector<52x32xf32> to vector<32xf32>
    %302 = vector.shape_cast %301 : vector<32xf32> to vector<1x32xf32>
    %cst_148 = arith.constant 5.200000e+01 : f32
    %303 = vector.broadcast %cst_148 : f32 to vector<1x32xf32>
    %304 = arith.divf %302, %303 : vector<1x32xf32>
    %cst_149 = arith.constant 9.99999974E-6 : f32
    %305 = vector.broadcast %cst_149 : f32 to vector<1x32xf32>
    %306 = arith.addf %304, %305 : vector<1x32xf32>
    %307 = math.rsqrt %306 : vector<1x32xf32>
    %308 = vector.broadcast %307 : vector<1x32xf32> to vector<52x32xf32>
    %309 = arith.mulf %299, %308 : vector<52x32xf32>
    %310 = vector.broadcast %283 : vector<1x32xf32> to vector<52x32xf32>
    %311 = arith.mulf %309, %310 : vector<52x32xf32>
    %312 = vector.broadcast %284 : vector<1x32xf32> to vector<52x32xf32>
    %313 = arith.addf %311, %312 : vector<52x32xf32>
    %cst_150 = arith.constant 0.000000e+00 : f32
    %314 = vector.broadcast %cst_150 : f32 to vector<52x32xf32>
    %315 = arith.maximumf %313, %314 : vector<52x32xf32>
    %316 = arith.truncf %278 : vector<32x32xf32> to vector<32x32xbf16>
    %c0_151 = arith.constant 0 : index
    %c64_152 = arith.constant 64 : index
    %317 = vector.load %arg4[%c0_151, %c64_152] : memref<32x128xbf16, #tpu.memory_space<vmem>>, vector<32x32xbf16>
    tpu.vector_store %arg4[%c0_151, %c64_152], %316 {strides = array<i32>} : memref<32x128xbf16, #tpu.memory_space<vmem>>, vector<32x32xbf16>,
    %318 = arith.truncf %315 : vector<52x32xf32> to vector<52x32xbf16>
    %c0_153 = arith.constant 0 : index
    %c64_154 = arith.constant 64 : index
    %319 = vector.load %arg5[%c0_153, %c64_154] : memref<52x128xbf16, #tpu.memory_space<vmem>>, vector<52x32xbf16>
    tpu.vector_store %arg5[%c0_153, %c64_154], %318 {strides = array<i32>} : memref<52x128xbf16, #tpu.memory_space<vmem>>, vector<52x32xbf16>,
    %c0_155 = arith.constant 0 : index
    %c0_156 = arith.constant 0 : index
    %320 = vector.load %arg4[%c0_155, %c0_156] : memref<32x128xbf16, #tpu.memory_space<vmem>>, vector<32x96xbf16>
    %c0_157 = arith.constant 0 : index
    %c0_158 = arith.constant 0 : index
    %321 = vector.load %arg5[%c0_157, %c0_158] : memref<52x128xbf16, #tpu.memory_space<vmem>>, vector<52x96xbf16>
    %c192_159 = arith.constant 192 : index
    %c0_160 = arith.constant 0 : index
    %322 = vector.load %arg1[%c192_159, %c0_160] : memref<1344x128xbf16, #tpu.memory_space<vmem>>, vector<32x52xbf16>
    %cst_161 = arith.constant dense<0.000000e+00> : vector<32x96xf32>
    %323 = tpu.matmul %322, %321, %cst_161 {dimension_numbers = #tpu.dot_dimension_numbers<[1], [0], [0], [1], [0, 0, 1, 1], [], []>} : vector<32x52xbf16>, vector<52x96xbf16>, vector<32x96xf32> -> vector<32x96xf32>
    %c224_162 = arith.constant 224 : index
    %c0_163 = arith.constant 0 : index
    %324 = vector.load %arg1[%c224_162, %c0_163] : memref<1344x128xbf16, #tpu.memory_space<vmem>>, vector<52x32xbf16>
    %cst_164 = arith.constant dense<0.000000e+00> : vector<52x96xf32>
    %325 = tpu.matmul %324, %320, %cst_164 {dimension_numbers = #tpu.dot_dimension_numbers<[1], [0], [0], [1], [0, 0, 1, 1], [], []>} : vector<52x32xbf16>, vector<32x96xbf16>, vector<52x96xf32> -> vector<52x96xf32>
    %c960 = arith.constant 960 : index
    %c0_165 = arith.constant 0 : index
    %326 = vector.load %arg1[%c960, %c0_165] : memref<1344x128xbf16, #tpu.memory_space<vmem>>, vector<96x1xbf16>
    %cst_166 = arith.constant dense<0.000000e+00> : vector<32x1xf32>
    %327 = tpu.matmul %320, %326, %cst_166 {dimension_numbers = #tpu.dot_dimension_numbers<[1], [0], [0], [1], [0, 0, 1, 1], [], []>} : vector<32x96xbf16>, vector<96x1xbf16>, vector<32x1xf32> -> vector<32x1xf32>
    %c1056 = arith.constant 1056 : index
    %c0_167 = arith.constant 0 : index
    %328 = vector.load %arg1[%c1056, %c0_167] : memref<1344x128xbf16, #tpu.memory_space<vmem>>, vector<96x1xbf16>
    %329 = arith.truncf %323 : vector<32x96xf32> to vector<32x96xbf16>
    %cst_168 = arith.constant dense<0.000000e+00> : vector<32x1xf32>
    %330 = tpu.matmul %329, %328, %cst_168 {dimension_numbers = #tpu.dot_dimension_numbers<[1], [0], [0], [1], [0, 0, 1, 1], [], []>} : vector<32x96xbf16>, vector<96x1xbf16>, vector<32x1xf32> -> vector<32x1xf32>
    %331 = arith.addf %327, %330 : vector<32x1xf32>
    %c176 = arith.constant 176 : index
    %c0_169 = arith.constant 0 : index
    %332 = vector.load %arg2[%c176, %c0_169] : memref<192x128xf32, #tpu.memory_space<vmem>>, vector<1x1xf32>
    %333 = vector.broadcast %332 : vector<1x1xf32> to vector<32x1xf32>
    %334 = arith.addf %331, %333 : vector<32x1xf32>
    %cst_170 = arith.constant 0.000000e+00 : f32
    %335 = vector.broadcast %cst_170 : f32 to vector<32x1xf32>
    %336 = arith.subf %335, %334 : vector<32x1xf32>
    %337 = math.exp %336 : vector<32x1xf32>
    %cst_171 = arith.constant 1.000000e+00 : f32
    %338 = vector.broadcast %cst_171 : f32 to vector<32x1xf32>
    %339 = arith.addf %338, %337 : vector<32x1xf32>
    %cst_172 = arith.constant 1.000000e+00 : f32
    %340 = vector.broadcast %cst_172 : f32 to vector<32x1xf32>
    %341 = arith.divf %340, %339 : vector<32x1xf32>
    %c1152 = arith.constant 1152 : index
    %c0_173 = arith.constant 0 : index
    %342 = vector.load %arg1[%c1152, %c0_173] : memref<1344x128xbf16, #tpu.memory_space<vmem>>, vector<96x1xbf16>
    %cst_174 = arith.constant dense<0.000000e+00> : vector<52x1xf32>
    %343 = tpu.matmul %321, %342, %cst_174 {dimension_numbers = #tpu.dot_dimension_numbers<[1], [0], [0], [1], [0, 0, 1, 1], [], []>} : vector<52x96xbf16>, vector<96x1xbf16>, vector<52x1xf32> -> vector<52x1xf32>
    %c1248 = arith.constant 1248 : index
    %c0_175 = arith.constant 0 : index
    %344 = vector.load %arg1[%c1248, %c0_175] : memref<1344x128xbf16, #tpu.memory_space<vmem>>, vector<96x1xbf16>
    %345 = arith.truncf %325 : vector<52x96xf32> to vector<52x96xbf16>
    %cst_176 = arith.constant dense<0.000000e+00> : vector<52x1xf32>
    %346 = tpu.matmul %345, %344, %cst_176 {dimension_numbers = #tpu.dot_dimension_numbers<[1], [0], [0], [1], [0, 0, 1, 1], [], []>} : vector<52x96xbf16>, vector<96x1xbf16>, vector<52x1xf32> -> vector<52x1xf32>
    %347 = arith.addf %343, %346 : vector<52x1xf32>
    %c184 = arith.constant 184 : index
    %c0_177 = arith.constant 0 : index
    %348 = vector.load %arg2[%c184, %c0_177] : memref<192x128xf32, #tpu.memory_space<vmem>>, vector<1x1xf32>
    %349 = vector.broadcast %348 : vector<1x1xf32> to vector<52x1xf32>
    %350 = arith.addf %347, %349 : vector<52x1xf32>
    %cst_178 = arith.constant 0.000000e+00 : f32
    %351 = vector.broadcast %cst_178 : f32 to vector<52x1xf32>
    %352 = arith.subf %351, %350 : vector<52x1xf32>
    %353 = math.exp %352 : vector<52x1xf32>
    %cst_179 = arith.constant 1.000000e+00 : f32
    %354 = vector.broadcast %cst_179 : f32 to vector<52x1xf32>
    %355 = arith.addf %354, %353 : vector<52x1xf32>
    %cst_180 = arith.constant 1.000000e+00 : f32
    %356 = vector.broadcast %cst_180 : f32 to vector<52x1xf32>
    %357 = arith.divf %356, %355 : vector<52x1xf32>
    %cst_181 = arith.constant 0.000000e+00 : f32
    %358 = vector.broadcast %cst_181 : f32 to vector<88x128xf32>
    %c0_182 = arith.constant 0 : index
    %c0_183 = arith.constant 0 : index
    %359 = vector.load %arg3[%c0_182, %c0_183] : memref<88x128xf32, #tpu.memory_space<vmem>>, vector<88x128xf32>
    tpu.vector_store %arg3[%c0_182, %c0_183], %358 {strides = array<i32>} : memref<88x128xf32, #tpu.memory_space<vmem>>, vector<88x128xf32>,
    %360 = vector.shape_cast %341 : vector<32x1xf32> to vector<32x1xf32>
    %361 = vector.broadcast %360 : vector<32x1xf32> to vector<32x128xf32>
    %c0_184 = arith.constant 0 : index
    %c0_185 = arith.constant 0 : index
    %362 = vector.load %arg3[%c0_184, %c0_185] : memref<88x128xf32, #tpu.memory_space<vmem>>, vector<32x128xf32>
    tpu.vector_store %arg3[%c0_184, %c0_185], %361 {strides = array<i32>} : memref<88x128xf32, #tpu.memory_space<vmem>>, vector<32x128xf32>,
    %363 = vector.shape_cast %357 : vector<52x1xf32> to vector<52x1xf32>
    %364 = vector.broadcast %363 : vector<52x1xf32> to vector<52x128xf32>
    %c32_186 = arith.constant 32 : index
    %c0_187 = arith.constant 0 : index
    %365 = vector.load %arg3[%c32_186, %c0_187] : memref<88x128xf32, #tpu.memory_space<vmem>>, vector<52x128xf32>
    tpu.vector_store %arg3[%c32_186, %c0_187], %364 {strides = array<i32>} : memref<88x128xf32, #tpu.memory_space<vmem>>, vector<52x128xf32>,
    return
  }
  func.func @transform_0(%arg0: i32) -> (i32, i32) {
    %c0_i32 = arith.constant 0 : i32
    %c0_i32_0 = arith.constant 0 : i32
    %c0_i32_1 = arith.constant 0 : i32
    return %c0_i32, %c0_i32_0 : i32, i32
  }
  func.func @transform_1(%arg0: i32) -> (i32, i32) {
    %c0_i32 = arith.constant 0 : i32
    %c0_i32_0 = arith.constant 0 : i32
    %c0_i32_1 = arith.constant 0 : i32
    return %c0_i32, %c0_i32_0 : i32, i32
  }
  func.func @transform_2(%arg0: i32) -> (i32, i32) {
    %c0_i32 = arith.constant 0 : i32
    %c0_i32_0 = arith.constant 0 : i32
    %c0_i32_1 = arith.constant 0 : i32
    return %c0_i32, %c0_i32_0 : i32, i32
  }
}

</mosaic_0001>

<llo_original>
// kernel: hl_hgat_forward.1
$region0: #{hl_hgat_forward.1}
  #allocation0 [shape = 'u32[]', space=smem, size = 0x4, offset = 0x4, fixed_abs, tag = 'smem constant byte address 0x4 - core index']
  #allocation1 [shape = 'u32[144,128]{1,0:T(1,128)}', space=vmem, size = 0x12000, scoped, tag = 'internal scratch']
  #allocation2 [shape = 'bf16[32,128]{1,0:T(8,128)(2,1)}', space=vmem, size = 0x2000, scoped, tag = 'scratch operand']
  #allocation3 [shape = 'bf16[52,128]{1,0:T(8,128)(2,1)}', space=vmem, size = 0x3800, scoped, tag = 'scratch operand']
  %s0 = inlined_call_operand.vmem [shape: bf16[1344,128], index: 0, kind: input, shape index: {}]
  %s1 = inlined_call_operand.vmem [shape: f32[192,128], index: 1, kind: input, shape index: {}]
  %s2 = inlined_call_operand.vmem [shape: f32[88,128], index: 2, kind: output, shape index: {}]
  %s3 = sld [smem:[#allocation0]]
  $region18: #{hl_hgat_forward.1} parent=0
    _
  %s5 = ssub.s32 1, %s3
  %s6 = scalar_select 0, %s5, %s3
  // Predicated region
  $region2: #{hl_hgat_forward.1} parent=0 // pred_check
    _
  $region3: #{hl_hgat_forward.1} parent=0 // pred_check_branch
    %8 = sbr.rel (0) target = $region5
  $region4: #{hl_hgat_forward.1} parent=0 // pred_region
    _
  $region5: #{hl_hgat_forward.1} parent=0 // pred_fallthru
    _
  // Predicated region
  $region6: #{hl_hgat_forward.1} parent=0 // pred_check
    _
  $region7: #{hl_hgat_forward.1} parent=0 // pred_check_branch
    %10 = sbr.rel (0) target = $region9
  $region8: #{hl_hgat_forward.1} parent=0 // pred_region
    _
  $region9: #{hl_hgat_forward.1} parent=0 // pred_fallthru
    _
  %v12 = vld [vmem:[%s0] sm:$0xf]
  %v13 = vld [vmem:[%s0 + $0x4] sm:$0xf]
  %v14 = vld [vmem:[%s0 + $0x8] sm:$0xf]
  %v15 = vld [vmem:[%s0 + $0xc] sm:$0xf]
  %v16 = vld [vmem:[%s0 + $0x90] sm:$0xf]
  %v17 = vld [vmem:[%s0 + $0x94] sm:$0xf]
  %v18 = vld [vmem:[%s1] sm:$0x1]
  %v19 = vlaneseq
  %v20 = vshrl.u32 %v19, 7
  %v21 = vsub.s32 0, %v20
  %v22 = vrot.slane %v18, %v21
  %v27 = vunpack.c.l.b16 %v12
  %v28 = vunpack.c.l.b16 %v13
  %v29 = vunpack.c.l.b16 %v14
  %v30 = vunpack.c.l.b16 %v15
  %v31 = vpack.c.b16 %v28, %v27
  %v32 = vpack.c.b16 %v30, %v29
  %v35 = vunpack.c.l.b16 %v16
  %v36 = vunpack.c.l.b16 %v17
  %v37 = vpack.c.b16 %v36, %v35
  %vm38 = vcmask 121856
  %v40 = vsel %vm38, %v31, 0
  %v43 = vsel %vm38, %v32, 0
  %vm45 = vcmask 1046528
  %vm46 = vcmask 1047552
  %v47 = vsel %vm45, 4294967295, 65535
  %v48 = vsel %vm46, %v47, 0
  %v50 = vand.u32 %v37, %v48
  %52 = vmatprep.subr.bf16.mxu0 0
  %53 = vmatpush1.bf16.msra.mxu0 0
  %54 = vmatprep.subr.bf16.mxu0 0
  %55 = vmatpush1.bf16.msra.mxu0 0
  %56 = vmatprep.subr.bf16.mxu0 0
  %57 = vmatpush1.bf16.msra.mxu0 0
  %58 = vmatprep.subr.bf16.mxu0 0
  %59 = vmatpush1.bf16.msra.mxu0 0
  %60 = vmatprep.subr.bf16.mxu0 0
  %61 = vmatpush1.bf16.msra.mxu0 0
  %62 = vmatprep.subr.bf16.mxu0 0
  %63 = vmatpush1.bf16.msra.mxu0 0
  %64 = vmatprep.subr.bf16.mxu0 0
  %65 = vmatpush1.bf16.msra.mxu0 0
  %66 = vmatprep.subr.bf16.mxu0 0
  %67 = vmatpush1.bf16.msra.mxu0 %v50
  %68 = vmatprep.subr.bf16.mxu0 0
  %69 = vmatpush2.bf16.msra.mxu0 0
  %70 = vmatprep.subr.bf16.mxu0 0
  %71 = vmatpush2.bf16.msra.mxu0 0
  %72 = vmatprep.subr.bf16.mxu0 0
  %73 = vmatpush2.bf16.msra.mxu0 0
  %74 = vmatprep.subr.bf16.mxu0 0
  %75 = vmatpush2.bf16.msra.mxu0 0
  %76 = vmatprep.subr.bf16.mxu0 0
  %77 = vmatpush2.bf16.msra.mxu0 0
  %78 = vmatprep.subr.bf16.mxu0 0
  %79 = vmatpush2.bf16.msra.mxu0 0
  %80 = vmatprep.subr.bf16.mxu0 0
  %81 = vmatpush2.bf16.msra.mxu0 0
  %82 = vmatprep.subr.bf16.mxu0 0
  %83 = vmatpush2.bf16.msra.mxu0 0
  %84 = vmatprep.mubr.bf16.mxu0 0
  %85 = vmatmul.mubr.bf16.gmra.mxu0 %v40
  %v86 = vpop.f32.mrf.mxu0
  %v87 = vadd.f32 %v22, %v86
  %v88 = vpop.f32.mrf.mxu0
  %v89 = vpop.f32.mrf.mxu0
  %v90 = vadd.f32 %v22, %v89
  %v91 = vpop.f32.mrf.mxu0
  %92 = vmatprep.mubr.bf16.mxu0 0
  %93 = vmatmul.mubr.bf16.gmra.mxu0 %v43
  %v94 = vpop.f32.mrf.mxu0
  %v95 = vadd.f32 %v22, %v94
  %v96 = vpop.f32.mrf.mxu0
  %v97 = vpop.f32.mrf.mxu0
  %v98 = vadd.f32 %v22, %v97
  %v99 = vpop.f32.mrf.mxu0
  %100 = vdwg.mxu0
  %v101 = vld [vmem:[%s0 + $0x10] sm:$0xf]
  %v102 = vld [vmem:[%s0 + $0x14] sm:$0xf]
  %v103 = vld [vmem:[%s0 + $0x18] sm:$0xf]
  %v104 = vld [vmem:[%s0 + $0x1c] sm:$0xf]
  %v105 = vld [vmem:[%s0 + $0x20] sm:$0xf]
  %v106 = vld [vmem:[%s0 + $0x24] sm:$0xf]
  %v107 = vld [vmem:[%s0 + $0x28] sm:$0x3]
  %v108 = vld [vmem:[%s0 + $0x98] sm:$0xf]
  %v109 = vld [vmem:[%s0 + $0x9c] sm:$0x7]
  %v110 = vld [vmem:[%s1 + $0x18] sm:$0x1]
  %v111 = vlaneseq
  %v112 = vshrl.u32 %v111, 7
  %v113 = vsub.s32 0, %v112
  %v114 = vrot.slane %v110, %v113
  %v122 = vunpack.c.l.b16 %v101
  %v123 = vunpack.c.l.b16 %v102
  %v124 = vunpack.c.l.b16 %v103
  %v125 = vunpack.c.l.b16 %v104
  %v126 = vunpack.c.l.b16 %v105
  %v127 = vunpack.c.l.b16 %v106
  %v128 = vunpack.c.l.b16 %v107
  %v129 = vpack.c.b16 %v123, %v122
  %v130 = vpack.c.b16 %v125, %v124
  %v131 = vpack.c.b16 %v127, %v126
  %v132 = vpack.c.b16 %v128, %v128
  %v135 = vunpack.c.l.b16 %v108
  %v136 = vunpack.c.l.b16 %v109
  %v137 = vpack.c.b16 %v136, %v135
  %vm138 = vcmask 113664
  %v140 = vsel %vm138, %v129, 0
  %v143 = vsel %vm138, %v130, 0
  %v146 = vsel %vm138, %v131, 0
  %v149 = vsel %vm138, %v132, 0
  %v152 = vsel %vm45, %v137, 0
  %154 = vmatprep.subr.bf16.mxu0 0
  %155 = vmatpush1.bf16.msra.mxu0 0
  %156 = vmatprep.subr.bf16.mxu0 0
  %157 = vmatpush1.bf16.msra.mxu0 0
  %158 = vmatprep.subr.bf16.mxu0 0
  %159 = vmatpush1.bf16.msra.mxu0 0
  %160 = vmatprep.subr.bf16.mxu0 0
  %161 = vmatpush1.bf16.msra.mxu0 0
  %162 = vmatprep.subr.bf16.mxu0 0
  %163 = vmatpush1.bf16.msra.mxu0 0
  %164 = vmatprep.subr.bf16.mxu0 0
  %165 = vmatpush1.bf16.msra.mxu0 0
  %166 = vmatprep.subr.bf16.mxu0 0
  %167 = vmatpush1.bf16.msra.mxu0 0
  %168 = vmatprep.subr.bf16.mxu0 0
  %169 = vmatpush1.bf16.msra.mxu0 %v152
  %170 = vmatprep.subr.bf16.mxu0 0
  %171 = vmatpush2.bf16.msra.mxu0 0
  %172 = vmatprep.subr.bf16.mxu0 0
  %173 = vmatpush2.bf16.msra.mxu0 0
  %174 = vmatprep.subr.bf16.mxu0 0
  %175 = vmatpush2.bf16.msra.mxu0 0
  %176 = vmatprep.subr.bf16.mxu0 0
  %177 = vmatpush2.bf16.msra.mxu0 0
  %178 = vmatprep.subr.bf16.mxu0 0
  %179 = vmatpush2.bf16.msra.mxu0 0
  %180 = vmatprep.subr.bf16.mxu0 0
  %181 = vmatpush2.bf16.msra.mxu0 0
  %182 = vmatprep.subr.bf16.mxu0 0
  %183 = vmatpush2.bf16.msra.mxu0 0
  %184 = vmatprep.subr.bf16.mxu0 0
  %185 = vmatpush2.bf16.msra.mxu0 0
  %186 = vmatprep.mubr.bf16.mxu0 0
  %187 = vmatmul.mubr.bf16.gmra.mxu0 %v140
  %v188 = vpop.f32.mrf.mxu0
  %v189 = vadd.f32 %v114, %v188
  %v190 = vpop.f32.mrf.mxu0
  %v191 = vpop.f32.mrf.mxu0
  %v192 = vadd.f32 %v114, %v191
  %v193 = vpop.f32.mrf.mxu0
  %194 = vmatprep.mubr.bf16.mxu0 0
  %195 = vmatmul.mubr.bf16.gmra.mxu0 %v143
  %v196 = vpop.f32.mrf.mxu0
  %v197 = vadd.f32 %v114, %v196
  %v198 = vpop.f32.mrf.mxu0
  %v199 = vpop.f32.mrf.mxu0
  %v200 = vadd.f32 %v114, %v199
  %v201 = vpop.f32.mrf.mxu0
  %202 = vmatprep.mubr.bf16.mxu0 0
  %203 = vmatmul.mubr.bf16.gmra.mxu0 %v146
  %v204 = vpop.f32.mrf.mxu0
  %v205 = vadd.f32 %v114, %v204
  %v206 = vpop.f32.mrf.mxu0
  %v207 = vpop.f32.mrf.mxu0
  %v208 = vadd.f32 %v114, %v207
  %v209 = vpop.f32.mrf.mxu0
  %210 = vmatprep.mubr.bf16.mxu0 0
  %211 = vmatmul.mubr.bf16.gmra.mxu0 %v149
  %v212 = vpop.f32.mrf.mxu0
  %v213 = vadd.f32 %v114, %v212
  %v214 = vpop.f32.mrf.mxu0
  %v215 = vpop.f32.mrf.mxu0
  %v216 = vpop.f32.mrf.mxu0
  %217 = vdwg.mxu0
  %v218 = vld [vmem:[%s1 + $0x8] sm:$0x1]
  %v219 = vld [vmem:[%s1 + $0x10] sm:$0x1]
  %vm220 = vcmask 261120
  %v221 = vsel %vm220, %v87, 0.0
  %v222 = vsel %vm220, %v90, 0.0
  %v223 = vadd.f32 %v221, %v222
  %v224 = vsel %vm220, %v95, 0.0
  %v225 = vadd.f32 %v223, %v224
  %v226 = vsel %vm220, %v98, 0.0
  %v227 = vadd.f32 %v225, %v226
  %v228 = vrot.slane %v227, 4
  %v229 = vadd.f32 %v227, %v228
  %v230 = vrot.slane %v229, 2
  %v231 = vadd.f32 %v229, %v230
  %v232 = vrot.slane %v231, 1
  %v233 = vadd.f32 %v231, %v232
  %v234 = vrcp.pop 32.0
  %v235 = vmul.f32 %v233, %v234
  %v236 = vsub.f32 %v87, %v235
  %v237 = vsub.f32 %v90, %v235
  %v238 = vsub.f32 %v95, %v235
  %v239 = vsub.f32 %v98, %v235
  %v240 = vmul.f32 %v236, %v236
  %v241 = vmul.f32 %v237, %v237
  %v242 = vmul.f32 %v238, %v238
  %v243 = vmul.f32 %v239, %v239
  %v244 = vsel %vm220, %v240, 0.0
  %v245 = vsel %vm220, %v241, 0.0
  %v246 = vadd.f32 %v244, %v245
  %v247 = vsel %vm220, %v242, 0.0
  %v248 = vadd.f32 %v246, %v247
  %v249 = vsel %vm220, %v243, 0.0
  %v250 = vadd.f32 %v248, %v249
  %v251 = vrot.slane %v250, 4
  %v252 = vadd.f32 %v250, %v251
  %v253 = vrot.slane %v252, 2
  %v254 = vadd.f32 %v252, %v253
  %v255 = vrot.slane %v254, 1
  %v256 = vadd.f32 %v254, %v255
  %v257 = vmul.f32 %v256, %v234
  %v258 = vadd.f32 %v257, 1e-05
  %v259 = vrsqrt.pop %v258
  %v260 = vmul.f32 %v236, %v259
  %v261 = vmul.f32 %v237, %v259
  %v262 = vmul.f32 %v238, %v259
  %v263 = vmul.f32 %v239, %v259
  %v264 = vlaneseq
  %v265 = vshrl.u32 %v264, 7
  %v266 = vsub.s32 0, %v265
  %v267 = vrot.slane %v218, %v266
  %v268 = vmul.f32 %v260, %v267
  %v269 = vmul.f32 %v261, %v267
  %v270 = vmul.f32 %v262, %v267
  %v271 = vmul.f32 %v263, %v267
  %v272 = vlaneseq
  %v273 = vshrl.u32 %v272, 7
  %v274 = vsub.s32 0, %v273
  %v275 = vrot.slane %v219, %v274
  %v276 = vadd.f32 %v268, %v275
  %v277 = vadd.f32 %v269, %v275
  %v278 = vadd.f32 %v270, %v275
  %v279 = vadd.f32 %v271, %v275
  %v280 = vmax.f32 %v276, 0.0
  %v281 = vmax.f32 %v277, 0.0
  %v282 = vmax.f32 %v278, 0.0
  %v283 = vmax.f32 %v279, 0.0
  %v284 = vpack.c.bf16 %v281, %v280
  %v285 = vpack.c.bf16 %v283, %v282
  %v288 = vunpack.c.l.b16 %v284
  %v289 = vunpack.c.h.b16 %v284
  %v290 = vunpack.c.l.b16 %v285
  %v291 = vunpack.c.h.b16 %v285
  %v292 = vpack.c.b16 %v288, %v288
  %v293 = vpack.c.b16 %v289, %v289
  %v294 = vpack.c.b16 %v290, %v290
  %v295 = vpack.c.b16 %v291, %v291
  %vm300 = vcmask 257024
  %301 = vst.msk [vmem:[#allocation2] sm:$0xf] %vm300, %v292
  %302 = vst.msk [vmem:[#allocation2 + $0x4] sm:$0xf] %vm300, %v293
  %303 = vst.msk [vmem:[#allocation2 + $0x8] sm:$0xf] %vm300, %v294
  %304 = vst.msk [vmem:[#allocation2 + $0xc] sm:$0xf] %vm300, %v295
  %v305 = vld [vmem:[%s1 + $0x20] sm:$0x1]
  %v306 = vld [vmem:[%s1 + $0x28] sm:$0x1]
  %v307 = vsel %vm220, %v189, 0.0
  %v308 = vsel %vm220, %v192, 0.0
  %v309 = vadd.f32 %v307, %v308
  %v310 = vsel %vm220, %v197, 0.0
  %v311 = vadd.f32 %v309, %v310
  %v312 = vsel %vm220, %v200, 0.0
  %v313 = vadd.f32 %v311, %v312
  %v314 = vsel %vm220, %v205, 0.0
  %v315 = vadd.f32 %v313, %v314
  %v316 = vsel %vm220, %v208, 0.0
  %v317 = vadd.f32 %v315, %v316
  %v318 = vsel %vm300, %v213, 0.0
  %v319 = vadd.f32 %v317, %v318
  %v320 = vrot.slane %v319, 4
  %v321 = vadd.f32 %v319, %v320
  %v322 = vrot.slane %v321, 2
  %v323 = vadd.f32 %v321, %v322
  %v324 = vrot.slane %v323, 1
  %v325 = vadd.f32 %v323, %v324
  %v326 = vrcp.pop 52.0
  %v327 = vmul.f32 %v325, %v326
  %v328 = vsub.f32 %v189, %v327
  %v329 = vsub.f32 %v192, %v327
  %v330 = vsub.f32 %v197, %v327
  %v331 = vsub.f32 %v200, %v327
  %v332 = vsub.f32 %v205, %v327
  %v333 = vsub.f32 %v208, %v327
  %v334 = vsub.f32 %v213, %v327
  %v335 = vmul.f32 %v328, %v328
  %v336 = vmul.f32 %v329, %v329
  %v337 = vmul.f32 %v330, %v330
  %v338 = vmul.f32 %v331, %v331
  %v339 = vmul.f32 %v332, %v332
  %v340 = vmul.f32 %v333, %v333
  %v341 = vmul.f32 %v334, %v334
  %v342 = vsel %vm220, %v335, 0.0
  %v343 = vsel %vm220, %v336, 0.0
  %v344 = vadd.f32 %v342, %v343
  %v345 = vsel %vm220, %v337, 0.0
  %v346 = vadd.f32 %v344, %v345
  %v347 = vsel %vm220, %v338, 0.0
  %v348 = vadd.f32 %v346, %v347
  %v349 = vsel %vm220, %v339, 0.0
  %v350 = vadd.f32 %v348, %v349
  %v351 = vsel %vm220, %v340, 0.0
  %v352 = vadd.f32 %v350, %v351
  %v353 = vsel %vm300, %v341, 0.0
  %v354 = vadd.f32 %v352, %v353
  %v355 = vrot.slane %v354, 4
  %v356 = vadd.f32 %v354, %v355
  %v357 = vrot.slane %v356, 2
  %v358 = vadd.f32 %v356, %v357
  %v359 = vrot.slane %v358, 1
  %v360 = vadd.f32 %v358, %v359
  %v361 = vmul.f32 %v360, %v326
  %v362 = vadd.f32 %v361, 1e-05
  %v363 = vrsqrt.pop %v362
  %v364 = vmul.f32 %v328, %v363
  %v365 = vmul.f32 %v329, %v363
  %v366 = vmul.f32 %v330, %v363
  %v367 = vmul.f32 %v331, %v363
  %v368 = vmul.f32 %v332, %v363
  %v369 = vmul.f32 %v333, %v363
  %v370 = vmul.f32 %v334, %v363
  %v371 = vlaneseq
  %v372 = vshrl.u32 %v371, 7
  %v373 = vsub.s32 0, %v372
  %v374 = vrot.slane %v305, %v373
  %v375 = vmul.f32 %v364, %v374
  %v376 = vmul.f32 %v365, %v374
  %v377 = vmul.f32 %v366, %v374
  %v378 = vmul.f32 %v367, %v374
  %v379 = vmul.f32 %v368, %v374
  %v380 = vmul.f32 %v369, %v374
  %v381 = vmul.f32 %v370, %v374
  %v382 = vlaneseq
  %v383 = vshrl.u32 %v382, 7
  %v384 = vsub.s32 0, %v383
  %v385 = vrot.slane %v306, %v384
  %v386 = vadd.f32 %v375, %v385
  %v387 = vadd.f32 %v376, %v385
  %v388 = vadd.f32 %v377, %v385
  %v389 = vadd.f32 %v378, %v385
  %v390 = vadd.f32 %v379, %v385
  %v391 = vadd.f32 %v380, %v385
  %v392 = vadd.f32 %v381, %v385
  %v393 = vmax.f32 %v386, 0.0
  %v394 = vmax.f32 %v387, 0.0
  %v395 = vmax.f32 %v388, 0.0
  %v396 = vmax.f32 %v389, 0.0
  %v397 = vmax.f32 %v390, 0.0
  %v398 = vmax.f32 %v391, 0.0
  %v399 = vmax.f32 %v392, 0.0
  %v400 = vpack.c.bf16 %v394, %v393
  %v401 = vpack.c.bf16 %v396, %v395
  %v402 = vpack.c.bf16 %v398, %v397
  %v403 = vpack.c.bf16 %v399, %v399
  %v408 = vunpack.c.l.b16 %v400
  %v409 = vunpack.c.h.b16 %v400
  %v410 = vunpack.c.l.b16 %v401
  %v411 = vunpack.c.h.b16 %v401
  %v412 = vunpack.c.l.b16 %v402
  %v413 = vunpack.c.h.b16 %v402
  %v414 = vunpack.c.l.b16 %v403
  %v415 = vpack.c.b16 %v408, %v408
  %v416 = vpack.c.b16 %v409, %v409
  %v417 = vpack.c.b16 %v410, %v410
  %v418 = vpack.c.b16 %v411, %v411
  %v419 = vpack.c.b16 %v412, %v412
  %v420 = vpack.c.b16 %v413, %v413
  %v421 = vpack.c.b16 %v414, %v414
  %429 = vst.msk [vmem:[#allocation3] sm:$0xf] %vm300, %v415
  %430 = vst.msk [vmem:[#allocation3 + $0x4] sm:$0xf] %vm300, %v416
  %431 = vst.msk [vmem:[#allocation3 + $0x8] sm:$0xf] %vm300, %v417
  %432 = vst.msk [vmem:[#allocation3 + $0xc] sm:$0xf] %vm300, %v418
  %433 = vst.msk [vmem:[#allocation3 + $0x10] sm:$0xf] %vm300, %v419
  %434 = vst.msk [vmem:[#allocation3 + $0x14] sm:$0xf] %vm300, %v420
  %vm435 = vcmask 254976
  %436 = vst.msk [vmem:[#allocation3 + $0x18] sm:$0x3] %vm435, %v421
  %v437 = vld [vmem:[#allocation2] sm:$0xf]
  %v438 = vld [vmem:[#allocation2 + $0x4] sm:$0xf]
  %v439 = vld [vmem:[#allocation2 + $0x8] sm:$0xf]
  %v440 = vld [vmem:[#allocation2 + $0xc] sm:$0xf]
  %v441 = vld [vmem:[#allocation3] sm:$0xf]
  %v442 = vld [vmem:[#allocation3 + $0x4] sm:$0xf]
  %v443 = vld [vmem:[#allocation3 + $0x8] sm:$0xf]
  %v444 = vld [vmem:[#allocation3 + $0xc] sm:$0xf]
  %v445 = vld [vmem:[#allocation3 + $0x10] sm:$0xf]
  %v446 = vld [vmem:[#allocation3 + $0x14] sm:$0xf]
  %v447 = vld [vmem:[#allocation3 + $0x18] sm:$0x3]
  %v448 = vld [vmem:[%s0 + $0x60] sm:$0xf]
  %v449 = vld [vmem:[%s0 + $0x64] sm:$0xf]
  %v450 = vld [vmem:[%s0 + $0x68] sm:$0xf]
  %v451 = vld [vmem:[%s0 + $0x6c] sm:$0xf]
  %v456 = vunpack.c.l.b16 %v448
  %v457 = vunpack.c.l.b16 %v449
  %v458 = vunpack.c.l.b16 %v450
  %v459 = vunpack.c.l.b16 %v451
  %v460 = vpack.c.b16 %v457, %v456
  %v461 = vpack.c.b16 %v459, %v458
  %v469 = vunpack.c.l.b16 %v441
  %v470 = vunpack.c.l.b16 %v442
  %v471 = vunpack.c.l.b16 %v443
  %v472 = vunpack.c.l.b16 %v444
  %v473 = vunpack.c.l.b16 %v445
  %v474 = vunpack.c.l.b16 %v446
  %v475 = vunpack.c.l.b16 %v447
  %v476 = vpack.c.b16 %v470, %v469
  %v477 = vpack.c.b16 %v472, %v471
  %v478 = vpack.c.b16 %v474, %v473
  %v479 = vpack.c.b16 %v475, %v475
  %vm483 = vcmask 424960
  %v485 = vsel %vm483, %v460, 0
  %v488 = vsel %vm483, %v461, 0
  %vm490 = vcmask 1041408
  %v492 = vsel %vm490, %v479, 0
  %494 = vmatprep.subr.bf16.mxu0 0
  %495 = vmatpush1.bf16.msra.mxu0 0
  %496 = vmatprep.subr.bf16.mxu0 0
  %497 = vmatpush1.bf16.msra.mxu0 0
  %498 = vmatprep.subr.bf16.mxu0 0
  %499 = vmatpush1.bf16.msra.mxu0 0
  %500 = vmatprep.subr.bf16.mxu0 0
  %501 = vmatpush1.bf16.msra.mxu0 0
  %502 = vmatprep.subr.bf16.mxu0 0
  %503 = vmatpush1.bf16.msra.mxu0 %v492
  %504 = vmatprep.subr.bf16.mxu0 0
  %505 = vmatpush1.bf16.msra.mxu0 %v478
  %506 = vmatprep.subr.bf16.mxu0 0
  %507 = vmatpush1.bf16.msra.mxu0 %v477
  %508 = vmatprep.subr.bf16.mxu0 0
  %509 = vmatpush1.bf16.msra.mxu0 %v476
  %510 = vmatprep.subr.bf16.mxu0 0
  %511 = vmatpush2.bf16.msra.mxu0 0
  %512 = vmatprep.subr.bf16.mxu0 0
  %513 = vmatpush2.bf16.msra.mxu0 0
  %514 = vmatprep.subr.bf16.mxu0 0
  %515 = vmatpush2.bf16.msra.mxu0 0
  %516 = vmatprep.subr.bf16.mxu0 0
  %517 = vmatpush2.bf16.msra.mxu0 0
  %518 = vmatprep.subr.bf16.mxu0 0
  %519 = vmatpush2.bf16.msra.mxu0 0
  %520 = vmatprep.subr.bf16.mxu0 0
  %521 = vmatpush2.bf16.msra.mxu0 0
  %522 = vmatprep.subr.bf16.mxu0 0
  %523 = vmatpush2.bf16.msra.mxu0 0
  %524 = vmatprep.subr.bf16.mxu0 0
  %525 = vmatpush2.bf16.msra.mxu0 0
  %526 = vmatprep.mubr.bf16.mxu0 0
  %527 = vmatmul.mubr.bf16.gmra.mxu0 %v485
  %v528 = vpop.f32.mrf.mxu0
  %v529 = vadd.f32 0.0, %v528
  %v530 = vpop.f32.mrf.mxu0
  %v531 = vpop.f32.mrf.mxu0
  %v532 = vadd.f32 0.0, %v531
  %v533 = vpop.f32.mrf.mxu0
  %534 = vmatprep.mubr.bf16.mxu0 0
  %535 = vmatmul.mubr.bf16.gmra.mxu0 %v488
  %v536 = vpop.f32.mrf.mxu0
  %v537 = vadd.f32 0.0, %v536
  %v538 = vpop.f32.mrf.mxu0
  %v539 = vpop.f32.mrf.mxu0
  %v540 = vadd.f32 0.0, %v539
  %v541 = vpop.f32.mrf.mxu0
  %542 = vdwg.mxu0
  %v543 = vld [vmem:[%s0 + $0x70] sm:$0xf]
  %v544 = vld [vmem:[%s0 + $0x74] sm:$0xf]
  %v545 = vld [vmem:[%s0 + $0x78] sm:$0xf]
  %v546 = vld [vmem:[%s0 + $0x7c] sm:$0xf]
  %v547 = vld [vmem:[%s0 + $0x80] sm:$0xf]
  %v548 = vld [vmem:[%s0 + $0x84] sm:$0xf]
  %v549 = vld [vmem:[%s0 + $0x88] sm:$0x3]
  %v557 = vunpack.c.l.b16 %v543
  %v558 = vunpack.c.l.b16 %v544
  %v559 = vunpack.c.l.b16 %v545
  %v560 = vunpack.c.l.b16 %v546
  %v561 = vunpack.c.l.b16 %v547
  %v562 = vunpack.c.l.b16 %v548
  %v563 = vunpack.c.l.b16 %v549
  %v564 = vpack.c.b16 %v558, %v557
  %v565 = vpack.c.b16 %v560, %v559
  %v566 = vpack.c.b16 %v562, %v561
  %v567 = vpack.c.b16 %v563, %v563
  %v572 = vunpack.c.l.b16 %v437
  %v573 = vunpack.c.l.b16 %v438
  %v574 = vunpack.c.l.b16 %v439
  %v575 = vunpack.c.l.b16 %v440
  %v576 = vpack.c.b16 %v573, %v572
  %v577 = vpack.c.b16 %v575, %v574
  %v581 = vsel %vm220, %v564, 0
  %v584 = vsel %vm220, %v565, 0
  %v587 = vsel %vm220, %v566, 0
  %v590 = vsel %vm220, %v567, 0
  %592 = vmatprep.subr.bf16.mxu0 0
  %593 = vmatpush1.bf16.msra.mxu0 0
  %594 = vmatprep.subr.bf16.mxu0 0
  %595 = vmatpush1.bf16.msra.mxu0 0
  %596 = vmatprep.subr.bf16.mxu0 0
  %597 = vmatpush1.bf16.msra.mxu0 0
  %598 = vmatprep.subr.bf16.mxu0 0
  %599 = vmatpush1.bf16.msra.mxu0 0
  %600 = vmatprep.subr.bf16.mxu0 0
  %601 = vmatpush1.bf16.msra.mxu0 0
  %602 = vmatprep.subr.bf16.mxu0 0
  %603 = vmatpush1.bf16.msra.mxu0 0
  %604 = vmatprep.subr.bf16.mxu0 0
  %605 = vmatpush1.bf16.msra.mxu0 %v577
  %606 = vmatprep.subr.bf16.mxu0 0
  %607 = vmatpush1.bf16.msra.mxu0 %v576
  %608 = vmatprep.subr.bf16.mxu0 0
  %609 = vmatpush2.bf16.msra.mxu0 0
  %610 = vmatprep.subr.bf16.mxu0 0
  %611 = vmatpush2.bf16.msra.mxu0 0
  %612 = vmatprep.subr.bf16.mxu0 0
  %613 = vmatpush2.bf16.msra.mxu0 0
  %614 = vmatprep.subr.bf16.mxu0 0
  %615 = vmatpush2.bf16.msra.mxu0 0
  %616 = vmatprep.subr.bf16.mxu0 0
  %617 = vmatpush2.bf16.msra.mxu0 0
  %618 = vmatprep.subr.bf16.mxu0 0
  %619 = vmatpush2.bf16.msra.mxu0 0
  %620 = vmatprep.subr.bf16.mxu0 0
  %621 = vmatpush2.bf16.msra.mxu0 0
  %622 = vmatprep.subr.bf16.mxu0 0
  %623 = vmatpush2.bf16.msra.mxu0 0
  %624 = vmatprep.mubr.bf16.mxu0 0
  %625 = vmatmul.mubr.bf16.gmra.mxu0 %v581
  %v626 = vpop.f32.mrf.mxu0
  %v627 = vadd.f32 0.0, %v626
  %v628 = vpop.f32.mrf.mxu0
  %v629 = vpop.f32.mrf.mxu0
  %v630 = vadd.f32 0.0, %v629
  %v631 = vpop.f32.mrf.mxu0
  %632 = vmatprep.mubr.bf16.mxu0 0
  %633 = vmatmul.mubr.bf16.gmra.mxu0 %v584
  %v634 = vpop.f32.mrf.mxu0
  %v635 = vadd.f32 0.0, %v634
  %v636 = vpop.f32.mrf.mxu0
  %v637 = vpop.f32.mrf.mxu0
  %v638 = vadd.f32 0.0, %v637
  %v639 = vpop.f32.mrf.mxu0
  %640 = vmatprep.mubr.bf16.mxu0 0
  %641 = vmatmul.mubr.bf16.gmra.mxu0 %v587
  %v642 = vpop.f32.mrf.mxu0
  %v643 = vadd.f32 0.0, %v642
  %v644 = vpop.f32.mrf.mxu0
  %v645 = vpop.f32.mrf.mxu0
  %v646 = vadd.f32 0.0, %v645
  %v647 = vpop.f32.mrf.mxu0
  %648 = vmatprep.mubr.bf16.mxu0 0
  %649 = vmatmul.mubr.bf16.gmra.mxu0 %v590
  %v650 = vpop.f32.mrf.mxu0
  %v651 = vadd.f32 0.0, %v650
  %v652 = vpop.f32.mrf.mxu0
  %v653 = vpop.f32.mrf.mxu0
  %v654 = vpop.f32.mrf.mxu0
  %655 = vdwg.mxu0
  %v656 = vld [vmem:[%s0 + $0xa0] sm:$0xf]
  %v657 = vld [vmem:[%s0 + $0xa4] sm:$0xf]
  %v658 = vld [vmem:[%s0 + $0xa8] sm:$0xf]
  %v659 = vld [vmem:[%s0 + $0xac] sm:$0xf]
  %v660 = vld [vmem:[%s0 + $0xb0] sm:$0xf]
  %v661 = vld [vmem:[%s0 + $0xb4] sm:$0xf]
  %v662 = vld [vmem:[%s0 + $0xb8] sm:$0xf]
  %v663 = vld [vmem:[%s0 + $0xbc] sm:$0xf]
  %v664 = vld [vmem:[%s1 + $0x30] sm:$0x1]
  %v665 = vpack.c.bf16 %v532, %v529
  %v666 = vpack.c.bf16 %v540, %v537
  %v671 = vunpack.c.l.b16 %v660
  %v672 = vunpack.c.l.b16 %v661
  %v673 = vunpack.c.l.b16 %v662
  %v674 = vunpack.c.l.b16 %v663
  %v675 = vpack.c.b16 %v672, %v671
  %v676 = vpack.c.b16 %v674, %v673
  %v680 = vsel %vm220, %v665, 0
  %v683 = vsel %vm220, %v666, 0
  %685 = vmatprep.subr.bf16.mxu0 0
  %686 = vmatpush1.bf16.msra.mxu0 0
  %687 = vmatprep.subr.bf16.mxu0 0
  %688 = vmatpush1.bf16.msra.mxu0 0
  %689 = vmatprep.subr.bf16.mxu0 0
  %690 = vmatpush1.bf16.msra.mxu0 0
  %691 = vmatprep.subr.bf16.mxu0 0
  %692 = vmatpush1.bf16.msra.mxu0 0
  %693 = vmatprep.subr.bf16.mxu0 0
  %694 = vmatpush1.bf16.msra.mxu0 0
  %695 = vmatprep.subr.bf16.mxu0 0
  %696 = vmatpush1.bf16.msra.mxu0 0
  %697 = vmatprep.subr.bf16.mxu0 0
  %698 = vmatpush1.bf16.msra.mxu0 %v676
  %699 = vmatprep.subr.bf16.mxu0 0
  %700 = vmatpush1.bf16.msra.mxu0 %v675
  %701 = vmatprep.subr.bf16.mxu0 0
  %702 = vmatpush2.bf16.msra.mxu0 0
  %703 = vmatprep.subr.bf16.mxu0 0
  %704 = vmatpush2.bf16.msra.mxu0 0
  %705 = vmatprep.subr.bf16.mxu0 0
  %706 = vmatpush2.bf16.msra.mxu0 0
  %707 = vmatprep.subr.bf16.mxu0 0
  %708 = vmatpush2.bf16.msra.mxu0 0
  %709 = vmatprep.subr.bf16.mxu0 0
  %710 = vmatpush2.bf16.msra.mxu0 0
  %711 = vmatprep.subr.bf16.mxu0 0
  %712 = vmatpush2.bf16.msra.mxu0 0
  %713 = vmatprep.subr.bf16.mxu0 0
  %714 = vmatpush2.bf16.msra.mxu0 0
  %715 = vmatprep.subr.bf16.mxu0 0
  %716 = vmatpush2.bf16.msra.mxu0 0
  %717 = vmatprep.mubr.bf16.mxu0 0
  %718 = vmatmul.mubr.bf16.gmra.mxu0 %v680
  %v719 = vpop.f32.mrf.mxu0
  %v720 = vadd.f32 0.0, %v719
  %v721 = vpop.f32.mrf.mxu0
  %v722 = vpop.f32.mrf.mxu0
  %v723 = vadd.f32 0.0, %v722
  %v724 = vpop.f32.mrf.mxu0
  %725 = vmatprep.mubr.bf16.mxu0 0
  %726 = vmatmul.mubr.bf16.gmra.mxu0 %v683
  %v727 = vpop.f32.mrf.mxu0
  %v728 = vadd.f32 0.0, %v727
  %v729 = vpop.f32.mrf.mxu0
  %v730 = vpop.f32.mrf.mxu0
  %v731 = vadd.f32 0.0, %v730
  %v732 = vpop.f32.mrf.mxu0
  %733 = vdwg.mxu0
  %v738 = vunpack.c.l.b16 %v656
  %v739 = vunpack.c.l.b16 %v657
  %v740 = vunpack.c.l.b16 %v658
  %v741 = vunpack.c.l.b16 %v659
  %v742 = vpack.c.b16 %v739, %v738
  %v743 = vpack.c.b16 %v741, %v740
  %v747 = vsel %vm220, %v576, 0
  %v750 = vsel %vm220, %v577, 0
  %752 = vmatprep.subr.bf16.mxu0 0
  %753 = vmatpush1.bf16.msra.mxu0 0
  %754 = vmatprep.subr.bf16.mxu0 0
  %755 = vmatpush1.bf16.msra.mxu0 0
  %756 = vmatprep.subr.bf16.mxu0 0
  %757 = vmatpush1.bf16.msra.mxu0 0
  %758 = vmatprep.subr.bf16.mxu0 0
  %759 = vmatpush1.bf16.msra.mxu0 0
  %760 = vmatprep.subr.bf16.mxu0 0
  %761 = vmatpush1.bf16.msra.mxu0 0
  %762 = vmatprep.subr.bf16.mxu0 0
  %763 = vmatpush1.bf16.msra.mxu0 0
  %764 = vmatprep.subr.bf16.mxu0 0
  %765 = vmatpush1.bf16.msra.mxu0 %v743
  %766 = vmatprep.subr.bf16.mxu0 0
  %767 = vmatpush1.bf16.msra.mxu0 %v742
  %768 = vmatprep.subr.bf16.mxu0 0
  %769 = vmatpush2.bf16.msra.mxu0 0
  %770 = vmatprep.subr.bf16.mxu0 0
  %771 = vmatpush2.bf16.msra.mxu0 0
  %772 = vmatprep.subr.bf16.mxu0 0
  %773 = vmatpush2.bf16.msra.mxu0 0
  %774 = vmatprep.subr.bf16.mxu0 0
  %775 = vmatpush2.bf16.msra.mxu0 0
  %776 = vmatprep.subr.bf16.mxu0 0
  %777 = vmatpush2.bf16.msra.mxu0 0
  %778 = vmatprep.subr.bf16.mxu0 0
  %779 = vmatpush2.bf16.msra.mxu0 0
  %780 = vmatprep.subr.bf16.mxu0 0
  %781 = vmatpush2.bf16.msra.mxu0 0
  %782 = vmatprep.subr.bf16.mxu0 0
  %783 = vmatpush2.bf16.msra.mxu0 0
  %784 = vmatprep.mubr.bf16.mxu0 0
  %785 = vmatmul.mubr.bf16.gmra.mxu0 %v747
  %v786 = vpop.f32.mrf.mxu0
  %v787 = vadd.f32 %v720, %v786
  %v788 = vpop.f32.mrf.mxu0
  %v789 = vpop.f32.mrf.mxu0
  %v790 = vadd.f32 %v723, %v789
  %v791 = vpop.f32.mrf.mxu0
  %792 = vmatprep.mubr.bf16.mxu0 0
  %793 = vmatmul.mubr.bf16.gmra.mxu0 %v750
  %v794 = vpop.f32.mrf.mxu0
  %v795 = vadd.f32 %v728, %v794
  %v796 = vpop.f32.mrf.mxu0
  %v797 = vpop.f32.mrf.mxu0
  %v798 = vadd.f32 %v731, %v797
  %v799 = vpop.f32.mrf.mxu0
  %800 = vdwg.mxu0
  %v801 = vlaneseq
  %v802 = vshrl.u32 %v801, 7
  %v803 = vsub.s32 0, %v802
  %v804 = vrot.slane %v664, %v803
  %v805 = vadd.f32 %v787, %v804
  %v806 = vadd.f32 %v790, %v804
  %v807 = vadd.f32 %v795, %v804
  %v808 = vadd.f32 %v798, %v804
  %v809 = vmax.f32 %v805, 0.0
  %v810 = vmax.f32 %v806, 0.0
  %v811 = vmax.f32 %v807, 0.0
  %v812 = vmax.f32 %v808, 0.0
  %v813 = vsub.f32 0.0, %v805
  %v814 = vsub.f32 0.0, %v806
  %v815 = vsub.f32 0.0, %v807
  %v816 = vsub.f32 0.0, %v808
  %v817 = vmul.f32 %v813, 1.442695
  %v818 = vpow.pop %v817
  %v819 = vmul.f32 %v814, 1.442695
  %v820 = vpow.pop %v819
  %v821 = vmul.f32 %v815, 1.442695
  %v822 = vpow.pop %v821
  %v823 = vmul.f32 %v816, 1.442695
  %v824 = vpow.pop %v823
  %v825 = vadd.f32 %v818, 1.0
  %v826 = vadd.f32 %v820, 1.0
  %v827 = vadd.f32 %v822, 1.0
  %v828 = vadd.f32 %v824, 1.0
  %v829 = vrcp.pop %v825
  %v830 = vmul.f32 1.0, %v829
  %v831 = vrcp.pop %v826
  %v832 = vmul.f32 1.0, %v831
  %v833 = vrcp.pop %v827
  %v834 = vmul.f32 1.0, %v833
  %v835 = vrcp.pop %v828
  %v836 = vmul.f32 1.0, %v835
  %838 = vset.pattern.permute.xlu0 32
  %839 = vperm.xlu0 %838, %v830
  %v840 = vpop.permute.xlu0 %839
  %843 = vset.pattern.permute.xlu0 32
  %844 = vperm.xlu0 %843, %v832
  %v845 = vpop.permute.xlu0 %844
  %848 = vset.pattern.permute.xlu0 32
  %849 = vperm.xlu0 %848, %v834
  %v850 = vpop.permute.xlu0 %849
  %853 = vset.pattern.permute.xlu0 32
  %854 = vperm.xlu0 %853, %v836
  %v855 = vpop.permute.xlu0 %854
  %v857 = vmul.f32 %v809, %v840
  %v858 = vmul.f32 %v810, %v845
  %v859 = vmul.f32 %v811, %v850
  %v860 = vmul.f32 %v812, %v855
  %v861 = vld [vmem:[%s0 + $0xe0] sm:$0xf]
  %v862 = vld [vmem:[%s0 + $0xe4] sm:$0xf]
  %v863 = vld [vmem:[%s0 + $0xe8] sm:$0xf]
  %v864 = vld [vmem:[%s0 + $0xec] sm:$0xf]
  %v865 = vld [vmem:[%s0 + $0xf0] sm:$0xf]
  %v866 = vld [vmem:[%s0 + $0xf4] sm:$0xf]
  %v867 = vld [vmem:[%s0 + $0xf8] sm:$0xf]
  %v868 = vld [vmem:[%s0 + $0xfc] sm:$0xf]
  %v869 = vld [vmem:[%s1 + $0x38] sm:$0x1]
  %v870 = vpack.c.bf16 %v630, %v627
  %v871 = vpack.c.bf16 %v638, %v635
  %v872 = vpack.c.bf16 %v646, %v643
  %v873 = vpack.c.bf16 %v651, %v651
  %v878 = vunpack.c.l.b16 %v865
  %v879 = vunpack.c.l.b16 %v866
  %v880 = vunpack.c.l.b16 %v867
  %v881 = vunpack.c.l.b16 %v868
  %v882 = vpack.c.b16 %v879, %v878
  %v883 = vpack.c.b16 %v881, %v880
  %v887 = vsel %vm220, %v870, 0
  %v890 = vsel %vm220, %v871, 0
  %v893 = vsel %vm220, %v872, 0
  %v896 = vsel %vm220, %v873, 0
  %898 = vmatprep.subr.bf16.mxu0 0
  %899 = vmatpush1.bf16.msra.mxu0 0
  %900 = vmatprep.subr.bf16.mxu0 0
  %901 = vmatpush1.bf16.msra.mxu0 0
  %902 = vmatprep.subr.bf16.mxu0 0
  %903 = vmatpush1.bf16.msra.mxu0 0
  %904 = vmatprep.subr.bf16.mxu0 0
  %905 = vmatpush1.bf16.msra.mxu0 0
  %906 = vmatprep.subr.bf16.mxu0 0
  %907 = vmatpush1.bf16.msra.mxu0 0
  %908 = vmatprep.subr.bf16.mxu0 0
  %909 = vmatpush1.bf16.msra.mxu0 0
  %910 = vmatprep.subr.bf16.mxu0 0
  %911 = vmatpush1.bf16.msra.mxu0 %v883
  %912 = vmatprep.subr.bf16.mxu0 0
  %913 = vmatpush1.bf16.msra.mxu0 %v882
  %914 = vmatprep.subr.bf16.mxu0 0
  %915 = vmatpush2.bf16.msra.mxu0 0
  %916 = vmatprep.subr.bf16.mxu0 0
  %917 = vmatpush2.bf16.msra.mxu0 0
  %918 = vmatprep.subr.bf16.mxu0 0
  %919 = vmatpush2.bf16.msra.mxu0 0
  %920 = vmatprep.subr.bf16.mxu0 0
  %921 = vmatpush2.bf16.msra.mxu0 0
  %922 = vmatprep.subr.bf16.mxu0 0
  %923 = vmatpush2.bf16.msra.mxu0 0
  %924 = vmatprep.subr.bf16.mxu0 0
  %925 = vmatpush2.bf16.msra.mxu0 0
  %926 = vmatprep.subr.bf16.mxu0 0
  %927 = vmatpush2.bf16.msra.mxu0 0
  %928 = vmatprep.subr.bf16.mxu0 0
  %929 = vmatpush2.bf16.msra.mxu0 0
  %930 = vmatprep.mubr.bf16.mxu0 0
  %931 = vmatmul.mubr.bf16.gmra.mxu0 %v887
  %v932 = vpop.f32.mrf.mxu0
  %v933 = vadd.f32 0.0, %v932
  %v934 = vpop.f32.mrf.mxu0
  %v935 = vpop.f32.mrf.mxu0
  %v936 = vadd.f32 0.0, %v935
  %v937 = vpop.f32.mrf.mxu0
  %938 = vmatprep.mubr.bf16.mxu0 0
  %939 = vmatmul.mubr.bf16.gmra.mxu0 %v890
  %v940 = vpop.f32.mrf.mxu0
  %v941 = vadd.f32 0.0, %v940
  %v942 = vpop.f32.mrf.mxu0
  %v943 = vpop.f32.mrf.mxu0
  %v944 = vadd.f32 0.0, %v943
  %v945 = vpop.f32.mrf.mxu0
  %946 = vmatprep.mubr.bf16.mxu0 0
  %947 = vmatmul.mubr.bf16.gmra.mxu0 %v893
  %v948 = vpop.f32.mrf.mxu0
  %v949 = vadd.f32 0.0, %v948
  %v950 = vpop.f32.mrf.mxu0
  %v951 = vpop.f32.mrf.mxu0
  %v952 = vadd.f32 0.0, %v951
  %v953 = vpop.f32.mrf.mxu0
  %954 = vmatprep.mubr.bf16.mxu0 0
  %955 = vmatmul.mubr.bf16.gmra.mxu0 %v896
  %v956 = vpop.f32.mrf.mxu0
  %v957 = vadd.f32 0.0, %v956
  %v958 = vpop.f32.mrf.mxu0
  %v959 = vpop.f32.mrf.mxu0
  %v960 = vpop.f32.mrf.mxu0
  %961 = vdwg.mxu0
  %v966 = vunpack.c.l.b16 %v861
  %v967 = vunpack.c.l.b16 %v862
  %v968 = vunpack.c.l.b16 %v863
  %v969 = vunpack.c.l.b16 %v864
  %v970 = vpack.c.b16 %v967, %v966
  %v971 = vpack.c.b16 %v969, %v968
  %v975 = vsel %vm220, %v476, 0
  %v978 = vsel %vm220, %v477, 0
  %v981 = vsel %vm220, %v478, 0
  %v983 = vsel %vm220, %v479, 0
  %985 = vmatprep.subr.bf16.mxu0 0
  %986 = vmatpush1.bf16.msra.mxu0 0
  %987 = vmatprep.subr.bf16.mxu0 0
  %988 = vmatpush1.bf16.msra.mxu0 0
  %989 = vmatprep.subr.bf16.mxu0 0
  %990 = vmatpush1.bf16.msra.mxu0 0
  %991 = vmatprep.subr.bf16.mxu0 0
  %992 = vmatpush1.bf16.msra.mxu0 0
  %993 = vmatprep.subr.bf16.mxu0 0
  %994 = vmatpush1.bf16.msra.mxu0 0
  %995 = vmatprep.subr.bf16.mxu0 0
  %996 = vmatpush1.bf16.msra.mxu0 0
  %997 = vmatprep.subr.bf16.mxu0 0
  %998 = vmatpush1.bf16.msra.mxu0 %v971
  %999 = vmatprep.subr.bf16.mxu0 0
  %1000 = vmatpush1.bf16.msra.mxu0 %v970
  %1001 = vmatprep.subr.bf16.mxu0 0
  %1002 = vmatpush2.bf16.msra.mxu0 0
  %1003 = vmatprep.subr.bf16.mxu0 0
  %1004 = vmatpush2.bf16.msra.mxu0 0
  %1005 = vmatprep.subr.bf16.mxu0 0
  %1006 = vmatpush2.bf16.msra.mxu0 0
  %1007 = vmatprep.subr.bf16.mxu0 0
  %1008 = vmatpush2.bf16.msra.mxu0 0
  %1009 = vmatprep.subr.bf16.mxu0 0
  %1010 = vmatpush2.bf16.msra.mxu0 0
  %1011 = vmatprep.subr.bf16.mxu0 0
  %1012 = vmatpush2.bf16.msra.mxu0 0
  %1013 = vmatprep.subr.bf16.mxu0 0
  %1014 = vmatpush2.bf16.msra.mxu0 0
  %1015 = vmatprep.subr.bf16.mxu0 0
  %1016 = vmatpush2.bf16.msra.mxu0 0
  %1017 = vmatprep.mubr.bf16.mxu0 0
  %1018 = vmatmul.mubr.bf16.gmra.mxu0 %v975
  %v1019 = vpop.f32.mrf.mxu0
  %v1020 = vadd.f32 %v933, %v1019
  %v1021 = vpop.f32.mrf.mxu0
  %v1022 = vpop.f32.mrf.mxu0
  %v1023 = vadd.f32 %v936, %v1022
  %v1024 = vpop.f32.mrf.mxu0
  %1025 = vmatprep.mubr.bf16.mxu0 0
  %1026 = vmatmul.mubr.bf16.gmra.mxu0 %v978
  %v1027 = vpop.f32.mrf.mxu0
  %v1028 = vadd.f32 %v941, %v1027
  %v1029 = vpop.f32.mrf.mxu0
  %v1030 = vpop.f32.mrf.mxu0
  %v1031 = vadd.f32 %v944, %v1030
  %v1032 = vpop.f32.mrf.mxu0
  %1033 = vmatprep.mubr.bf16.mxu0 0
  %1034 = vmatmul.mubr.bf16.gmra.mxu0 %v981
  %v1035 = vpop.f32.mrf.mxu0
  %v1036 = vadd.f32 %v949, %v1035
  %v1037 = vpop.f32.mrf.mxu0
  %v1038 = vpop.f32.mrf.mxu0
  %v1039 = vadd.f32 %v952, %v1038
  %v1040 = vpop.f32.mrf.mxu0
  %1041 = vmatprep.mubr.bf16.mxu0 0
  %1042 = vmatmul.mubr.bf16.gmra.mxu0 %v983
  %v1043 = vpop.f32.mrf.mxu0
  %v1044 = vadd.f32 %v957, %v1043
  %v1045 = vpop.f32.mrf.mxu0
  %v1046 = vpop.f32.mrf.mxu0
  %v1047 = vpop.f32.mrf.mxu0
  %1048 = vdwg.mxu0
  %v1049 = vlaneseq
  %v1050 = vshrl.u32 %v1049, 7
  %v1051 = vsub.s32 0, %v1050
  %v1052 = vrot.slane %v869, %v1051
  %v1053 = vadd.f32 %v1020, %v1052
  %v1054 = vadd.f32 %v1023, %v1052
  %v1055 = vadd.f32 %v1028, %v1052
  %v1056 = vadd.f32 %v1031, %v1052
  %v1057 = vadd.f32 %v1036, %v1052
  %v1058 = vadd.f32 %v1039, %v1052
  %v1059 = vadd.f32 %v1044, %v1052
  %v1060 = vmax.f32 %v1053, 0.0
  %v1061 = vmax.f32 %v1054, 0.0
  %v1062 = vmax.f32 %v1055, 0.0
  %v1063 = vmax.f32 %v1056, 0.0
  %v1064 = vmax.f32 %v1057, 0.0
  %v1065 = vmax.f32 %v1058, 0.0
  %v1066 = vmax.f32 %v1059, 0.0
  %v1067 = vsub.f32 0.0, %v1053
  %v1068 = vsub.f32 0.0, %v1054
  %v1069 = vsub.f32 0.0, %v1055
  %v1070 = vsub.f32 0.0, %v1056
  %v1071 = vsub.f32 0.0, %v1057
  %v1072 = vsub.f32 0.0, %v1058
  %v1073 = vsub.f32 0.0, %v1059
  %v1074 = vmul.f32 %v1067, 1.442695
  %v1075 = vpow.pop %v1074
  %v1076 = vmul.f32 %v1068, 1.442695
  %v1077 = vpow.pop %v1076
  %v1078 = vmul.f32 %v1069, 1.442695
  %v1079 = vpow.pop %v1078
  %v1080 = vmul.f32 %v1070, 1.442695
  %v1081 = vpow.pop %v1080
  %v1082 = vmul.f32 %v1071, 1.442695
  %v1083 = vpow.pop %v1082
  %v1084 = vmul.f32 %v1072, 1.442695
  %v1085 = vpow.pop %v1084
  %v1086 = vmul.f32 %v1073, 1.442695
  %v1087 = vpow.pop %v1086
  %v1088 = vadd.f32 %v1075, 1.0
  %v1089 = vadd.f32 %v1077, 1.0
  %v1090 = vadd.f32 %v1079, 1.0
  %v1091 = vadd.f32 %v1081, 1.0
  %v1092 = vadd.f32 %v1083, 1.0
  %v1093 = vadd.f32 %v1085, 1.0
  %v1094 = vadd.f32 %v1087, 1.0
  %v1095 = vrcp.pop %v1088
  %v1096 = vmul.f32 1.0, %v1095
  %v1097 = vrcp.pop %v1089
  %v1098 = vmul.f32 1.0, %v1097
  %v1099 = vrcp.pop %v1090
  %v1100 = vmul.f32 1.0, %v1099
  %v1101 = vrcp.pop %v1091
  %v1102 = vmul.f32 1.0, %v1101
  %v1103 = vrcp.pop %v1092
  %v1104 = vmul.f32 1.0, %v1103
  %v1105 = vrcp.pop %v1093
  %v1106 = vmul.f32 1.0, %v1105
  %v1107 = vrcp.pop %v1094
  %v1108 = vmul.f32 1.0, %v1107
  %1110 = vset.pattern.permute.xlu0 32
  %1111 = vperm.xlu0 %1110, %v1096
  %v1112 = vpop.permute.xlu0 %1111
  %1115 = vset.pattern.permute.xlu0 32
  %1116 = vperm.xlu0 %1115, %v1098
  %v1117 = vpop.permute.xlu0 %1116
  %1120 = vset.pattern.permute.xlu0 32
  %1121 = vperm.xlu0 %1120, %v1100
  %v1122 = vpop.permute.xlu0 %1121
  %1125 = vset.pattern.permute.xlu0 32
  %1126 = vperm.xlu0 %1125, %v1102
  %v1127 = vpop.permute.xlu0 %1126
  %1130 = vset.pattern.permute.xlu0 32
  %1131 = vperm.xlu0 %1130, %v1104
  %v1132 = vpop.permute.xlu0 %1131
  %1135 = vset.pattern.permute.xlu0 32
  %1136 = vperm.xlu0 %1135, %v1106
  %v1137 = vpop.permute.xlu0 %1136
  %1140 = vset.pattern.permute.xlu0 32
  %1141 = vperm.xlu0 %1140, %v1108
  %v1142 = vpop.permute.xlu0 %1141
  %v1144 = vmul.f32 %v1060, %v1112
  %v1145 = vmul.f32 %v1061, %v1117
  %v1146 = vmul.f32 %v1062, %v1122
  %v1147 = vmul.f32 %v1063, %v1127
  %v1148 = vmul.f32 %v1064, %v1132
  %v1149 = vmul.f32 %v1065, %v1137
  %v1150 = vmul.f32 %v1066, %v1142
  %v1151 = vld [vmem:[%s0 + $0x30] sm:$0xf]
  %v1152 = vld [vmem:[%s0 + $0x34] sm:$0xf]
  %v1153 = vld [vmem:[%s0 + $0x38] sm:$0xf]
  %v1154 = vld [vmem:[%s0 + $0x3c] sm:$0xf]
  %v1155 = vld [vmem:[%s0 + $0xc0] sm:$0xf]
  %v1156 = vld [vmem:[%s0 + $0xc4] sm:$0xf]
  %v1157 = vld [vmem:[%s0 + $0xc8] sm:$0xf]
  %v1158 = vld [vmem:[%s0 + $0xcc] sm:$0xf]
  %v1159 = vld [vmem:[%s0 + $0xd0] sm:$0xf]
  %v1160 = vld [vmem:[%s0 + $0xd4] sm:$0xf]
  %v1161 = vld [vmem:[%s0 + $0xd8] sm:$0xf]
  %v1162 = vld [vmem:[%s0 + $0xdc] sm:$0xf]
  %v1163 = vld [vmem:[%s1 + $0x40] sm:$0x1]
  %v1164 = vld [vmem:[%s1 + $0x48] sm:$0x1]
  %v1165 = vld [vmem:[%s1 + $0x50] sm:$0x1]
  %v1170 = vunpack.c.l.b16 %v1151
  %v1171 = vunpack.c.l.b16 %v1152
  %v1172 = vunpack.c.l.b16 %v1153
  %v1173 = vunpack.c.l.b16 %v1154
  %v1174 = vpack.c.b16 %v1171, %v1170
  %v1175 = vpack.c.b16 %v1173, %v1172
  %v1177 = vsel %vm220, %v1174, 0
  %v1180 = vsel %vm220, %v1175, 0
  %1182 = vmatprep.subr.mxu0 0.0
  %1183 = vmatpush1.msra.mxu0 0.0
  %1184 = vmatprep.subr.mxu0 0.0
  %1185 = vmatpush1.msra.mxu0 0.0
  %1186 = vmatprep.subr.mxu0 0.0
  %1187 = vmatpush1.msra.mxu0 0.0
  %1188 = vmatprep.subr.mxu0 0.0
  %1189 = vmatpush1.msra.mxu0 0.0
  %1190 = vmatprep.subr.mxu0 0.0
  %1191 = vmatpush1.msra.mxu0 0.0
  %1192 = vmatprep.subr.mxu0 0.0
  %1193 = vmatpush1.msra.mxu0 0.0
  %1194 = vmatprep.subr.mxu0 0.0
  %1195 = vmatpush1.msra.mxu0 0.0
  %1196 = vmatprep.subr.mxu0 0.0
  %1197 = vmatpush1.msra.mxu0 0.0
  %1198 = vmatprep.subr.mxu0 0.0
  %1199 = vmatpush1.msra.mxu0 0.0
  %1200 = vmatprep.subr.mxu0 0.0
  %1201 = vmatpush1.msra.mxu0 0.0
  %1202 = vmatprep.subr.mxu0 0.0
  %1203 = vmatpush1.msra.mxu0 0.0
  %1204 = vmatprep.subr.mxu0 0.0
  %1205 = vmatpush1.msra.mxu0 0.0
  %1206 = vmatprep.subr.mxu0 0.0
  %1207 = vmatpush1.msra.mxu0 %v860
  %1208 = vmatprep.subr.mxu0 0.0
  %1209 = vmatpush1.msra.mxu0 %v859
  %1210 = vmatprep.subr.mxu0 0.0
  %1211 = vmatpush1.msra.mxu0 %v858
  %1212 = vmatprep.subr.mxu0 0.0
  %1213 = vmatpush1.msra.mxu0 %v857
  %1214 = vmatprep.subr.mxu0 0.0
  %1215 = vmatpush2.msra.mxu0 0.0
  %1216 = vmatprep.subr.mxu0 0.0
  %1217 = vmatpush2.msra.mxu0 0.0
  %1218 = vmatprep.subr.mxu0 0.0
  %1219 = vmatpush2.msra.mxu0 0.0
  %1220 = vmatprep.subr.mxu0 0.0
  %1221 = vmatpush2.msra.mxu0 0.0
  %1222 = vmatprep.subr.mxu0 0.0
  %1223 = vmatpush2.msra.mxu0 0.0
  %1224 = vmatprep.subr.mxu0 0.0
  %1225 = vmatpush2.msra.mxu0 0.0
  %1226 = vmatprep.subr.mxu0 0.0
  %1227 = vmatpush2.msra.mxu0 0.0
  %1228 = vmatprep.subr.mxu0 0.0
  %1229 = vmatpush2.msra.mxu0 0.0
  %1230 = vmatprep.subr.mxu0 0.0
  %1231 = vmatpush2.msra.mxu0 0.0
  %1232 = vmatprep.subr.mxu0 0.0
  %1233 = vmatpush2.msra.mxu0 0.0
  %1234 = vmatprep.subr.mxu0 0.0
  %1235 = vmatpush2.msra.mxu0 0.0
  %1236 = vmatprep.subr.mxu0 0.0
  %1237 = vmatpush2.msra.mxu0 0.0
  %1238 = vmatprep.subr.mxu0 0.0
  %1239 = vmatpush2.msra.mxu0 0.0
  %1240 = vmatprep.subr.mxu0 0.0
  %1241 = vmatpush2.msra.mxu0 0.0
  %1242 = vmatprep.subr.mxu0 0.0
  %1243 = vmatpush2.msra.mxu0 0.0
  %1244 = vmatprep.subr.mxu0 0.0
  %1245 = vmatpush2.msra.mxu0 0.0
  %1246 = vmatprep.mubr.bf16.mxu0 0
  %1247 = vmatmul.mubr.bf16.gmra.mxu0 %v1177
  %v1248 = vpop.f32.mrf.mxu0
  %v1249 = vadd.f32 0.0, %v1248
  %v1250 = vpop.f32.mrf.mxu0
  %v1251 = vpop.f32.mrf.mxu0
  %v1252 = vadd.f32 0.0, %v1251
  %v1253 = vpop.f32.mrf.mxu0
  %1254 = vmatprep.mubr.bf16.mxu0 0
  %1255 = vmatmul.mubr.bf16.gmra.mxu0 %v1180
  %v1256 = vpop.f32.mrf.mxu0
  %v1257 = vadd.f32 0.0, %v1256
  %v1258 = vpop.f32.mrf.mxu0
  %v1259 = vpop.f32.mrf.mxu0
  %v1260 = vadd.f32 0.0, %v1259
  %v1261 = vpop.f32.mrf.mxu0
  %1262 = vdwg.mxu0
  %v1263 = vpack.c.bf16 %v858, %v857
  %v1264 = vpack.c.bf16 %v860, %v859
  %v1265 = vsub.f32 %v857, %v1249
  %v1266 = vsub.f32 %v858, %v1252
  %v1267 = vsub.f32 %v859, %v1257
  %v1268 = vsub.f32 %v860, %v1260
  %v1269 = vpack.c.bf16 %v1266, %v1265
  %v1270 = vpack.c.bf16 %v1268, %v1267
  %v1275 = vunpack.c.l.b16 %v1159
  %v1276 = vunpack.c.l.b16 %v1160
  %v1277 = vunpack.c.l.b16 %v1161
  %v1278 = vunpack.c.l.b16 %v1162
  %v1279 = vpack.c.b16 %v1276, %v1275
  %v1280 = vpack.c.b16 %v1278, %v1277
  %v1284 = vsel %vm220, %v1269, 0
  %v1287 = vsel %vm220, %v1270, 0
  %1289 = vmatprep.subr.bf16.mxu0 0
  %1290 = vmatpush1.bf16.msra.mxu0 0
  %1291 = vmatprep.subr.bf16.mxu0 0
  %1292 = vmatpush1.bf16.msra.mxu0 0
  %1293 = vmatprep.subr.bf16.mxu0 0
  %1294 = vmatpush1.bf16.msra.mxu0 0
  %1295 = vmatprep.subr.bf16.mxu0 0
  %1296 = vmatpush1.bf16.msra.mxu0 0
  %1297 = vmatprep.subr.bf16.mxu0 0
  %1298 = vmatpush1.bf16.msra.mxu0 0
  %1299 = vmatprep.subr.bf16.mxu0 0
  %1300 = vmatpush1.bf16.msra.mxu0 0
  %1301 = vmatprep.subr.bf16.mxu0 0
  %1302 = vmatpush1.bf16.msra.mxu0 %v1280
  %1303 = vmatprep.subr.bf16.mxu0 0
  %1304 = vmatpush1.bf16.msra.mxu0 %v1279
  %1305 = vmatprep.subr.bf16.mxu0 0
  %1306 = vmatpush2.bf16.msra.mxu0 0
  %1307 = vmatprep.subr.bf16.mxu0 0
  %1308 = vmatpush2.bf16.msra.mxu0 0
  %1309 = vmatprep.subr.bf16.mxu0 0
  %1310 = vmatpush2.bf16.msra.mxu0 0
  %1311 = vmatprep.subr.bf16.mxu0 0
  %1312 = vmatpush2.bf16.msra.mxu0 0
  %1313 = vmatprep.subr.bf16.mxu0 0
  %1314 = vmatpush2.bf16.msra.mxu0 0
  %1315 = vmatprep.subr.bf16.mxu0 0
  %1316 = vmatpush2.bf16.msra.mxu0 0
  %1317 = vmatprep.subr.bf16.mxu0 0
  %1318 = vmatpush2.bf16.msra.mxu0 0
  %1319 = vmatprep.subr.bf16.mxu0 0
  %1320 = vmatpush2.bf16.msra.mxu0 0
  %1321 = vmatprep.mubr.bf16.mxu0 0
  %1322 = vmatmul.mubr.bf16.gmra.mxu0 %v1284
  %v1323 = vpop.f32.mrf.mxu0
  %v1324 = vadd.f32 0.0, %v1323
  %v1325 = vpop.f32.mrf.mxu0
  %v1326 = vpop.f32.mrf.mxu0
  %v1327 = vadd.f32 0.0, %v1326
  %v1328 = vpop.f32.mrf.mxu0
  %1329 = vmatprep.mubr.bf16.mxu0 0
  %1330 = vmatmul.mubr.bf16.gmra.mxu0 %v1287
  %v1331 = vpop.f32.mrf.mxu0
  %v1332 = vadd.f32 0.0, %v1331
  %v1333 = vpop.f32.mrf.mxu0
  %v1334 = vpop.f32.mrf.mxu0
  %v1335 = vadd.f32 0.0, %v1334
  %v1336 = vpop.f32.mrf.mxu0
  %1337 = vdwg.mxu0
  %v1342 = vunpack.c.l.b16 %v1155
  %v1343 = vunpack.c.l.b16 %v1156
  %v1344 = vunpack.c.l.b16 %v1157
  %v1345 = vunpack.c.l.b16 %v1158
  %v1346 = vpack.c.b16 %v1343, %v1342
  %v1347 = vpack.c.b16 %v1345, %v1344
  %v1351 = vsel %vm220, %v1263, 0
  %v1354 = vsel %vm220, %v1264, 0
  %1356 = vmatprep.subr.bf16.mxu0 0
  %1357 = vmatpush1.bf16.msra.mxu0 0
  %1358 = vmatprep.subr.bf16.mxu0 0
  %1359 = vmatpush1.bf16.msra.mxu0 0
  %1360 = vmatprep.subr.bf16.mxu0 0
  %1361 = vmatpush1.bf16.msra.mxu0 0
  %1362 = vmatprep.subr.bf16.mxu0 0
  %1363 = vmatpush1.bf16.msra.mxu0 0
  %1364 = vmatprep.subr.bf16.mxu0 0
  %1365 = vmatpush1.bf16.msra.mxu0 0
  %1366 = vmatprep.subr.bf16.mxu0 0
  %1367 = vmatpush1.bf16.msra.mxu0 0
  %1368 = vmatprep.subr.bf16.mxu0 0
  %1369 = vmatpush1.bf16.msra.mxu0 %v1347
  %1370 = vmatprep.subr.bf16.mxu0 0
  %1371 = vmatpush1.bf16.msra.mxu0 %v1346
  %1372 = vmatprep.subr.bf16.mxu0 0
  %1373 = vmatpush2.bf16.msra.mxu0 0
  %1374 = vmatprep.subr.bf16.mxu0 0
  %1375 = vmatpush2.bf16.msra.mxu0 0
  %1376 = vmatprep.subr.bf16.mxu0 0
  %1377 = vmatpush2.bf16.msra.mxu0 0
  %1378 = vmatprep.subr.bf16.mxu0 0
  %1379 = vmatpush2.bf16.msra.mxu0 0
  %1380 = vmatprep.subr.bf16.mxu0 0
  %1381 = vmatpush2.bf16.msra.mxu0 0
  %1382 = vmatprep.subr.bf16.mxu0 0
  %1383 = vmatpush2.bf16.msra.mxu0 0
  %1384 = vmatprep.subr.bf16.mxu0 0
  %1385 = vmatpush2.bf16.msra.mxu0 0
  %1386 = vmatprep.subr.bf16.mxu0 0
  %1387 = vmatpush2.bf16.msra.mxu0 0
  %1388 = vmatprep.mubr.bf16.mxu0 0
  %1389 = vmatmul.mubr.bf16.gmra.mxu0 %v1351
  %v1390 = vpop.f32.mrf.mxu0
  %v1391 = vadd.f32 %v1324, %v1390
  %v1392 = vpop.f32.mrf.mxu0
  %v1393 = vpop.f32.mrf.mxu0
  %v1394 = vadd.f32 %v1327, %v1393
  %v1395 = vpop.f32.mrf.mxu0
  %1396 = vmatprep.mubr.bf16.mxu0 0
  %1397 = vmatmul.mubr.bf16.gmra.mxu0 %v1354
  %v1398 = vpop.f32.mrf.mxu0
  %v1399 = vadd.f32 %v1332, %v1398
  %v1400 = vpop.f32.mrf.mxu0
  %v1401 = vpop.f32.mrf.mxu0
  %v1402 = vadd.f32 %v1335, %v1401
  %v1403 = vpop.f32.mrf.mxu0
  %1404 = vdwg.mxu0
  %v1405 = vlaneseq
  %v1406 = vshrl.u32 %v1405, 7
  %v1407 = vsub.s32 0, %v1406
  %v1408 = vrot.slane %v1163, %v1407
  %v1409 = vadd.f32 %v1391, %v1408
  %v1410 = vadd.f32 %v1394, %v1408
  %v1411 = vadd.f32 %v1399, %v1408
  %v1412 = vadd.f32 %v1402, %v1408
  %v1413 = vsel %vm220, %v1409, 0.0
  %v1414 = vsel %vm220, %v1410, 0.0
  %v1415 = vadd.f32 %v1413, %v1414
  %v1416 = vsel %vm220, %v1411, 0.0
  %v1417 = vadd.f32 %v1415, %v1416
  %v1418 = vsel %vm220, %v1412, 0.0
  %v1419 = vadd.f32 %v1417, %v1418
  %v1420 = vrot.slane %v1419, 4
  %v1421 = vadd.f32 %v1419, %v1420
  %v1422 = vrot.slane %v1421, 2
  %v1423 = vadd.f32 %v1421, %v1422
  %v1424 = vrot.slane %v1423, 1
  %v1425 = vadd.f32 %v1423, %v1424
  %v1426 = vmul.f32 %v1425, %v234
  %v1427 = vsub.f32 %v1409, %v1426
  %v1428 = vsub.f32 %v1410, %v1426
  %v1429 = vsub.f32 %v1411, %v1426
  %v1430 = vsub.f32 %v1412, %v1426
  %v1431 = vmul.f32 %v1427, %v1427
  %v1432 = vmul.f32 %v1428, %v1428
  %v1433 = vmul.f32 %v1429, %v1429
  %v1434 = vmul.f32 %v1430, %v1430
  %v1435 = vsel %vm220, %v1431, 0.0
  %v1436 = vsel %vm220, %v1432, 0.0
  %v1437 = vadd.f32 %v1435, %v1436
  %v1438 = vsel %vm220, %v1433, 0.0
  %v1439 = vadd.f32 %v1437, %v1438
  %v1440 = vsel %vm220, %v1434, 0.0
  %v1441 = vadd.f32 %v1439, %v1440
  %v1442 = vrot.slane %v1441, 4
  %v1443 = vadd.f32 %v1441, %v1442
  %v1444 = vrot.slane %v1443, 2
  %v1445 = vadd.f32 %v1443, %v1444
  %v1446 = vrot.slane %v1445, 1
  %v1447 = vadd.f32 %v1445, %v1446
  %v1448 = vmul.f32 %v1447, %v234
  %v1449 = vadd.f32 %v1448, 1e-05
  %v1450 = vrsqrt.pop %v1449
  %v1451 = vmul.f32 %v1427, %v1450
  %v1452 = vmul.f32 %v1428, %v1450
  %v1453 = vmul.f32 %v1429, %v1450
  %v1454 = vmul.f32 %v1430, %v1450
  %v1455 = vlaneseq
  %v1456 = vshrl.u32 %v1455, 7
  %v1457 = vsub.s32 0, %v1456
  %v1458 = vrot.slane %v1164, %v1457
  %v1459 = vmul.f32 %v1451, %v1458
  %v1460 = vmul.f32 %v1452, %v1458
  %v1461 = vmul.f32 %v1453, %v1458
  %v1462 = vmul.f32 %v1454, %v1458
  %v1463 = vlaneseq
  %v1464 = vshrl.u32 %v1463, 7
  %v1465 = vsub.s32 0, %v1464
  %v1466 = vrot.slane %v1165, %v1465
  %v1467 = vadd.f32 %v1459, %v1466
  %v1468 = vadd.f32 %v1460, %v1466
  %v1469 = vadd.f32 %v1461, %v1466
  %v1470 = vadd.f32 %v1462, %v1466
  %v1471 = vmax.f32 %v1467, 0.0
  %v1472 = vmax.f32 %v1468, 0.0
  %v1473 = vmax.f32 %v1469, 0.0
  %v1474 = vmax.f32 %v1470, 0.0
  %v1475 = vld [vmem:[%s0 + $0x40] sm:$0xf]
  %v1476 = vld [vmem:[%s0 + $0x44] sm:$0xf]
  %v1477 = vld [vmem:[%s0 + $0x48] sm:$0xf]
  %v1478 = vld [vmem:[%s0 + $0x4c] sm:$0xf]
  %v1479 = vld [vmem:[%s0 + $0x50] sm:$0xf]
  %v1480 = vld [vmem:[%s0 + $0x54] sm:$0xf]
  %v1481 = vld [vmem:[%s0 + $0x58] sm:$0x3]
  %v1482 = vld [vmem:[%s0 + $0x100] sm:$0xf]
  %v1483 = vld [vmem:[%s0 + $0x104] sm:$0xf]
  %v1484 = vld [vmem:[%s0 + $0x108] sm:$0xf]
  %v1485 = vld [vmem:[%s0 + $0x10c] sm:$0xf]
  %v1486 = vld [vmem:[%s0 + $0x110] sm:$0xf]
  %v1487 = vld [vmem:[%s0 + $0x114] sm:$0xf]
  %v1488 = vld [vmem:[%s0 + $0x118] sm:$0xf]
  %v1489 = vld [vmem:[%s0 + $0x11c] sm:$0xf]
  %v1490 = vld [vmem:[%s1 + $0x58] sm:$0x1]
  %v1491 = vld [vmem:[%s1 + $0x60] sm:$0x1]
  %v1492 = vld [vmem:[%s1 + $0x68] sm:$0x1]
  %v1500 = vunpack.c.l.b16 %v1475
  %v1501 = vunpack.c.l.b16 %v1476
  %v1502 = vunpack.c.l.b16 %v1477
  %v1503 = vunpack.c.l.b16 %v1478
  %v1504 = vunpack.c.l.b16 %v1479
  %v1505 = vunpack.c.l.b16 %v1480
  %v1506 = vunpack.c.l.b16 %v1481
  %v1507 = vpack.c.b16 %v1501, %v1500
  %v1508 = vpack.c.b16 %v1503, %v1502
  %v1509 = vpack.c.b16 %v1505, %v1504
  %v1510 = vpack.c.b16 %v1506, %v1506
  %v1512 = vsel %vm483, %v1507, 0
  %v1515 = vsel %vm483, %v1508, 0
  %v1518 = vsel %vm483, %v1509, 0
  %v1521 = vsel %vm483, %v1510, 0
  %vm1523 = vcmask 1043456
  %v1525 = vsel %vm1523, %v1150, 0
  %1527 = vmatprep.subr.mxu0 0.0
  %1528 = vmatpush1.msra.mxu0 0.0
  %1529 = vmatprep.subr.mxu0 0.0
  %1530 = vmatpush1.msra.mxu0 0.0
  %1531 = vmatprep.subr.mxu0 0.0
  %1532 = vmatpush1.msra.mxu0 0.0
  %1533 = vmatprep.subr.mxu0 0.0
  %1534 = vmatpush1.msra.mxu0 0.0
  %1535 = vmatprep.subr.mxu0 0.0
  %1536 = vmatpush1.msra.mxu0 0.0
  %1537 = vmatprep.subr.mxu0 0.0
  %1538 = vmatpush1.msra.mxu0 0.0
  %1539 = vmatprep.subr.mxu0 0.0
  %1540 = vmatpush1.msra.mxu0 0.0
  %1541 = vmatprep.subr.mxu0 0.0
  %1542 = vmatpush1.msra.mxu0 0.0
  %1543 = vmatprep.subr.mxu0 0.0
  %1544 = vmatpush1.msra.mxu0 0.0
  %1545 = vmatprep.subr.mxu0 0.0
  %1546 = vmatpush1.msra.mxu0 %v1525
  %1547 = vmatprep.subr.mxu0 0.0
  %1548 = vmatpush1.msra.mxu0 %v1149
  %1549 = vmatprep.subr.mxu0 0.0
  %1550 = vmatpush1.msra.mxu0 %v1148
  %1551 = vmatprep.subr.mxu0 0.0
  %1552 = vmatpush1.msra.mxu0 %v1147
  %1553 = vmatprep.subr.mxu0 0.0
  %1554 = vmatpush1.msra.mxu0 %v1146
  %1555 = vmatprep.subr.mxu0 0.0
  %1556 = vmatpush1.msra.mxu0 %v1145
  %1557 = vmatprep.subr.mxu0 0.0
  %1558 = vmatpush1.msra.mxu0 %v1144
  %1559 = vmatprep.subr.mxu0 0.0
  %1560 = vmatpush2.msra.mxu0 0.0
  %1561 = vmatprep.subr.mxu0 0.0
  %1562 = vmatpush2.msra.mxu0 0.0
  %1563 = vmatprep.subr.mxu0 0.0
  %1564 = vmatpush2.msra.mxu0 0.0
  %1565 = vmatprep.subr.mxu0 0.0
  %1566 = vmatpush2.msra.mxu0 0.0
  %1567 = vmatprep.subr.mxu0 0.0
  %1568 = vmatpush2.msra.mxu0 0.0
  %1569 = vmatprep.subr.mxu0 0.0
  %1570 = vmatpush2.msra.mxu0 0.0
  %1571 = vmatprep.subr.mxu0 0.0
  %1572 = vmatpush2.msra.mxu0 0.0
  %1573 = vmatprep.subr.mxu0 0.0
  %1574 = vmatpush2.msra.mxu0 0.0
  %1575 = vmatprep.subr.mxu0 0.0
  %1576 = vmatpush2.msra.mxu0 0.0
  %1577 = vmatprep.subr.mxu0 0.0
  %1578 = vmatpush2.msra.mxu0 0.0
  %1579 = vmatprep.subr.mxu0 0.0
  %1580 = vmatpush2.msra.mxu0 0.0
  %1581 = vmatprep.subr.mxu0 0.0
  %1582 = vmatpush2.msra.mxu0 0.0
  %1583 = vmatprep.subr.mxu0 0.0
  %1584 = vmatpush2.msra.mxu0 0.0
  %1585 = vmatprep.subr.mxu0 0.0
  %1586 = vmatpush2.msra.mxu0 0.0
  %1587 = vmatprep.subr.mxu0 0.0
  %1588 = vmatpush2.msra.mxu0 0.0
  %1589 = vmatprep.subr.mxu0 0.0
  %1590 = vmatpush2.msra.mxu0 0.0
  %1591 = vmatprep.mubr.bf16.mxu0 0
  %1592 = vmatmul.mubr.bf16.gmra.mxu0 %v1512
  %v1593 = vpop.f32.mrf.mxu0
  %v1594 = vadd.f32 0.0, %v1593
  %v1595 = vpop.f32.mrf.mxu0
  %v1596 = vpop.f32.mrf.mxu0
  %v1597 = vadd.f32 0.0, %v1596
  %v1598 = vpop.f32.mrf.mxu0
  %1599 = vmatprep.mubr.bf16.mxu0 0
  %1600 = vmatmul.mubr.bf16.gmra.mxu0 %v1515
  %v1601 = vpop.f32.mrf.mxu0
  %v1602 = vadd.f32 0.0, %v1601
  %v1603 = vpop.f32.mrf.mxu0
  %v1604 = vpop.f32.mrf.mxu0
  %v1605 = vadd.f32 0.0, %v1604
  %v1606 = vpop.f32.mrf.mxu0
  %1607 = vmatprep.mubr.bf16.mxu0 0
  %1608 = vmatmul.mubr.bf16.gmra.mxu0 %v1518
  %v1609 = vpop.f32.mrf.mxu0
  %v1610 = vadd.f32 0.0, %v1609
  %v1611 = vpop.f32.mrf.mxu0
  %v1612 = vpop.f32.mrf.mxu0
  %v1613 = vadd.f32 0.0, %v1612
  %v1614 = vpop.f32.mrf.mxu0
  %1615 = vmatprep.mubr.bf16.mxu0 0
  %1616 = vmatmul.mubr.bf16.gmra.mxu0 %v1521
  %v1617 = vpop.f32.mrf.mxu0
  %v1618 = vadd.f32 0.0, %v1617
  %v1619 = vpop.f32.mrf.mxu0
  %v1620 = vpop.f32.mrf.mxu0
  %v1621 = vpop.f32.mrf.mxu0
  %1622 = vdwg.mxu0
  %v1623 = vpack.c.bf16 %v1145, %v1144
  %v1624 = vpack.c.bf16 %v1147, %v1146
  %v1625 = vpack.c.bf16 %v1149, %v1148
  %v1626 = vpack.c.bf16 %v1150, %v1150
  %v1627 = vsub.f32 %v1144, %v1594
  %v1628 = vsub.f32 %v1145, %v1597
  %v1629 = vsub.f32 %v1146, %v1602
  %v1630 = vsub.f32 %v1147, %v1605
  %v1631 = vsub.f32 %v1148, %v1610
  %v1632 = vsub.f32 %v1149, %v1613
  %v1633 = vsub.f32 %v1150, %v1618
  %v1634 = vpack.c.bf16 %v1628, %v1627
  %v1635 = vpack.c.bf16 %v1630, %v1629
  %v1636 = vpack.c.bf16 %v1632, %v1631
  %v1637 = vpack.c.bf16 %v1633, %v1633
  %v1642 = vunpack.c.l.b16 %v1486
  %v1643 = vunpack.c.l.b16 %v1487
  %v1644 = vunpack.c.l.b16 %v1488
  %v1645 = vunpack.c.l.b16 %v1489
  %v1646 = vpack.c.b16 %v1643, %v1642
  %v1647 = vpack.c.b16 %v1645, %v1644
  %v1651 = vsel %vm220, %v1634, 0
  %v1654 = vsel %vm220, %v1635, 0
  %v1657 = vsel %vm220, %v1636, 0
  %v1660 = vsel %vm220, %v1637, 0
  %1662 = vmatprep.subr.bf16.mxu0 0
  %1663 = vmatpush1.bf16.msra.mxu0 0
  %1664 = vmatprep.subr.bf16.mxu0 0
  %1665 = vmatpush1.bf16.msra.mxu0 0
  %1666 = vmatprep.subr.bf16.mxu0 0
  %1667 = vmatpush1.bf16.msra.mxu0 0
  %1668 = vmatprep.subr.bf16.mxu0 0
  %1669 = vmatpush1.bf16.msra.mxu0 0
  %1670 = vmatprep.subr.bf16.mxu0 0
  %1671 = vmatpush1.bf16.msra.mxu0 0
  %1672 = vmatprep.subr.bf16.mxu0 0
  %1673 = vmatpush1.bf16.msra.mxu0 0
  %1674 = vmatprep.subr.bf16.mxu0 0
  %1675 = vmatpush1.bf16.msra.mxu0 %v1647
  %1676 = vmatprep.subr.bf16.mxu0 0
  %1677 = vmatpush1.bf16.msra.mxu0 %v1646
  %1678 = vmatprep.subr.bf16.mxu0 0
  %1679 = vmatpush2.bf16.msra.mxu0 0
  %1680 = vmatprep.subr.bf16.mxu0 0
  %1681 = vmatpush2.bf16.msra.mxu0 0
  %1682 = vmatprep.subr.bf16.mxu0 0
  %1683 = vmatpush2.bf16.msra.mxu0 0
  %1684 = vmatprep.subr.bf16.mxu0 0
  %1685 = vmatpush2.bf16.msra.mxu0 0
  %1686 = vmatprep.subr.bf16.mxu0 0
  %1687 = vmatpush2.bf16.msra.mxu0 0
  %1688 = vmatprep.subr.bf16.mxu0 0
  %1689 = vmatpush2.bf16.msra.mxu0 0
  %1690 = vmatprep.subr.bf16.mxu0 0
  %1691 = vmatpush2.bf16.msra.mxu0 0
  %1692 = vmatprep.subr.bf16.mxu0 0
  %1693 = vmatpush2.bf16.msra.mxu0 0
  %1694 = vmatprep.mubr.bf16.mxu0 0
  %1695 = vmatmul.mubr.bf16.gmra.mxu0 %v1651
  %v1696 = vpop.f32.mrf.mxu0
  %v1697 = vadd.f32 0.0, %v1696
  %v1698 = vpop.f32.mrf.mxu0
  %v1699 = vpop.f32.mrf.mxu0
  %v1700 = vadd.f32 0.0, %v1699
  %v1701 = vpop.f32.mrf.mxu0
  %1702 = vmatprep.mubr.bf16.mxu0 0
  %1703 = vmatmul.mubr.bf16.gmra.mxu0 %v1654
  %v1704 = vpop.f32.mrf.mxu0
  %v1705 = vadd.f32 0.0, %v1704
  %v1706 = vpop.f32.mrf.mxu0
  %v1707 = vpop.f32.mrf.mxu0
  %v1708 = vadd.f32 0.0, %v1707
  %v1709 = vpop.f32.mrf.mxu0
  %1710 = vmatprep.mubr.bf16.mxu0 0
  %1711 = vmatmul.mubr.bf16.gmra.mxu0 %v1657
  %v1712 = vpop.f32.mrf.mxu0
  %v1713 = vadd.f32 0.0, %v1712
  %v1714 = vpop.f32.mrf.mxu0
  %v1715 = vpop.f32.mrf.mxu0
  %v1716 = vadd.f32 0.0, %v1715
  %v1717 = vpop.f32.mrf.mxu0
  %1718 = vmatprep.mubr.bf16.mxu0 0
  %1719 = vmatmul.mubr.bf16.gmra.mxu0 %v1660
  %v1720 = vpop.f32.mrf.mxu0
  %v1721 = vadd.f32 0.0, %v1720
  %v1722 = vpop.f32.mrf.mxu0
  %v1723 = vpop.f32.mrf.mxu0
  %v1724 = vpop.f32.mrf.mxu0
  %1725 = vdwg.mxu0
  %v1730 = vunpack.c.l.b16 %v1482
  %v1731 = vunpack.c.l.b16 %v1483
  %v1732 = vunpack.c.l.b16 %v1484
  %v1733 = vunpack.c.l.b16 %v1485
  %v1734 = vpack.c.b16 %v1731, %v1730
  %v1735 = vpack.c.b16 %v1733, %v1732
  %v1739 = vsel %vm220, %v1623, 0
  %v1742 = vsel %vm220, %v1624, 0
  %v1745 = vsel %vm220, %v1625, 0
  %v1748 = vsel %vm220, %v1626, 0
  %1750 = vmatprep.subr.bf16.mxu0 0
  %1751 = vmatpush1.bf16.msra.mxu0 0
  %1752 = vmatprep.subr.bf16.mxu0 0
  %1753 = vmatpush1.bf16.msra.mxu0 0
  %1754 = vmatprep.subr.bf16.mxu0 0
  %1755 = vmatpush1.bf16.msra.mxu0 0
  %1756 = vmatprep.subr.bf16.mxu0 0
  %1757 = vmatpush1.bf16.msra.mxu0 0
  %1758 = vmatprep.subr.bf16.mxu0 0
  %1759 = vmatpush1.bf16.msra.mxu0 0
  %1760 = vmatprep.subr.bf16.mxu0 0
  %1761 = vmatpush1.bf16.msra.mxu0 0
  %1762 = vmatprep.subr.bf16.mxu0 0
  %1763 = vmatpush1.bf16.msra.mxu0 %v1735
  %1764 = vmatprep.subr.bf16.mxu0 0
  %1765 = vmatpush1.bf16.msra.mxu0 %v1734
  %1766 = vmatprep.subr.bf16.mxu0 0
  %1767 = vmatpush2.bf16.msra.mxu0 0
  %1768 = vmatprep.subr.bf16.mxu0 0
  %1769 = vmatpush2.bf16.msra.mxu0 0
  %1770 = vmatprep.subr.bf16.mxu0 0
  %1771 = vmatpush2.bf16.msra.mxu0 0
  %1772 = vmatprep.subr.bf16.mxu0 0
  %1773 = vmatpush2.bf16.msra.mxu0 0
  %1774 = vmatprep.subr.bf16.mxu0 0
  %1775 = vmatpush2.bf16.msra.mxu0 0
  %1776 = vmatprep.subr.bf16.mxu0 0
  %1777 = vmatpush2.bf16.msra.mxu0 0
  %1778 = vmatprep.subr.bf16.mxu0 0
  %1779 = vmatpush2.bf16.msra.mxu0 0
  %1780 = vmatprep.subr.bf16.mxu0 0
  %1781 = vmatpush2.bf16.msra.mxu0 0
  %1782 = vmatprep.mubr.bf16.mxu0 0
  %1783 = vmatmul.mubr.bf16.gmra.mxu0 %v1739
  %v1784 = vpop.f32.mrf.mxu0
  %v1785 = vadd.f32 %v1697, %v1784
  %v1786 = vpop.f32.mrf.mxu0
  %v1787 = vpop.f32.mrf.mxu0
  %v1788 = vadd.f32 %v1700, %v1787
  %v1789 = vpop.f32.mrf.mxu0
  %1790 = vmatprep.mubr.bf16.mxu0 0
  %1791 = vmatmul.mubr.bf16.gmra.mxu0 %v1742
  %v1792 = vpop.f32.mrf.mxu0
  %v1793 = vadd.f32 %v1705, %v1792
  %v1794 = vpop.f32.mrf.mxu0
  %v1795 = vpop.f32.mrf.mxu0
  %v1796 = vadd.f32 %v1708, %v1795
  %v1797 = vpop.f32.mrf.mxu0
  %1798 = vmatprep.mubr.bf16.mxu0 0
  %1799 = vmatmul.mubr.bf16.gmra.mxu0 %v1745
  %v1800 = vpop.f32.mrf.mxu0
  %v1801 = vadd.f32 %v1713, %v1800
  %v1802 = vpop.f32.mrf.mxu0
  %v1803 = vpop.f32.mrf.mxu0
  %v1804 = vadd.f32 %v1716, %v1803
  %v1805 = vpop.f32.mrf.mxu0
  %1806 = vmatprep.mubr.bf16.mxu0 0
  %1807 = vmatmul.mubr.bf16.gmra.mxu0 %v1748
  %v1808 = vpop.f32.mrf.mxu0
  %v1809 = vadd.f32 %v1721, %v1808
  %v1810 = vpop.f32.mrf.mxu0
  %v1811 = vpop.f32.mrf.mxu0
  %v1812 = vpop.f32.mrf.mxu0
  %1813 = vdwg.mxu0
  %v1814 = vlaneseq
  %v1815 = vshrl.u32 %v1814, 7
  %v1816 = vsub.s32 0, %v1815
  %v1817 = vrot.slane %v1490, %v1816
  %v1818 = vadd.f32 %v1785, %v1817
  %v1819 = vadd.f32 %v1788, %v1817
  %v1820 = vadd.f32 %v1793, %v1817
  %v1821 = vadd.f32 %v1796, %v1817
  %v1822 = vadd.f32 %v1801, %v1817
  %v1823 = vadd.f32 %v1804, %v1817
  %v1824 = vadd.f32 %v1809, %v1817
  %v1825 = vsel %vm220, %v1818, 0.0
  %v1826 = vsel %vm220, %v1819, 0.0
  %v1827 = vadd.f32 %v1825, %v1826
  %v1828 = vsel %vm220, %v1820, 0.0
  %v1829 = vadd.f32 %v1827, %v1828
  %v1830 = vsel %vm220, %v1821, 0.0
  %v1831 = vadd.f32 %v1829, %v1830
  %v1832 = vsel %vm220, %v1822, 0.0
  %v1833 = vadd.f32 %v1831, %v1832
  %v1834 = vsel %vm220, %v1823, 0.0
  %v1835 = vadd.f32 %v1833, %v1834
  %v1836 = vsel %vm300, %v1824, 0.0
  %v1837 = vadd.f32 %v1835, %v1836
  %v1838 = vrot.slane %v1837, 4
  %v1839 = vadd.f32 %v1837, %v1838
  %v1840 = vrot.slane %v1839, 2
  %v1841 = vadd.f32 %v1839, %v1840
  %v1842 = vrot.slane %v1841, 1
  %v1843 = vadd.f32 %v1841, %v1842
  %v1844 = vmul.f32 %v1843, %v326
  %v1845 = vsub.f32 %v1818, %v1844
  %v1846 = vsub.f32 %v1819, %v1844
  %v1847 = vsub.f32 %v1820, %v1844
  %v1848 = vsub.f32 %v1821, %v1844
  %v1849 = vsub.f32 %v1822, %v1844
  %v1850 = vsub.f32 %v1823, %v1844
  %v1851 = vsub.f32 %v1824, %v1844
  %v1852 = vmul.f32 %v1845, %v1845
  %v1853 = vmul.f32 %v1846, %v1846
  %v1854 = vmul.f32 %v1847, %v1847
  %v1855 = vmul.f32 %v1848, %v1848
  %v1856 = vmul.f32 %v1849, %v1849
  %v1857 = vmul.f32 %v1850, %v1850
  %v1858 = vmul.f32 %v1851, %v1851
  %v1859 = vsel %vm220, %v1852, 0.0
  %v1860 = vsel %vm220, %v1853, 0.0
  %v1861 = vadd.f32 %v1859, %v1860
  %v1862 = vsel %vm220, %v1854, 0.0
  %v1863 = vadd.f32 %v1861, %v1862
  %v1864 = vsel %vm220, %v1855, 0.0
  %v1865 = vadd.f32 %v1863, %v1864
  %v1866 = vsel %vm220, %v1856, 0.0
  %v1867 = vadd.f32 %v1865, %v1866
  %v1868 = vsel %vm220, %v1857, 0.0
  %v1869 = vadd.f32 %v1867, %v1868
  %v1870 = vsel %vm300, %v1858, 0.0
  %v1871 = vadd.f32 %v1869, %v1870
  %v1872 = vrot.slane %v1871, 4
  %v1873 = vadd.f32 %v1871, %v1872
  %v1874 = vrot.slane %v1873, 2
  %v1875 = vadd.f32 %v1873, %v1874
  %v1876 = vrot.slane %v1875, 1
  %v1877 = vadd.f32 %v1875, %v1876
  %v1878 = vmul.f32 %v1877, %v326
  %v1879 = vadd.f32 %v1878, 1e-05
  %v1880 = vrsqrt.pop %v1879
  %v1881 = vmul.f32 %v1845, %v1880
  %v1882 = vmul.f32 %v1846, %v1880
  %v1883 = vmul.f32 %v1847, %v1880
  %v1884 = vmul.f32 %v1848, %v1880
  %v1885 = vmul.f32 %v1849, %v1880
  %v1886 = vmul.f32 %v1850, %v1880
  %v1887 = vmul.f32 %v1851, %v1880
  %v1888 = vlaneseq
  %v1889 = vshrl.u32 %v1888, 7
  %v1890 = vsub.s32 0, %v1889
  %v1891 = vrot.slane %v1491, %v1890
  %v1892 = vmul.f32 %v1881, %v1891
  %v1893 = vmul.f32 %v1882, %v1891
  %v1894 = vmul.f32 %v1883, %v1891
  %v1895 = vmul.f32 %v1884, %v1891
  %v1896 = vmul.f32 %v1885, %v1891
  %v1897 = vmul.f32 %v1886, %v1891
  %v1898 = vmul.f32 %v1887, %v1891
  %v1899 = vlaneseq
  %v1900 = vshrl.u32 %v1899, 7
  %v1901 = vsub.s32 0, %v1900
  %v1902 = vrot.slane %v1492, %v1901
  %v1903 = vadd.f32 %v1892, %v1902
  %v1904 = vadd.f32 %v1893, %v1902
  %v1905 = vadd.f32 %v1894, %v1902
  %v1906 = vadd.f32 %v1895, %v1902
  %v1907 = vadd.f32 %v1896, %v1902
  %v1908 = vadd.f32 %v1897, %v1902
  %v1909 = vadd.f32 %v1898, %v1902
  %v1910 = vmax.f32 %v1903, 0.0
  %v1911 = vmax.f32 %v1904, 0.0
  %v1912 = vmax.f32 %v1905, 0.0
  %v1913 = vmax.f32 %v1906, 0.0
  %v1914 = vmax.f32 %v1907, 0.0
  %v1915 = vmax.f32 %v1908, 0.0
  %v1916 = vmax.f32 %v1909, 0.0
  %v1917 = vpack.c.bf16 %v1472, %v1471
  %v1918 = vpack.c.bf16 %v1474, %v1473
  %v1921 = vunpack.c.l.b16 %v1917
  %v1922 = vunpack.c.h.b16 %v1917
  %v1923 = vunpack.c.l.b16 %v1918
  %v1924 = vunpack.c.h.b16 %v1918
  %v1925 = vpack.c.b16 %v1921, %v1921
  %v1926 = vpack.c.b16 %v1922, %v1922
  %v1927 = vpack.c.b16 %v1923, %v1923
  %v1928 = vpack.c.b16 %v1924, %v1924
  %1929 = vrot.lane.b32.xlu0 %v1925, 32
  %v1930 = vpop.permute.xlu0 %1929
  %1931 = vrot.lane.b32.xlu0 %v1926, 32
  %v1932 = vpop.permute.xlu0 %1931
  %1933 = vrot.lane.b32.xlu0 %v1927, 32
  %v1934 = vpop.permute.xlu0 %1933
  %1935 = vrot.lane.b32.xlu0 %v1928, 32
  %v1936 = vpop.permute.xlu0 %1935
  %vm1941 = vcmask 519424
  %1942 = vst.msk [vmem:[#allocation2] sm:$0xf] %vm1941, %v1930
  %1943 = vst.msk [vmem:[#allocation2 + $0x4] sm:$0xf] %vm1941, %v1932
  %1944 = vst.msk [vmem:[#allocation2 + $0x8] sm:$0xf] %vm1941, %v1934
  %1945 = vst.msk [vmem:[#allocation2 + $0xc] sm:$0xf] %vm1941, %v1936
  %v1946 = vpack.c.bf16 %v1911, %v1910
  %v1947 = vpack.c.bf16 %v1913, %v1912
  %v1948 = vpack.c.bf16 %v1915, %v1914
  %v1949 = vpack.c.bf16 %v1916, %v1916
  %v1954 = vunpack.c.l.b16 %v1946
  %v1955 = vunpack.c.h.b16 %v1946
  %v1956 = vunpack.c.l.b16 %v1947
  %v1957 = vunpack.c.h.b16 %v1947
  %v1958 = vunpack.c.l.b16 %v1948
  %v1959 = vunpack.c.h.b16 %v1948
  %v1960 = vunpack.c.l.b16 %v1949
  %v1961 = vpack.c.b16 %v1954, %v1954
  %v1962 = vpack.c.b16 %v1955, %v1955
  %v1963 = vpack.c.b16 %v1956, %v1956
  %v1964 = vpack.c.b16 %v1957, %v1957
  %v1965 = vpack.c.b16 %v1958, %v1958
  %v1966 = vpack.c.b16 %v1959, %v1959
  %v1967 = vpack.c.b16 %v1960, %v1960
  %1968 = vrot.lane.b32.xlu0 %v1961, 32
  %v1969 = vpop.permute.xlu0 %1968
  %1970 = vrot.lane.b32.xlu0 %v1962, 32
  %v1971 = vpop.permute.xlu0 %1970
  %1972 = vrot.lane.b32.xlu0 %v1963, 32
  %v1973 = vpop.permute.xlu0 %1972
  %1974 = vrot.lane.b32.xlu0 %v1964, 32
  %v1975 = vpop.permute.xlu0 %1974
  %1976 = vrot.lane.b32.xlu0 %v1965, 32
  %v1977 = vpop.permute.xlu0 %1976
  %1978 = vrot.lane.b32.xlu0 %v1966, 32
  %v1979 = vpop.permute.xlu0 %1978
  %1980 = vrot.lane.b32.xlu0 %v1967, 32
  %v1981 = vpop.permute.xlu0 %1980
  %1989 = vst.msk [vmem:[#allocation3] sm:$0xf] %vm1941, %v1969
  %1990 = vst.msk [vmem:[#allocation3 + $0x4] sm:$0xf] %vm1941, %v1971
  %1991 = vst.msk [vmem:[#allocation3 + $0x8] sm:$0xf] %vm1941, %v1973
  %1992 = vst.msk [vmem:[#allocation3 + $0xc] sm:$0xf] %vm1941, %v1975
  %1993 = vst.msk [vmem:[#allocation3 + $0x10] sm:$0xf] %vm1941, %v1977
  %1994 = vst.msk [vmem:[#allocation3 + $0x14] sm:$0xf] %vm1941, %v1979
  %vm1995 = vcmask 517376
  %1996 = vst.msk [vmem:[#allocation3 + $0x18] sm:$0x3] %vm1995, %v1981
  %v1997 = vld [vmem:[#allocation2] sm:$0xf]
  %v1998 = vld [vmem:[#allocation2 + $0x4] sm:$0xf]
  %v1999 = vld [vmem:[#allocation2 + $0x8] sm:$0xf]
  %v2000 = vld [vmem:[#allocation2 + $0xc] sm:$0xf]
  %v2001 = vld [vmem:[#allocation3] sm:$0xf]
  %v2002 = vld [vmem:[#allocation3 + $0x4] sm:$0xf]
  %v2003 = vld [vmem:[#allocation3 + $0x8] sm:$0xf]
  %v2004 = vld [vmem:[#allocation3 + $0xc] sm:$0xf]
  %v2005 = vld [vmem:[#allocation3 + $0x10] sm:$0xf]
  %v2006 = vld [vmem:[#allocation3 + $0x14] sm:$0xf]
  %v2007 = vld [vmem:[#allocation3 + $0x18] sm:$0x3]
  %v2008 = vld [vmem:[%s0 + $0x60] sm:$0xf]
  %v2009 = vld [vmem:[%s0 + $0x64] sm:$0xf]
  %v2010 = vld [vmem:[%s0 + $0x68] sm:$0xf]
  %v2011 = vld [vmem:[%s0 + $0x6c] sm:$0xf]
  %v2016 = vunpack.c.l.b16 %v2008
  %v2017 = vunpack.c.l.b16 %v2009
  %v2018 = vunpack.c.l.b16 %v2010
  %v2019 = vunpack.c.l.b16 %v2011
  %v2020 = vpack.c.b16 %v2017, %v2016
  %v2021 = vpack.c.b16 %v2019, %v2018
  %v2029 = vunpack.c.l.b16 %v2001
  %v2030 = vunpack.c.l.b16 %v2002
  %v2031 = vunpack.c.l.b16 %v2003
  %v2032 = vunpack.c.l.b16 %v2004
  %v2033 = vunpack.c.l.b16 %v2005
  %v2034 = vunpack.c.l.b16 %v2006
  %v2035 = vunpack.c.l.b16 %v2007
  %v2036 = vpack.c.b16 %v2030, %v2029
  %v2037 = vpack.c.b16 %v2032, %v2031
  %v2038 = vpack.c.b16 %v2034, %v2033
  %v2039 = vpack.c.b16 %v2035, %v2035
  %v2044 = vsel %vm483, %v2020, 0
  %v2047 = vsel %vm483, %v2021, 0
  %v2050 = vsel %vm490, %v2039, 0
  %2052 = vmatprep.subr.bf16.mxu0 0
  %2053 = vmatpush1.bf16.msra.mxu0 0
  %2054 = vmatprep.subr.bf16.mxu0 0
  %2055 = vmatpush1.bf16.msra.mxu0 0
  %2056 = vmatprep.subr.bf16.mxu0 0
  %2057 = vmatpush1.bf16.msra.mxu0 0
  %2058 = vmatprep.subr.bf16.mxu0 0
  %2059 = vmatpush1.bf16.msra.mxu0 0
  %2060 = vmatprep.subr.bf16.mxu0 0
  %2061 = vmatpush1.bf16.msra.mxu0 %v2050
  %2062 = vmatprep.subr.bf16.mxu0 0
  %2063 = vmatpush1.bf16.msra.mxu0 %v2038
  %2064 = vmatprep.subr.bf16.mxu0 0
  %2065 = vmatpush1.bf16.msra.mxu0 %v2037
  %2066 = vmatprep.subr.bf16.mxu0 0
  %2067 = vmatpush1.bf16.msra.mxu0 %v2036
  %2068 = vmatprep.subr.bf16.mxu0 0
  %2069 = vmatpush2.bf16.msra.mxu0 0
  %2070 = vmatprep.subr.bf16.mxu0 0
  %2071 = vmatpush2.bf16.msra.mxu0 0
  %2072 = vmatprep.subr.bf16.mxu0 0
  %2073 = vmatpush2.bf16.msra.mxu0 0
  %2074 = vmatprep.subr.bf16.mxu0 0
  %2075 = vmatpush2.bf16.msra.mxu0 0
  %2076 = vmatprep.subr.bf16.mxu0 0
  %2077 = vmatpush2.bf16.msra.mxu0 0
  %2078 = vmatprep.subr.bf16.mxu0 0
  %2079 = vmatpush2.bf16.msra.mxu0 0
  %2080 = vmatprep.subr.bf16.mxu0 0
  %2081 = vmatpush2.bf16.msra.mxu0 0
  %2082 = vmatprep.subr.bf16.mxu0 0
  %2083 = vmatpush2.bf16.msra.mxu0 0
  %2084 = vmatprep.mubr.bf16.mxu0 0
  %2085 = vmatmul.mubr.bf16.gmra.mxu0 %v2044
  %v2086 = vpop.f32.mrf.mxu0
  %v2087 = vadd.f32 0.0, %v2086
  %v2088 = vpop.f32.mrf.mxu0
  %v2089 = vpop.f32.mrf.mxu0
  %v2090 = vadd.f32 0.0, %v2089
  %v2091 = vpop.f32.mrf.mxu0
  %2092 = vmatprep.mubr.bf16.mxu0 0
  %2093 = vmatmul.mubr.bf16.gmra.mxu0 %v2047
  %v2094 = vpop.f32.mrf.mxu0
  %v2095 = vadd.f32 0.0, %v2094
  %v2096 = vpop.f32.mrf.mxu0
  %v2097 = vpop.f32.mrf.mxu0
  %v2098 = vadd.f32 0.0, %v2097
  %v2099 = vpop.f32.mrf.mxu0
  %2100 = vdwg.mxu0
  %v2101 = vld [vmem:[%s0 + $0x70] sm:$0xf]
  %v2102 = vld [vmem:[%s0 + $0x74] sm:$0xf]
  %v2103 = vld [vmem:[%s0 + $0x78] sm:$0xf]
  %v2104 = vld [vmem:[%s0 + $0x7c] sm:$0xf]
  %v2105 = vld [vmem:[%s0 + $0x80] sm:$0xf]
  %v2106 = vld [vmem:[%s0 + $0x84] sm:$0xf]
  %v2107 = vld [vmem:[%s0 + $0x88] sm:$0x3]
  %v2115 = vunpack.c.l.b16 %v2101
  %v2116 = vunpack.c.l.b16 %v2102
  %v2117 = vunpack.c.l.b16 %v2103
  %v2118 = vunpack.c.l.b16 %v2104
  %v2119 = vunpack.c.l.b16 %v2105
  %v2120 = vunpack.c.l.b16 %v2106
  %v2121 = vunpack.c.l.b16 %v2107
  %v2122 = vpack.c.b16 %v2116, %v2115
  %v2123 = vpack.c.b16 %v2118, %v2117
  %v2124 = vpack.c.b16 %v2120, %v2119
  %v2125 = vpack.c.b16 %v2121, %v2121
  %v2130 = vunpack.c.l.b16 %v1997
  %v2131 = vunpack.c.l.b16 %v1998
  %v2132 = vunpack.c.l.b16 %v1999
  %v2133 = vunpack.c.l.b16 %v2000
  %v2134 = vpack.c.b16 %v2131, %v2130
  %v2135 = vpack.c.b16 %v2133, %v2132
  %v2139 = vsel %vm220, %v2122, 0
  %v2142 = vsel %vm220, %v2123, 0
  %v2145 = vsel %vm220, %v2124, 0
  %v2148 = vsel %vm220, %v2125, 0
  %2150 = vmatprep.subr.bf16.mxu0 0
  %2151 = vmatpush1.bf16.msra.mxu0 0
  %2152 = vmatprep.subr.bf16.mxu0 0
  %2153 = vmatpush1.bf16.msra.mxu0 0
  %2154 = vmatprep.subr.bf16.mxu0 0
  %2155 = vmatpush1.bf16.msra.mxu0 0
  %2156 = vmatprep.subr.bf16.mxu0 0
  %2157 = vmatpush1.bf16.msra.mxu0 0
  %2158 = vmatprep.subr.bf16.mxu0 0
  %2159 = vmatpush1.bf16.msra.mxu0 0
  %2160 = vmatprep.subr.bf16.mxu0 0
  %2161 = vmatpush1.bf16.msra.mxu0 0
  %2162 = vmatprep.subr.bf16.mxu0 0
  %2163 = vmatpush1.bf16.msra.mxu0 %v2135
  %2164 = vmatprep.subr.bf16.mxu0 0
  %2165 = vmatpush1.bf16.msra.mxu0 %v2134
  %2166 = vmatprep.subr.bf16.mxu0 0
  %2167 = vmatpush2.bf16.msra.mxu0 0
  %2168 = vmatprep.subr.bf16.mxu0 0
  %2169 = vmatpush2.bf16.msra.mxu0 0
  %2170 = vmatprep.subr.bf16.mxu0 0
  %2171 = vmatpush2.bf16.msra.mxu0 0
  %2172 = vmatprep.subr.bf16.mxu0 0
  %2173 = vmatpush2.bf16.msra.mxu0 0
  %2174 = vmatprep.subr.bf16.mxu0 0
  %2175 = vmatpush2.bf16.msra.mxu0 0
  %2176 = vmatprep.subr.bf16.mxu0 0
  %2177 = vmatpush2.bf16.msra.mxu0 0
  %2178 = vmatprep.subr.bf16.mxu0 0
  %2179 = vmatpush2.bf16.msra.mxu0 0
  %2180 = vmatprep.subr.bf16.mxu0 0
  %2181 = vmatpush2.bf16.msra.mxu0 0
  %2182 = vmatprep.mubr.bf16.mxu0 0
  %2183 = vmatmul.mubr.bf16.gmra.mxu0 %v2139
  %v2184 = vpop.f32.mrf.mxu0
  %v2185 = vadd.f32 0.0, %v2184
  %v2186 = vpop.f32.mrf.mxu0
  %v2187 = vpop.f32.mrf.mxu0
  %v2188 = vadd.f32 0.0, %v2187
  %v2189 = vpop.f32.mrf.mxu0
  %2190 = vmatprep.mubr.bf16.mxu0 0
  %2191 = vmatmul.mubr.bf16.gmra.mxu0 %v2142
  %v2192 = vpop.f32.mrf.mxu0
  %v2193 = vadd.f32 0.0, %v2192
  %v2194 = vpop.f32.mrf.mxu0
  %v2195 = vpop.f32.mrf.mxu0
  %v2196 = vadd.f32 0.0, %v2195
  %v2197 = vpop.f32.mrf.mxu0
  %2198 = vmatprep.mubr.bf16.mxu0 0
  %2199 = vmatmul.mubr.bf16.gmra.mxu0 %v2145
  %v2200 = vpop.f32.mrf.mxu0
  %v2201 = vadd.f32 0.0, %v2200
  %v2202 = vpop.f32.mrf.mxu0
  %v2203 = vpop.f32.mrf.mxu0
  %v2204 = vadd.f32 0.0, %v2203
  %v2205 = vpop.f32.mrf.mxu0
  %2206 = vmatprep.mubr.bf16.mxu0 0
  %2207 = vmatmul.mubr.bf16.gmra.mxu0 %v2148
  %v2208 = vpop.f32.mrf.mxu0
  %v2209 = vadd.f32 0.0, %v2208
  %v2210 = vpop.f32.mrf.mxu0
  %v2211 = vpop.f32.mrf.mxu0
  %v2212 = vpop.f32.mrf.mxu0
  %2213 = vdwg.mxu0
  %v2214 = vld [vmem:[%s0 + $0x120] sm:$0xf]
  %v2215 = vld [vmem:[%s0 + $0x124] sm:$0xf]
  %v2216 = vld [vmem:[%s0 + $0x128] sm:$0xf]
  %v2217 = vld [vmem:[%s0 + $0x12c] sm:$0xf]
  %v2218 = vld [vmem:[%s0 + $0x130] sm:$0xf]
  %v2219 = vld [vmem:[%s0 + $0x134] sm:$0xf]
  %v2220 = vld [vmem:[%s0 + $0x138] sm:$0xf]
  %v2221 = vld [vmem:[%s0 + $0x13c] sm:$0xf]
  %v2222 = vld [vmem:[%s0 + $0x140] sm:$0xf]
  %v2223 = vld [vmem:[%s0 + $0x144] sm:$0xf]
  %v2224 = vld [vmem:[%s0 + $0x148] sm:$0xf]
  %v2225 = vld [vmem:[%s0 + $0x14c] sm:$0xf]
  %v2226 = vld [vmem:[%s0 + $0x150] sm:$0xf]
  %v2227 = vld [vmem:[%s0 + $0x154] sm:$0xf]
  %v2228 = vld [vmem:[%s0 + $0x158] sm:$0xf]
  %v2229 = vld [vmem:[%s0 + $0x15c] sm:$0xf]
  %v2230 = vld [vmem:[%s1 + $0x70] sm:$0x1]
  %v2231 = vpack.c.bf16 %v2090, %v2087
  %v2232 = vpack.c.bf16 %v2098, %v2095
  %v2241 = vunpack.c.l.b16 %v2222
  %v2242 = vunpack.c.l.b16 %v2223
  %v2243 = vunpack.c.l.b16 %v2224
  %v2244 = vunpack.c.l.b16 %v2225
  %v2245 = vunpack.c.l.b16 %v2226
  %v2246 = vunpack.c.l.b16 %v2227
  %v2247 = vunpack.c.l.b16 %v2228
  %v2248 = vunpack.c.l.b16 %v2229
  %v2249 = vpack.c.b16 %v2242, %v2241
  %v2250 = vpack.c.b16 %v2244, %v2243
  %v2251 = vpack.c.b16 %v2246, %v2245
  %v2252 = vpack.c.b16 %v2248, %v2247
  %vm2257 = vcmask 523264
  %v2259 = vsel %vm2257, %v2231, 0
  %v2262 = vsel %vm2257, %v2232, 0
  %2264 = vmatprep.subr.bf16.mxu0 0
  %2265 = vmatpush1.bf16.msra.mxu0 0
  %2266 = vmatprep.subr.bf16.mxu0 0
  %2267 = vmatpush1.bf16.msra.mxu0 0
  %2268 = vmatprep.subr.bf16.mxu0 0
  %2269 = vmatpush1.bf16.msra.mxu0 0
  %2270 = vmatprep.subr.bf16.mxu0 0
  %2271 = vmatpush1.bf16.msra.mxu0 0
  %2272 = vmatprep.subr.bf16.mxu0 0
  %2273 = vmatpush1.bf16.msra.mxu0 %v2252
  %2274 = vmatprep.subr.bf16.mxu0 0
  %2275 = vmatpush1.bf16.msra.mxu0 %v2251
  %2276 = vmatprep.subr.bf16.mxu0 0
  %2277 = vmatpush1.bf16.msra.mxu0 %v2250
  %2278 = vmatprep.subr.bf16.mxu0 0
  %2279 = vmatpush1.bf16.msra.mxu0 %v2249
  %2280 = vmatprep.subr.bf16.mxu0 0
  %2281 = vmatpush2.bf16.msra.mxu0 0
  %2282 = vmatprep.subr.bf16.mxu0 0
  %2283 = vmatpush2.bf16.msra.mxu0 0
  %2284 = vmatprep.subr.bf16.mxu0 0
  %2285 = vmatpush2.bf16.msra.mxu0 0
  %2286 = vmatprep.subr.bf16.mxu0 0
  %2287 = vmatpush2.bf16.msra.mxu0 0
  %2288 = vmatprep.subr.bf16.mxu0 0
  %2289 = vmatpush2.bf16.msra.mxu0 0
  %2290 = vmatprep.subr.bf16.mxu0 0
  %2291 = vmatpush2.bf16.msra.mxu0 0
  %2292 = vmatprep.subr.bf16.mxu0 0
  %2293 = vmatpush2.bf16.msra.mxu0 0
  %2294 = vmatprep.subr.bf16.mxu0 0
  %2295 = vmatpush2.bf16.msra.mxu0 0
  %2296 = vmatprep.mubr.bf16.mxu0 0
  %2297 = vmatmul.mubr.bf16.gmra.mxu0 %v2259
  %v2298 = vpop.f32.mrf.mxu0
  %v2299 = vadd.f32 0.0, %v2298
  %v2300 = vpop.f32.mrf.mxu0
  %v2301 = vpop.f32.mrf.mxu0
  %v2302 = vadd.f32 0.0, %v2301
  %v2303 = vpop.f32.mrf.mxu0
  %2304 = vmatprep.mubr.bf16.mxu0 0
  %2305 = vmatmul.mubr.bf16.gmra.mxu0 %v2262
  %v2306 = vpop.f32.mrf.mxu0
  %v2307 = vadd.f32 0.0, %v2306
  %v2308 = vpop.f32.mrf.mxu0
  %v2309 = vpop.f32.mrf.mxu0
  %v2310 = vadd.f32 0.0, %v2309
  %v2311 = vpop.f32.mrf.mxu0
  %2312 = vdwg.mxu0
  %v2321 = vunpack.c.l.b16 %v2214
  %v2322 = vunpack.c.l.b16 %v2215
  %v2323 = vunpack.c.l.b16 %v2216
  %v2324 = vunpack.c.l.b16 %v2217
  %v2325 = vunpack.c.l.b16 %v2218
  %v2326 = vunpack.c.l.b16 %v2219
  %v2327 = vunpack.c.l.b16 %v2220
  %v2328 = vunpack.c.l.b16 %v2221
  %v2329 = vpack.c.b16 %v2322, %v2321
  %v2330 = vpack.c.b16 %v2324, %v2323
  %v2331 = vpack.c.b16 %v2326, %v2325
  %v2332 = vpack.c.b16 %v2328, %v2327
  %v2338 = vsel %vm2257, %v2134, 0
  %v2341 = vsel %vm2257, %v2135, 0
  %2343 = vmatprep.subr.bf16.mxu0 0
  %2344 = vmatpush1.bf16.msra.mxu0 0
  %2345 = vmatprep.subr.bf16.mxu0 0
  %2346 = vmatpush1.bf16.msra.mxu0 0
  %2347 = vmatprep.subr.bf16.mxu0 0
  %2348 = vmatpush1.bf16.msra.mxu0 0
  %2349 = vmatprep.subr.bf16.mxu0 0
  %2350 = vmatpush1.bf16.msra.mxu0 0
  %2351 = vmatprep.subr.bf16.mxu0 0
  %2352 = vmatpush1.bf16.msra.mxu0 %v2332
  %2353 = vmatprep.subr.bf16.mxu0 0
  %2354 = vmatpush1.bf16.msra.mxu0 %v2331
  %2355 = vmatprep.subr.bf16.mxu0 0
  %2356 = vmatpush1.bf16.msra.mxu0 %v2330
  %2357 = vmatprep.subr.bf16.mxu0 0
  %2358 = vmatpush1.bf16.msra.mxu0 %v2329
  %2359 = vmatprep.subr.bf16.mxu0 0
  %2360 = vmatpush2.bf16.msra.mxu0 0
  %2361 = vmatprep.subr.bf16.mxu0 0
  %2362 = vmatpush2.bf16.msra.mxu0 0
  %2363 = vmatprep.subr.bf16.mxu0 0
  %2364 = vmatpush2.bf16.msra.mxu0 0
  %2365 = vmatprep.subr.bf16.mxu0 0
  %2366 = vmatpush2.bf16.msra.mxu0 0
  %2367 = vmatprep.subr.bf16.mxu0 0
  %2368 = vmatpush2.bf16.msra.mxu0 0
  %2369 = vmatprep.subr.bf16.mxu0 0
  %2370 = vmatpush2.bf16.msra.mxu0 0
  %2371 = vmatprep.subr.bf16.mxu0 0
  %2372 = vmatpush2.bf16.msra.mxu0 0
  %2373 = vmatprep.subr.bf16.mxu0 0
  %2374 = vmatpush2.bf16.msra.mxu0 0
  %2375 = vmatprep.mubr.bf16.mxu0 0
  %2376 = vmatmul.mubr.bf16.gmra.mxu0 %v2338
  %v2377 = vpop.f32.mrf.mxu0
  %v2378 = vadd.f32 %v2299, %v2377
  %v2379 = vpop.f32.mrf.mxu0
  %v2380 = vpop.f32.mrf.mxu0
  %v2381 = vadd.f32 %v2302, %v2380
  %v2382 = vpop.f32.mrf.mxu0
  %2383 = vmatprep.mubr.bf16.mxu0 0
  %2384 = vmatmul.mubr.bf16.gmra.mxu0 %v2341
  %v2385 = vpop.f32.mrf.mxu0
  %v2386 = vadd.f32 %v2307, %v2385
  %v2387 = vpop.f32.mrf.mxu0
  %v2388 = vpop.f32.mrf.mxu0
  %v2389 = vadd.f32 %v2310, %v2388
  %v2390 = vpop.f32.mrf.mxu0
  %2391 = vdwg.mxu0
  %v2392 = vlaneseq
  %v2393 = vshrl.u32 %v2392, 7
  %v2394 = vsub.s32 0, %v2393
  %v2395 = vrot.slane %v2230, %v2394
  %v2396 = vadd.f32 %v2378, %v2395
  %v2397 = vadd.f32 %v2381, %v2395
  %v2398 = vadd.f32 %v2386, %v2395
  %v2399 = vadd.f32 %v2389, %v2395
  %v2400 = vmax.f32 %v2396, 0.0
  %v2401 = vmax.f32 %v2397, 0.0
  %v2402 = vmax.f32 %v2398, 0.0
  %v2403 = vmax.f32 %v2399, 0.0
  %v2404 = vsub.f32 0.0, %v2396
  %v2405 = vsub.f32 0.0, %v2397
  %v2406 = vsub.f32 0.0, %v2398
  %v2407 = vsub.f32 0.0, %v2399
  %v2408 = vmul.f32 %v2404, 1.442695
  %v2409 = vpow.pop %v2408
  %v2410 = vmul.f32 %v2405, 1.442695
  %v2411 = vpow.pop %v2410
  %v2412 = vmul.f32 %v2406, 1.442695
  %v2413 = vpow.pop %v2412
  %v2414 = vmul.f32 %v2407, 1.442695
  %v2415 = vpow.pop %v2414
  %v2416 = vadd.f32 %v2409, 1.0
  %v2417 = vadd.f32 %v2411, 1.0
  %v2418 = vadd.f32 %v2413, 1.0
  %v2419 = vadd.f32 %v2415, 1.0
  %v2420 = vrcp.pop %v2416
  %v2421 = vmul.f32 1.0, %v2420
  %v2422 = vrcp.pop %v2417
  %v2423 = vmul.f32 1.0, %v2422
  %v2424 = vrcp.pop %v2418
  %v2425 = vmul.f32 1.0, %v2424
  %v2426 = vrcp.pop %v2419
  %v2427 = vmul.f32 1.0, %v2426
  %2429 = vset.pattern.permute.xlu0 32
  %2430 = vperm.xlu0 %2429, %v2421
  %v2431 = vpop.permute.xlu0 %2430
  %2434 = vset.pattern.permute.xlu0 32
  %2435 = vperm.xlu0 %2434, %v2423
  %v2436 = vpop.permute.xlu0 %2435
  %2439 = vset.pattern.permute.xlu0 32
  %2440 = vperm.xlu0 %2439, %v2425
  %v2441 = vpop.permute.xlu0 %2440
  %2444 = vset.pattern.permute.xlu0 32
  %2445 = vperm.xlu0 %2444, %v2427
  %v2446 = vpop.permute.xlu0 %2445
  %v2448 = vmul.f32 %v2400, %v2431
  %v2449 = vmul.f32 %v2401, %v2436
  %v2450 = vmul.f32 %v2402, %v2441
  %v2451 = vmul.f32 %v2403, %v2446
  %v2452 = vld [vmem:[%s0 + $0x180] sm:$0xf]
  %v2453 = vld [vmem:[%s0 + $0x184] sm:$0xf]
  %v2454 = vld [vmem:[%s0 + $0x188] sm:$0xf]
  %v2455 = vld [vmem:[%s0 + $0x18c] sm:$0xf]
  %v2456 = vld [vmem:[%s0 + $0x190] sm:$0xf]
  %v2457 = vld [vmem:[%s0 + $0x194] sm:$0xf]
  %v2458 = vld [vmem:[%s0 + $0x198] sm:$0xf]
  %v2459 = vld [vmem:[%s0 + $0x19c] sm:$0xf]
  %v2460 = vld [vmem:[%s0 + $0x1a0] sm:$0xf]
  %v2461 = vld [vmem:[%s0 + $0x1a4] sm:$0xf]
  %v2462 = vld [vmem:[%s0 + $0x1a8] sm:$0xf]
  %v2463 = vld [vmem:[%s0 + $0x1ac] sm:$0xf]
  %v2464 = vld [vmem:[%s0 + $0x1b0] sm:$0xf]
  %v2465 = vld [vmem:[%s0 + $0x1b4] sm:$0xf]
  %v2466 = vld [vmem:[%s0 + $0x1b8] sm:$0xf]
  %v2467 = vld [vmem:[%s0 + $0x1bc] sm:$0xf]
  %v2468 = vld [vmem:[%s1 + $0x78] sm:$0x1]
  %v2469 = vpack.c.bf16 %v2188, %v2185
  %v2470 = vpack.c.bf16 %v2196, %v2193
  %v2471 = vpack.c.bf16 %v2204, %v2201
  %v2472 = vpack.c.bf16 %v2209, %v2209
  %v2481 = vunpack.c.l.b16 %v2460
  %v2482 = vunpack.c.l.b16 %v2461
  %v2483 = vunpack.c.l.b16 %v2462
  %v2484 = vunpack.c.l.b16 %v2463
  %v2485 = vunpack.c.l.b16 %v2464
  %v2486 = vunpack.c.l.b16 %v2465
  %v2487 = vunpack.c.l.b16 %v2466
  %v2488 = vunpack.c.l.b16 %v2467
  %v2489 = vpack.c.b16 %v2482, %v2481
  %v2490 = vpack.c.b16 %v2484, %v2483
  %v2491 = vpack.c.b16 %v2486, %v2485
  %v2492 = vpack.c.b16 %v2488, %v2487
  %v2498 = vsel %vm2257, %v2469, 0
  %v2501 = vsel %vm2257, %v2470, 0
  %v2504 = vsel %vm2257, %v2471, 0
  %v2507 = vsel %vm2257, %v2472, 0
  %2509 = vmatprep.subr.bf16.mxu0 0
  %2510 = vmatpush1.bf16.msra.mxu0 0
  %2511 = vmatprep.subr.bf16.mxu0 0
  %2512 = vmatpush1.bf16.msra.mxu0 0
  %2513 = vmatprep.subr.bf16.mxu0 0
  %2514 = vmatpush1.bf16.msra.mxu0 0
  %2515 = vmatprep.subr.bf16.mxu0 0
  %2516 = vmatpush1.bf16.msra.mxu0 0
  %2517 = vmatprep.subr.bf16.mxu0 0
  %2518 = vmatpush1.bf16.msra.mxu0 %v2492
  %2519 = vmatprep.subr.bf16.mxu0 0
  %2520 = vmatpush1.bf16.msra.mxu0 %v2491
  %2521 = vmatprep.subr.bf16.mxu0 0
  %2522 = vmatpush1.bf16.msra.mxu0 %v2490
  %2523 = vmatprep.subr.bf16.mxu0 0
  %2524 = vmatpush1.bf16.msra.mxu0 %v2489
  %2525 = vmatprep.subr.bf16.mxu0 0
  %2526 = vmatpush2.bf16.msra.mxu0 0
  %2527 = vmatprep.subr.bf16.mxu0 0
  %2528 = vmatpush2.bf16.msra.mxu0 0
  %2529 = vmatprep.subr.bf16.mxu0 0
  %2530 = vmatpush2.bf16.msra.mxu0 0
  %2531 = vmatprep.subr.bf16.mxu0 0
  %2532 = vmatpush2.bf16.msra.mxu0 0
  %2533 = vmatprep.subr.bf16.mxu0 0
  %2534 = vmatpush2.bf16.msra.mxu0 0
  %2535 = vmatprep.subr.bf16.mxu0 0
  %2536 = vmatpush2.bf16.msra.mxu0 0
  %2537 = vmatprep.subr.bf16.mxu0 0
  %2538 = vmatpush2.bf16.msra.mxu0 0
  %2539 = vmatprep.subr.bf16.mxu0 0
  %2540 = vmatpush2.bf16.msra.mxu0 0
  %2541 = vmatprep.mubr.bf16.mxu0 0
  %2542 = vmatmul.mubr.bf16.gmra.mxu0 %v2498
  %v2543 = vpop.f32.mrf.mxu0
  %v2544 = vadd.f32 0.0, %v2543
  %v2545 = vpop.f32.mrf.mxu0
  %v2546 = vpop.f32.mrf.mxu0
  %v2547 = vadd.f32 0.0, %v2546
  %v2548 = vpop.f32.mrf.mxu0
  %2549 = vmatprep.mubr.bf16.mxu0 0
  %2550 = vmatmul.mubr.bf16.gmra.mxu0 %v2501
  %v2551 = vpop.f32.mrf.mxu0
  %v2552 = vadd.f32 0.0, %v2551
  %v2553 = vpop.f32.mrf.mxu0
  %v2554 = vpop.f32.mrf.mxu0
  %v2555 = vadd.f32 0.0, %v2554
  %v2556 = vpop.f32.mrf.mxu0
  %2557 = vmatprep.mubr.bf16.mxu0 0
  %2558 = vmatmul.mubr.bf16.gmra.mxu0 %v2504
  %v2559 = vpop.f32.mrf.mxu0
  %v2560 = vadd.f32 0.0, %v2559
  %v2561 = vpop.f32.mrf.mxu0
  %v2562 = vpop.f32.mrf.mxu0
  %v2563 = vadd.f32 0.0, %v2562
  %v2564 = vpop.f32.mrf.mxu0
  %2565 = vmatprep.mubr.bf16.mxu0 0
  %2566 = vmatmul.mubr.bf16.gmra.mxu0 %v2507
  %v2567 = vpop.f32.mrf.mxu0
  %v2568 = vadd.f32 0.0, %v2567
  %v2569 = vpop.f32.mrf.mxu0
  %v2570 = vpop.f32.mrf.mxu0
  %v2571 = vpop.f32.mrf.mxu0
  %2572 = vdwg.mxu0
  %v2581 = vunpack.c.l.b16 %v2452
  %v2582 = vunpack.c.l.b16 %v2453
  %v2583 = vunpack.c.l.b16 %v2454
  %v2584 = vunpack.c.l.b16 %v2455
  %v2585 = vunpack.c.l.b16 %v2456
  %v2586 = vunpack.c.l.b16 %v2457
  %v2587 = vunpack.c.l.b16 %v2458
  %v2588 = vunpack.c.l.b16 %v2459
  %v2589 = vpack.c.b16 %v2582, %v2581
  %v2590 = vpack.c.b16 %v2584, %v2583
  %v2591 = vpack.c.b16 %v2586, %v2585
  %v2592 = vpack.c.b16 %v2588, %v2587
  %v2598 = vsel %vm2257, %v2036, 0
  %v2601 = vsel %vm2257, %v2037, 0
  %v2604 = vsel %vm2257, %v2038, 0
  %v2606 = vsel %vm2257, %v2039, 0
  %2608 = vmatprep.subr.bf16.mxu0 0
  %2609 = vmatpush1.bf16.msra.mxu0 0
  %2610 = vmatprep.subr.bf16.mxu0 0
  %2611 = vmatpush1.bf16.msra.mxu0 0
  %2612 = vmatprep.subr.bf16.mxu0 0
  %2613 = vmatpush1.bf16.msra.mxu0 0
  %2614 = vmatprep.subr.bf16.mxu0 0
  %2615 = vmatpush1.bf16.msra.mxu0 0
  %2616 = vmatprep.subr.bf16.mxu0 0
  %2617 = vmatpush1.bf16.msra.mxu0 %v2592
  %2618 = vmatprep.subr.bf16.mxu0 0
  %2619 = vmatpush1.bf16.msra.mxu0 %v2591
  %2620 = vmatprep.subr.bf16.mxu0 0
  %2621 = vmatpush1.bf16.msra.mxu0 %v2590
  %2622 = vmatprep.subr.bf16.mxu0 0
  %2623 = vmatpush1.bf16.msra.mxu0 %v2589
  %2624 = vmatprep.subr.bf16.mxu0 0
  %2625 = vmatpush2.bf16.msra.mxu0 0
  %2626 = vmatprep.subr.bf16.mxu0 0
  %2627 = vmatpush2.bf16.msra.mxu0 0
  %2628 = vmatprep.subr.bf16.mxu0 0
  %2629 = vmatpush2.bf16.msra.mxu0 0
  %2630 = vmatprep.subr.bf16.mxu0 0
  %2631 = vmatpush2.bf16.msra.mxu0 0
  %2632 = vmatprep.subr.bf16.mxu0 0
  %2633 = vmatpush2.bf16.msra.mxu0 0
  %2634 = vmatprep.subr.bf16.mxu0 0
  %2635 = vmatpush2.bf16.msra.mxu0 0
  %2636 = vmatprep.subr.bf16.mxu0 0
  %2637 = vmatpush2.bf16.msra.mxu0 0
  %2638 = vmatprep.subr.bf16.mxu0 0
  %2639 = vmatpush2.bf16.msra.mxu0 0
  %2640 = vmatprep.mubr.bf16.mxu0 0
  %2641 = vmatmul.mubr.bf16.gmra.mxu0 %v2598
  %v2642 = vpop.f32.mrf.mxu0
  %v2643 = vadd.f32 %v2544, %v2642
  %v2644 = vpop.f32.mrf.mxu0
  %v2645 = vpop.f32.mrf.mxu0
  %v2646 = vadd.f32 %v2547, %v2645
  %v2647 = vpop.f32.mrf.mxu0
  %2648 = vmatprep.mubr.bf16.mxu0 0
  %2649 = vmatmul.mubr.bf16.gmra.mxu0 %v2601
  %v2650 = vpop.f32.mrf.mxu0
  %v2651 = vadd.f32 %v2552, %v2650
  %v2652 = vpop.f32.mrf.mxu0
  %v2653 = vpop.f32.mrf.mxu0
  %v2654 = vadd.f32 %v2555, %v2653
  %v2655 = vpop.f32.mrf.mxu0
  %2656 = vmatprep.mubr.bf16.mxu0 0
  %2657 = vmatmul.mubr.bf16.gmra.mxu0 %v2604
  %v2658 = vpop.f32.mrf.mxu0
  %v2659 = vadd.f32 %v2560, %v2658
  %v2660 = vpop.f32.mrf.mxu0
  %v2661 = vpop.f32.mrf.mxu0
  %v2662 = vadd.f32 %v2563, %v2661
  %v2663 = vpop.f32.mrf.mxu0
  %2664 = vmatprep.mubr.bf16.mxu0 0
  %2665 = vmatmul.mubr.bf16.gmra.mxu0 %v2606
  %v2666 = vpop.f32.mrf.mxu0
  %v2667 = vadd.f32 %v2568, %v2666
  %v2668 = vpop.f32.mrf.mxu0
  %v2669 = vpop.f32.mrf.mxu0
  %v2670 = vpop.f32.mrf.mxu0
  %2671 = vdwg.mxu0
  %v2672 = vlaneseq
  %v2673 = vshrl.u32 %v2672, 7
  %v2674 = vsub.s32 0, %v2673
  %v2675 = vrot.slane %v2468, %v2674
  %v2676 = vadd.f32 %v2643, %v2675
  %v2677 = vadd.f32 %v2646, %v2675
  %v2678 = vadd.f32 %v2651, %v2675
  %v2679 = vadd.f32 %v2654, %v2675
  %v2680 = vadd.f32 %v2659, %v2675
  %v2681 = vadd.f32 %v2662, %v2675
  %v2682 = vadd.f32 %v2667, %v2675
  %v2683 = vmax.f32 %v2676, 0.0
  %v2684 = vmax.f32 %v2677, 0.0
  %v2685 = vmax.f32 %v2678, 0.0
  %v2686 = vmax.f32 %v2679, 0.0
  %v2687 = vmax.f32 %v2680, 0.0
  %v2688 = vmax.f32 %v2681, 0.0
  %v2689 = vmax.f32 %v2682, 0.0
  %v2690 = vsub.f32 0.0, %v2676
  %v2691 = vsub.f32 0.0, %v2677
  %v2692 = vsub.f32 0.0, %v2678
  %v2693 = vsub.f32 0.0, %v2679
  %v2694 = vsub.f32 0.0, %v2680
  %v2695 = vsub.f32 0.0, %v2681
  %v2696 = vsub.f32 0.0, %v2682
  %v2697 = vmul.f32 %v2690, 1.442695
  %v2698 = vpow.pop %v2697
  %v2699 = vmul.f32 %v2691, 1.442695
  %v2700 = vpow.pop %v2699
  %v2701 = vmul.f32 %v2692, 1.442695
  %v2702 = vpow.pop %v2701
  %v2703 = vmul.f32 %v2693, 1.442695
  %v2704 = vpow.pop %v2703
  %v2705 = vmul.f32 %v2694, 1.442695
  %v2706 = vpow.pop %v2705
  %v2707 = vmul.f32 %v2695, 1.442695
  %v2708 = vpow.pop %v2707
  %v2709 = vmul.f32 %v2696, 1.442695
  %v2710 = vpow.pop %v2709
  %v2711 = vadd.f32 %v2698, 1.0
  %v2712 = vadd.f32 %v2700, 1.0
  %v2713 = vadd.f32 %v2702, 1.0
  %v2714 = vadd.f32 %v2704, 1.0
  %v2715 = vadd.f32 %v2706, 1.0
  %v2716 = vadd.f32 %v2708, 1.0
  %v2717 = vadd.f32 %v2710, 1.0
  %v2718 = vrcp.pop %v2711
  %v2719 = vmul.f32 1.0, %v2718
  %v2720 = vrcp.pop %v2712
  %v2721 = vmul.f32 1.0, %v2720
  %v2722 = vrcp.pop %v2713
  %v2723 = vmul.f32 1.0, %v2722
  %v2724 = vrcp.pop %v2714
  %v2725 = vmul.f32 1.0, %v2724
  %v2726 = vrcp.pop %v2715
  %v2727 = vmul.f32 1.0, %v2726
  %v2728 = vrcp.pop %v2716
  %v2729 = vmul.f32 1.0, %v2728
  %v2730 = vrcp.pop %v2717
  %v2731 = vmul.f32 1.0, %v2730
  %2733 = vset.pattern.permute.xlu0 32
  %2734 = vperm.xlu0 %2733, %v2719
  %v2735 = vpop.permute.xlu0 %2734
  %2738 = vset.pattern.permute.xlu0 32
  %2739 = vperm.xlu0 %2738, %v2721
  %v2740 = vpop.permute.xlu0 %2739
  %2743 = vset.pattern.permute.xlu0 32
  %2744 = vperm.xlu0 %2743, %v2723
  %v2745 = vpop.permute.xlu0 %2744
  %2748 = vset.pattern.permute.xlu0 32
  %2749 = vperm.xlu0 %2748, %v2725
  %v2750 = vpop.permute.xlu0 %2749
  %2753 = vset.pattern.permute.xlu0 32
  %2754 = vperm.xlu0 %2753, %v2727
  %v2755 = vpop.permute.xlu0 %2754
  %2758 = vset.pattern.permute.xlu0 32
  %2759 = vperm.xlu0 %2758, %v2729
  %v2760 = vpop.permute.xlu0 %2759
  %2763 = vset.pattern.permute.xlu0 32
  %2764 = vperm.xlu0 %2763, %v2731
  %v2765 = vpop.permute.xlu0 %2764
  %v2767 = vmul.f32 %v2683, %v2735
  %v2768 = vmul.f32 %v2684, %v2740
  %v2769 = vmul.f32 %v2685, %v2745
  %v2770 = vmul.f32 %v2686, %v2750
  %v2771 = vmul.f32 %v2687, %v2755
  %v2772 = vmul.f32 %v2688, %v2760
  %v2773 = vmul.f32 %v2689, %v2765
  %v2774 = vld [vmem:[%s0 + $0x30] sm:$0xf]
  %v2775 = vld [vmem:[%s0 + $0x34] sm:$0xf]
  %v2776 = vld [vmem:[%s0 + $0x38] sm:$0xf]
  %v2777 = vld [vmem:[%s0 + $0x3c] sm:$0xf]
  %v2778 = vld [vmem:[%s0 + $0x160] sm:$0xf]
  %v2779 = vld [vmem:[%s0 + $0x164] sm:$0xf]
  %v2780 = vld [vmem:[%s0 + $0x168] sm:$0xf]
  %v2781 = vld [vmem:[%s0 + $0x16c] sm:$0xf]
  %v2782 = vld [vmem:[%s0 + $0x170] sm:$0xf]
  %v2783 = vld [vmem:[%s0 + $0x174] sm:$0xf]
  %v2784 = vld [vmem:[%s0 + $0x178] sm:$0xf]
  %v2785 = vld [vmem:[%s0 + $0x17c] sm:$0xf]
  %v2786 = vld [vmem:[%s1 + $0x80] sm:$0x1]
  %v2787 = vld [vmem:[%s1 + $0x88] sm:$0x1]
  %v2788 = vld [vmem:[%s1 + $0x90] sm:$0x1]
  %v2793 = vunpack.c.l.b16 %v2774
  %v2794 = vunpack.c.l.b16 %v2775
  %v2795 = vunpack.c.l.b16 %v2776
  %v2796 = vunpack.c.l.b16 %v2777
  %v2797 = vpack.c.b16 %v2794, %v2793
  %v2798 = vpack.c.b16 %v2796, %v2795
  %v2800 = vsel %vm220, %v2797, 0
  %v2803 = vsel %vm220, %v2798, 0
  %2805 = vmatprep.subr.mxu0 0.0
  %2806 = vmatpush1.msra.mxu0 0.0
  %2807 = vmatprep.subr.mxu0 0.0
  %2808 = vmatpush1.msra.mxu0 0.0
  %2809 = vmatprep.subr.mxu0 0.0
  %2810 = vmatpush1.msra.mxu0 0.0
  %2811 = vmatprep.subr.mxu0 0.0
  %2812 = vmatpush1.msra.mxu0 0.0
  %2813 = vmatprep.subr.mxu0 0.0
  %2814 = vmatpush1.msra.mxu0 0.0
  %2815 = vmatprep.subr.mxu0 0.0
  %2816 = vmatpush1.msra.mxu0 0.0
  %2817 = vmatprep.subr.mxu0 0.0
  %2818 = vmatpush1.msra.mxu0 0.0
  %2819 = vmatprep.subr.mxu0 0.0
  %2820 = vmatpush1.msra.mxu0 0.0
  %2821 = vmatprep.subr.mxu0 0.0
  %2822 = vmatpush1.msra.mxu0 0.0
  %2823 = vmatprep.subr.mxu0 0.0
  %2824 = vmatpush1.msra.mxu0 0.0
  %2825 = vmatprep.subr.mxu0 0.0
  %2826 = vmatpush1.msra.mxu0 0.0
  %2827 = vmatprep.subr.mxu0 0.0
  %2828 = vmatpush1.msra.mxu0 0.0
  %2829 = vmatprep.subr.mxu0 0.0
  %2830 = vmatpush1.msra.mxu0 %v2451
  %2831 = vmatprep.subr.mxu0 0.0
  %2832 = vmatpush1.msra.mxu0 %v2450
  %2833 = vmatprep.subr.mxu0 0.0
  %2834 = vmatpush1.msra.mxu0 %v2449
  %2835 = vmatprep.subr.mxu0 0.0
  %2836 = vmatpush1.msra.mxu0 %v2448
  %2837 = vmatprep.subr.mxu0 0.0
  %2838 = vmatpush2.msra.mxu0 0.0
  %2839 = vmatprep.subr.mxu0 0.0
  %2840 = vmatpush2.msra.mxu0 0.0
  %2841 = vmatprep.subr.mxu0 0.0
  %2842 = vmatpush2.msra.mxu0 0.0
  %2843 = vmatprep.subr.mxu0 0.0
  %2844 = vmatpush2.msra.mxu0 0.0
  %2845 = vmatprep.subr.mxu0 0.0
  %2846 = vmatpush2.msra.mxu0 0.0
  %2847 = vmatprep.subr.mxu0 0.0
  %2848 = vmatpush2.msra.mxu0 0.0
  %2849 = vmatprep.subr.mxu0 0.0
  %2850 = vmatpush2.msra.mxu0 0.0
  %2851 = vmatprep.subr.mxu0 0.0
  %2852 = vmatpush2.msra.mxu0 0.0
  %2853 = vmatprep.subr.mxu0 0.0
  %2854 = vmatpush2.msra.mxu0 0.0
  %2855 = vmatprep.subr.mxu0 0.0
  %2856 = vmatpush2.msra.mxu0 0.0
  %2857 = vmatprep.subr.mxu0 0.0
  %2858 = vmatpush2.msra.mxu0 0.0
  %2859 = vmatprep.subr.mxu0 0.0
  %2860 = vmatpush2.msra.mxu0 0.0
  %2861 = vmatprep.subr.mxu0 0.0
  %2862 = vmatpush2.msra.mxu0 0.0
  %2863 = vmatprep.subr.mxu0 0.0
  %2864 = vmatpush2.msra.mxu0 0.0
  %2865 = vmatprep.subr.mxu0 0.0
  %2866 = vmatpush2.msra.mxu0 0.0
  %2867 = vmatprep.subr.mxu0 0.0
  %2868 = vmatpush2.msra.mxu0 0.0
  %2869 = vmatprep.mubr.bf16.mxu0 0
  %2870 = vmatmul.mubr.bf16.gmra.mxu0 %v2800
  %v2871 = vpop.f32.mrf.mxu0
  %v2872 = vadd.f32 0.0, %v2871
  %v2873 = vpop.f32.mrf.mxu0
  %v2874 = vpop.f32.mrf.mxu0
  %v2875 = vadd.f32 0.0, %v2874
  %v2876 = vpop.f32.mrf.mxu0
  %2877 = vmatprep.mubr.bf16.mxu0 0
  %2878 = vmatmul.mubr.bf16.gmra.mxu0 %v2803
  %v2879 = vpop.f32.mrf.mxu0
  %v2880 = vadd.f32 0.0, %v2879
  %v2881 = vpop.f32.mrf.mxu0
  %v2882 = vpop.f32.mrf.mxu0
  %v2883 = vadd.f32 0.0, %v2882
  %v2884 = vpop.f32.mrf.mxu0
  %2885 = vdwg.mxu0
  %v2886 = vpack.c.bf16 %v2449, %v2448
  %v2887 = vpack.c.bf16 %v2451, %v2450
  %v2888 = vsub.f32 %v2448, %v2872
  %v2889 = vsub.f32 %v2449, %v2875
  %v2890 = vsub.f32 %v2450, %v2880
  %v2891 = vsub.f32 %v2451, %v2883
  %v2892 = vpack.c.bf16 %v2889, %v2888
  %v2893 = vpack.c.bf16 %v2891, %v2890
  %v2898 = vunpack.c.l.b16 %v2782
  %v2899 = vunpack.c.l.b16 %v2783
  %v2900 = vunpack.c.l.b16 %v2784
  %v2901 = vunpack.c.l.b16 %v2785
  %v2902 = vpack.c.b16 %v2899, %v2898
  %v2903 = vpack.c.b16 %v2901, %v2900
  %v2907 = vsel %vm220, %v2892, 0
  %v2910 = vsel %vm220, %v2893, 0
  %2912 = vmatprep.subr.bf16.mxu0 0
  %2913 = vmatpush1.bf16.msra.mxu0 0
  %2914 = vmatprep.subr.bf16.mxu0 0
  %2915 = vmatpush1.bf16.msra.mxu0 0
  %2916 = vmatprep.subr.bf16.mxu0 0
  %2917 = vmatpush1.bf16.msra.mxu0 0
  %2918 = vmatprep.subr.bf16.mxu0 0
  %2919 = vmatpush1.bf16.msra.mxu0 0
  %2920 = vmatprep.subr.bf16.mxu0 0
  %2921 = vmatpush1.bf16.msra.mxu0 0
  %2922 = vmatprep.subr.bf16.mxu0 0
  %2923 = vmatpush1.bf16.msra.mxu0 0
  %2924 = vmatprep.subr.bf16.mxu0 0
  %2925 = vmatpush1.bf16.msra.mxu0 %v2903
  %2926 = vmatprep.subr.bf16.mxu0 0
  %2927 = vmatpush1.bf16.msra.mxu0 %v2902
  %2928 = vmatprep.subr.bf16.mxu0 0
  %2929 = vmatpush2.bf16.msra.mxu0 0
  %2930 = vmatprep.subr.bf16.mxu0 0
  %2931 = vmatpush2.bf16.msra.mxu0 0
  %2932 = vmatprep.subr.bf16.mxu0 0
  %2933 = vmatpush2.bf16.msra.mxu0 0
  %2934 = vmatprep.subr.bf16.mxu0 0
  %2935 = vmatpush2.bf16.msra.mxu0 0
  %2936 = vmatprep.subr.bf16.mxu0 0
  %2937 = vmatpush2.bf16.msra.mxu0 0
  %2938 = vmatprep.subr.bf16.mxu0 0
  %2939 = vmatpush2.bf16.msra.mxu0 0
  %2940 = vmatprep.subr.bf16.mxu0 0
  %2941 = vmatpush2.bf16.msra.mxu0 0
  %2942 = vmatprep.subr.bf16.mxu0 0
  %2943 = vmatpush2.bf16.msra.mxu0 0
  %2944 = vmatprep.mubr.bf16.mxu0 0
  %2945 = vmatmul.mubr.bf16.gmra.mxu0 %v2907
  %v2946 = vpop.f32.mrf.mxu0
  %v2947 = vadd.f32 0.0, %v2946
  %v2948 = vpop.f32.mrf.mxu0
  %v2949 = vpop.f32.mrf.mxu0
  %v2950 = vadd.f32 0.0, %v2949
  %v2951 = vpop.f32.mrf.mxu0
  %2952 = vmatprep.mubr.bf16.mxu0 0
  %2953 = vmatmul.mubr.bf16.gmra.mxu0 %v2910
  %v2954 = vpop.f32.mrf.mxu0
  %v2955 = vadd.f32 0.0, %v2954
  %v2956 = vpop.f32.mrf.mxu0
  %v2957 = vpop.f32.mrf.mxu0
  %v2958 = vadd.f32 0.0, %v2957
  %v2959 = vpop.f32.mrf.mxu0
  %2960 = vdwg.mxu0
  %v2965 = vunpack.c.l.b16 %v2778
  %v2966 = vunpack.c.l.b16 %v2779
  %v2967 = vunpack.c.l.b16 %v2780
  %v2968 = vunpack.c.l.b16 %v2781
  %v2969 = vpack.c.b16 %v2966, %v2965
  %v2970 = vpack.c.b16 %v2968, %v2967
  %v2974 = vsel %vm220, %v2886, 0
  %v2977 = vsel %vm220, %v2887, 0
  %2979 = vmatprep.subr.bf16.mxu0 0
  %2980 = vmatpush1.bf16.msra.mxu0 0
  %2981 = vmatprep.subr.bf16.mxu0 0
  %2982 = vmatpush1.bf16.msra.mxu0 0
  %2983 = vmatprep.subr.bf16.mxu0 0
  %2984 = vmatpush1.bf16.msra.mxu0 0
  %2985 = vmatprep.subr.bf16.mxu0 0
  %2986 = vmatpush1.bf16.msra.mxu0 0
  %2987 = vmatprep.subr.bf16.mxu0 0
  %2988 = vmatpush1.bf16.msra.mxu0 0
  %2989 = vmatprep.subr.bf16.mxu0 0
  %2990 = vmatpush1.bf16.msra.mxu0 0
  %2991 = vmatprep.subr.bf16.mxu0 0
  %2992 = vmatpush1.bf16.msra.mxu0 %v2970
  %2993 = vmatprep.subr.bf16.mxu0 0
  %2994 = vmatpush1.bf16.msra.mxu0 %v2969
  %2995 = vmatprep.subr.bf16.mxu0 0
  %2996 = vmatpush2.bf16.msra.mxu0 0
  %2997 = vmatprep.subr.bf16.mxu0 0
  %2998 = vmatpush2.bf16.msra.mxu0 0
  %2999 = vmatprep.subr.bf16.mxu0 0
  %3000 = vmatpush2.bf16.msra.mxu0 0
  %3001 = vmatprep.subr.bf16.mxu0 0
  %3002 = vmatpush2.bf16.msra.mxu0 0
  %3003 = vmatprep.subr.bf16.mxu0 0
  %3004 = vmatpush2.bf16.msra.mxu0 0
  %3005 = vmatprep.subr.bf16.mxu0 0
  %3006 = vmatpush2.bf16.msra.mxu0 0
  %3007 = vmatprep.subr.bf16.mxu0 0
  %3008 = vmatpush2.bf16.msra.mxu0 0
  %3009 = vmatprep.subr.bf16.mxu0 0
  %3010 = vmatpush2.bf16.msra.mxu0 0
  %3011 = vmatprep.mubr.bf16.mxu0 0
  %3012 = vmatmul.mubr.bf16.gmra.mxu0 %v2974
  %v3013 = vpop.f32.mrf.mxu0
  %v3014 = vadd.f32 %v2947, %v3013
  %v3015 = vpop.f32.mrf.mxu0
  %v3016 = vpop.f32.mrf.mxu0
  %v3017 = vadd.f32 %v2950, %v3016
  %v3018 = vpop.f32.mrf.mxu0
  %3019 = vmatprep.mubr.bf16.mxu0 0
  %3020 = vmatmul.mubr.bf16.gmra.mxu0 %v2977
  %v3021 = vpop.f32.mrf.mxu0
  %v3022 = vadd.f32 %v2955, %v3021
  %v3023 = vpop.f32.mrf.mxu0
  %v3024 = vpop.f32.mrf.mxu0
  %v3025 = vadd.f32 %v2958, %v3024
  %v3026 = vpop.f32.mrf.mxu0
  %3027 = vdwg.mxu0
  %v3028 = vlaneseq
  %v3029 = vshrl.u32 %v3028, 7
  %v3030 = vsub.s32 0, %v3029
  %v3031 = vrot.slane %v2786, %v3030
  %v3032 = vadd.f32 %v3014, %v3031
  %v3033 = vadd.f32 %v3017, %v3031
  %v3034 = vadd.f32 %v3022, %v3031
  %v3035 = vadd.f32 %v3025, %v3031
  %v3036 = vsel %vm220, %v3032, 0.0
  %v3037 = vsel %vm220, %v3033, 0.0
  %v3038 = vadd.f32 %v3036, %v3037
  %v3039 = vsel %vm220, %v3034, 0.0
  %v3040 = vadd.f32 %v3038, %v3039
  %v3041 = vsel %vm220, %v3035, 0.0
  %v3042 = vadd.f32 %v3040, %v3041
  %v3043 = vrot.slane %v3042, 4
  %v3044 = vadd.f32 %v3042, %v3043
  %v3045 = vrot.slane %v3044, 2
  %v3046 = vadd.f32 %v3044, %v3045
  %v3047 = vrot.slane %v3046, 1
  %v3048 = vadd.f32 %v3046, %v3047
  %v3049 = vmul.f32 %v3048, %v234
  %v3050 = vsub.f32 %v3032, %v3049
  %v3051 = vsub.f32 %v3033, %v3049
  %v3052 = vsub.f32 %v3034, %v3049
  %v3053 = vsub.f32 %v3035, %v3049
  %v3054 = vmul.f32 %v3050, %v3050
  %v3055 = vmul.f32 %v3051, %v3051
  %v3056 = vmul.f32 %v3052, %v3052
  %v3057 = vmul.f32 %v3053, %v3053
  %v3058 = vsel %vm220, %v3054, 0.0
  %v3059 = vsel %vm220, %v3055, 0.0
  %v3060 = vadd.f32 %v3058, %v3059
  %v3061 = vsel %vm220, %v3056, 0.0
  %v3062 = vadd.f32 %v3060, %v3061
  %v3063 = vsel %vm220, %v3057, 0.0
  %v3064 = vadd.f32 %v3062, %v3063
  %v3065 = vrot.slane %v3064, 4
  %v3066 = vadd.f32 %v3064, %v3065
  %v3067 = vrot.slane %v3066, 2
  %v3068 = vadd.f32 %v3066, %v3067
  %v3069 = vrot.slane %v3068, 1
  %v3070 = vadd.f32 %v3068, %v3069
  %v3071 = vmul.f32 %v3070, %v234
  %v3072 = vadd.f32 %v3071, 1e-05
  %v3073 = vrsqrt.pop %v3072
  %v3074 = vmul.f32 %v3050, %v3073
  %v3075 = vmul.f32 %v3051, %v3073
  %v3076 = vmul.f32 %v3052, %v3073
  %v3077 = vmul.f32 %v3053, %v3073
  %v3078 = vlaneseq
  %v3079 = vshrl.u32 %v3078, 7
  %v3080 = vsub.s32 0, %v3079
  %v3081 = vrot.slane %v2787, %v3080
  %v3082 = vmul.f32 %v3074, %v3081
  %v3083 = vmul.f32 %v3075, %v3081
  %v3084 = vmul.f32 %v3076, %v3081
  %v3085 = vmul.f32 %v3077, %v3081
  %v3086 = vlaneseq
  %v3087 = vshrl.u32 %v3086, 7
  %v3088 = vsub.s32 0, %v3087
  %v3089 = vrot.slane %v2788, %v3088
  %v3090 = vadd.f32 %v3082, %v3089
  %v3091 = vadd.f32 %v3083, %v3089
  %v3092 = vadd.f32 %v3084, %v3089
  %v3093 = vadd.f32 %v3085, %v3089
  %v3094 = vmax.f32 %v3090, 0.0
  %v3095 = vmax.f32 %v3091, 0.0
  %v3096 = vmax.f32 %v3092, 0.0
  %v3097 = vmax.f32 %v3093, 0.0
  %v3098 = vld [vmem:[%s0 + $0x40] sm:$0xf]
  %v3099 = vld [vmem:[%s0 + $0x44] sm:$0xf]
  %v3100 = vld [vmem:[%s0 + $0x48] sm:$0xf]
  %v3101 = vld [vmem:[%s0 + $0x4c] sm:$0xf]
  %v3102 = vld [vmem:[%s0 + $0x50] sm:$0xf]
  %v3103 = vld [vmem:[%s0 + $0x54] sm:$0xf]
  %v3104 = vld [vmem:[%s0 + $0x58] sm:$0x3]
  %v3105 = vld [vmem:[%s0 + $0x1c0] sm:$0xf]
  %v3106 = vld [vmem:[%s0 + $0x1c4] sm:$0xf]
  %v3107 = vld [vmem:[%s0 + $0x1c8] sm:$0xf]
  %v3108 = vld [vmem:[%s0 + $0x1cc] sm:$0xf]
  %v3109 = vld [vmem:[%s0 + $0x1d0] sm:$0xf]
  %v3110 = vld [vmem:[%s0 + $0x1d4] sm:$0xf]
  %v3111 = vld [vmem:[%s0 + $0x1d8] sm:$0xf]
  %v3112 = vld [vmem:[%s0 + $0x1dc] sm:$0xf]
  %v3113 = vld [vmem:[%s1 + $0x98] sm:$0x1]
  %v3114 = vld [vmem:[%s1 + $0xa0] sm:$0x1]
  %v3115 = vld [vmem:[%s1 + $0xa8] sm:$0x1]
  %v3123 = vunpack.c.l.b16 %v3098
  %v3124 = vunpack.c.l.b16 %v3099
  %v3125 = vunpack.c.l.b16 %v3100
  %v3126 = vunpack.c.l.b16 %v3101
  %v3127 = vunpack.c.l.b16 %v3102
  %v3128 = vunpack.c.l.b16 %v3103
  %v3129 = vunpack.c.l.b16 %v3104
  %v3130 = vpack.c.b16 %v3124, %v3123
  %v3131 = vpack.c.b16 %v3126, %v3125
  %v3132 = vpack.c.b16 %v3128, %v3127
  %v3133 = vpack.c.b16 %v3129, %v3129
  %v3135 = vsel %vm483, %v3130, 0
  %v3138 = vsel %vm483, %v3131, 0
  %v3141 = vsel %vm483, %v3132, 0
  %v3144 = vsel %vm483, %v3133, 0
  %v3147 = vsel %vm1523, %v2773, 0
  %3149 = vmatprep.subr.mxu0 0.0
  %3150 = vmatpush1.msra.mxu0 0.0
  %3151 = vmatprep.subr.mxu0 0.0
  %3152 = vmatpush1.msra.mxu0 0.0
  %3153 = vmatprep.subr.mxu0 0.0
  %3154 = vmatpush1.msra.mxu0 0.0
  %3155 = vmatprep.subr.mxu0 0.0
  %3156 = vmatpush1.msra.mxu0 0.0
  %3157 = vmatprep.subr.mxu0 0.0
  %3158 = vmatpush1.msra.mxu0 0.0
  %3159 = vmatprep.subr.mxu0 0.0
  %3160 = vmatpush1.msra.mxu0 0.0
  %3161 = vmatprep.subr.mxu0 0.0
  %3162 = vmatpush1.msra.mxu0 0.0
  %3163 = vmatprep.subr.mxu0 0.0
  %3164 = vmatpush1.msra.mxu0 0.0
  %3165 = vmatprep.subr.mxu0 0.0
  %3166 = vmatpush1.msra.mxu0 0.0
  %3167 = vmatprep.subr.mxu0 0.0
  %3168 = vmatpush1.msra.mxu0 %v3147
  %3169 = vmatprep.subr.mxu0 0.0
  %3170 = vmatpush1.msra.mxu0 %v2772
  %3171 = vmatprep.subr.mxu0 0.0
  %3172 = vmatpush1.msra.mxu0 %v2771
  %3173 = vmatprep.subr.mxu0 0.0
  %3174 = vmatpush1.msra.mxu0 %v2770
  %3175 = vmatprep.subr.mxu0 0.0
  %3176 = vmatpush1.msra.mxu0 %v2769
  %3177 = vmatprep.subr.mxu0 0.0
  %3178 = vmatpush1.msra.mxu0 %v2768
  %3179 = vmatprep.subr.mxu0 0.0
  %3180 = vmatpush1.msra.mxu0 %v2767
  %3181 = vmatprep.subr.mxu0 0.0
  %3182 = vmatpush2.msra.mxu0 0.0
  %3183 = vmatprep.subr.mxu0 0.0
  %3184 = vmatpush2.msra.mxu0 0.0
  %3185 = vmatprep.subr.mxu0 0.0
  %3186 = vmatpush2.msra.mxu0 0.0
  %3187 = vmatprep.subr.mxu0 0.0
  %3188 = vmatpush2.msra.mxu0 0.0
  %3189 = vmatprep.subr.mxu0 0.0
  %3190 = vmatpush2.msra.mxu0 0.0
  %3191 = vmatprep.subr.mxu0 0.0
  %3192 = vmatpush2.msra.mxu0 0.0
  %3193 = vmatprep.subr.mxu0 0.0
  %3194 = vmatpush2.msra.mxu0 0.0
  %3195 = vmatprep.subr.mxu0 0.0
  %3196 = vmatpush2.msra.mxu0 0.0
  %3197 = vmatprep.subr.mxu0 0.0
  %3198 = vmatpush2.msra.mxu0 0.0
  %3199 = vmatprep.subr.mxu0 0.0
  %3200 = vmatpush2.msra.mxu0 0.0
  %3201 = vmatprep.subr.mxu0 0.0
  %3202 = vmatpush2.msra.mxu0 0.0
  %3203 = vmatprep.subr.mxu0 0.0
  %3204 = vmatpush2.msra.mxu0 0.0
  %3205 = vmatprep.subr.mxu0 0.0
  %3206 = vmatpush2.msra.mxu0 0.0
  %3207 = vmatprep.subr.mxu0 0.0
  %3208 = vmatpush2.msra.mxu0 0.0
  %3209 = vmatprep.subr.mxu0 0.0
  %3210 = vmatpush2.msra.mxu0 0.0
  %3211 = vmatprep.subr.mxu0 0.0
  %3212 = vmatpush2.msra.mxu0 0.0
  %3213 = vmatprep.mubr.bf16.mxu0 0
  %3214 = vmatmul.mubr.bf16.gmra.mxu0 %v3135
  %v3215 = vpop.f32.mrf.mxu0
  %v3216 = vadd.f32 0.0, %v3215
  %v3217 = vpop.f32.mrf.mxu0
  %v3218 = vpop.f32.mrf.mxu0
  %v3219 = vadd.f32 0.0, %v3218
  %v3220 = vpop.f32.mrf.mxu0
  %3221 = vmatprep.mubr.bf16.mxu0 0
  %3222 = vmatmul.mubr.bf16.gmra.mxu0 %v3138
  %v3223 = vpop.f32.mrf.mxu0
  %v3224 = vadd.f32 0.0, %v3223
  %v3225 = vpop.f32.mrf.mxu0
  %v3226 = vpop.f32.mrf.mxu0
  %v3227 = vadd.f32 0.0, %v3226
  %v3228 = vpop.f32.mrf.mxu0
  %3229 = vmatprep.mubr.bf16.mxu0 0
  %3230 = vmatmul.mubr.bf16.gmra.mxu0 %v3141
  %v3231 = vpop.f32.mrf.mxu0
  %v3232 = vadd.f32 0.0, %v3231
  %v3233 = vpop.f32.mrf.mxu0
  %v3234 = vpop.f32.mrf.mxu0
  %v3235 = vadd.f32 0.0, %v3234
  %v3236 = vpop.f32.mrf.mxu0
  %3237 = vmatprep.mubr.bf16.mxu0 0
  %3238 = vmatmul.mubr.bf16.gmra.mxu0 %v3144
  %v3239 = vpop.f32.mrf.mxu0
  %v3240 = vadd.f32 0.0, %v3239
  %v3241 = vpop.f32.mrf.mxu0
  %v3242 = vpop.f32.mrf.mxu0
  %v3243 = vpop.f32.mrf.mxu0
  %3244 = vdwg.mxu0
  %v3245 = vpack.c.bf16 %v2768, %v2767
  %v3246 = vpack.c.bf16 %v2770, %v2769
  %v3247 = vpack.c.bf16 %v2772, %v2771
  %v3248 = vpack.c.bf16 %v2773, %v2773
  %v3249 = vsub.f32 %v2767, %v3216
  %v3250 = vsub.f32 %v2768, %v3219
  %v3251 = vsub.f32 %v2769, %v3224
  %v3252 = vsub.f32 %v2770, %v3227
  %v3253 = vsub.f32 %v2771, %v3232
  %v3254 = vsub.f32 %v2772, %v3235
  %v3255 = vsub.f32 %v2773, %v3240
  %v3256 = vpack.c.bf16 %v3250, %v3249
  %v3257 = vpack.c.bf16 %v3252, %v3251
  %v3258 = vpack.c.bf16 %v3254, %v3253
  %v3259 = vpack.c.bf16 %v3255, %v3255
  %v3264 = vunpack.c.l.b16 %v3109
  %v3265 = vunpack.c.l.b16 %v3110
  %v3266 = vunpack.c.l.b16 %v3111
  %v3267 = vunpack.c.l.b16 %v3112
  %v3268 = vpack.c.b16 %v3265, %v3264
  %v3269 = vpack.c.b16 %v3267, %v3266
  %v3273 = vsel %vm220, %v3256, 0
  %v3276 = vsel %vm220, %v3257, 0
  %v3279 = vsel %vm220, %v3258, 0
  %v3282 = vsel %vm220, %v3259, 0
  %3284 = vmatprep.subr.bf16.mxu0 0
  %3285 = vmatpush1.bf16.msra.mxu0 0
  %3286 = vmatprep.subr.bf16.mxu0 0
  %3287 = vmatpush1.bf16.msra.mxu0 0
  %3288 = vmatprep.subr.bf16.mxu0 0
  %3289 = vmatpush1.bf16.msra.mxu0 0
  %3290 = vmatprep.subr.bf16.mxu0 0
  %3291 = vmatpush1.bf16.msra.mxu0 0
  %3292 = vmatprep.subr.bf16.mxu0 0
  %3293 = vmatpush1.bf16.msra.mxu0 0
  %3294 = vmatprep.subr.bf16.mxu0 0
  %3295 = vmatpush1.bf16.msra.mxu0 0
  %3296 = vmatprep.subr.bf16.mxu0 0
  %3297 = vmatpush1.bf16.msra.mxu0 %v3269
  %3298 = vmatprep.subr.bf16.mxu0 0
  %3299 = vmatpush1.bf16.msra.mxu0 %v3268
  %3300 = vmatprep.subr.bf16.mxu0 0
  %3301 = vmatpush2.bf16.msra.mxu0 0
  %3302 = vmatprep.subr.bf16.mxu0 0
  %3303 = vmatpush2.bf16.msra.mxu0 0
  %3304 = vmatprep.subr.bf16.mxu0 0
  %3305 = vmatpush2.bf16.msra.mxu0 0
  %3306 = vmatprep.subr.bf16.mxu0 0
  %3307 = vmatpush2.bf16.msra.mxu0 0
  %3308 = vmatprep.subr.bf16.mxu0 0
  %3309 = vmatpush2.bf16.msra.mxu0 0
  %3310 = vmatprep.subr.bf16.mxu0 0
  %3311 = vmatpush2.bf16.msra.mxu0 0
  %3312 = vmatprep.subr.bf16.mxu0 0
  %3313 = vmatpush2.bf16.msra.mxu0 0
  %3314 = vmatprep.subr.bf16.mxu0 0
  %3315 = vmatpush2.bf16.msra.mxu0 0
  %3316 = vmatprep.mubr.bf16.mxu0 0
  %3317 = vmatmul.mubr.bf16.gmra.mxu0 %v3273
  %v3318 = vpop.f32.mrf.mxu0
  %v3319 = vadd.f32 0.0, %v3318
  %v3320 = vpop.f32.mrf.mxu0
  %v3321 = vpop.f32.mrf.mxu0
  %v3322 = vadd.f32 0.0, %v3321
  %v3323 = vpop.f32.mrf.mxu0
  %3324 = vmatprep.mubr.bf16.mxu0 0
  %3325 = vmatmul.mubr.bf16.gmra.mxu0 %v3276
  %v3326 = vpop.f32.mrf.mxu0
  %v3327 = vadd.f32 0.0, %v3326
  %v3328 = vpop.f32.mrf.mxu0
  %v3329 = vpop.f32.mrf.mxu0
  %v3330 = vadd.f32 0.0, %v3329
  %v3331 = vpop.f32.mrf.mxu0
  %3332 = vmatprep.mubr.bf16.mxu0 0
  %3333 = vmatmul.mubr.bf16.gmra.mxu0 %v3279
  %v3334 = vpop.f32.mrf.mxu0
  %v3335 = vadd.f32 0.0, %v3334
  %v3336 = vpop.f32.mrf.mxu0
  %v3337 = vpop.f32.mrf.mxu0
  %v3338 = vadd.f32 0.0, %v3337
  %v3339 = vpop.f32.mrf.mxu0
  %3340 = vmatprep.mubr.bf16.mxu0 0
  %3341 = vmatmul.mubr.bf16.gmra.mxu0 %v3282
  %v3342 = vpop.f32.mrf.mxu0
  %v3343 = vadd.f32 0.0, %v3342
  %v3344 = vpop.f32.mrf.mxu0
  %v3345 = vpop.f32.mrf.mxu0
  %v3346 = vpop.f32.mrf.mxu0
  %3347 = vdwg.mxu0
  %v3352 = vunpack.c.l.b16 %v3105
  %v3353 = vunpack.c.l.b16 %v3106
  %v3354 = vunpack.c.l.b16 %v3107
  %v3355 = vunpack.c.l.b16 %v3108
  %v3356 = vpack.c.b16 %v3353, %v3352
  %v3357 = vpack.c.b16 %v3355, %v3354
  %v3361 = vsel %vm220, %v3245, 0
  %v3364 = vsel %vm220, %v3246, 0
  %v3367 = vsel %vm220, %v3247, 0
  %v3370 = vsel %vm220, %v3248, 0
  %3372 = vmatprep.subr.bf16.mxu0 0
  %3373 = vmatpush1.bf16.msra.mxu0 0
  %3374 = vmatprep.subr.bf16.mxu0 0
  %3375 = vmatpush1.bf16.msra.mxu0 0
  %3376 = vmatprep.subr.bf16.mxu0 0
  %3377 = vmatpush1.bf16.msra.mxu0 0
  %3378 = vmatprep.subr.bf16.mxu0 0
  %3379 = vmatpush1.bf16.msra.mxu0 0
  %3380 = vmatprep.subr.bf16.mxu0 0
  %3381 = vmatpush1.bf16.msra.mxu0 0
  %3382 = vmatprep.subr.bf16.mxu0 0
  %3383 = vmatpush1.bf16.msra.mxu0 0
  %3384 = vmatprep.subr.bf16.mxu0 0
  %3385 = vmatpush1.bf16.msra.mxu0 %v3357
  %3386 = vmatprep.subr.bf16.mxu0 0
  %3387 = vmatpush1.bf16.msra.mxu0 %v3356
  %3388 = vmatprep.subr.bf16.mxu0 0
  %3389 = vmatpush2.bf16.msra.mxu0 0
  %3390 = vmatprep.subr.bf16.mxu0 0
  %3391 = vmatpush2.bf16.msra.mxu0 0
  %3392 = vmatprep.subr.bf16.mxu0 0
  %3393 = vmatpush2.bf16.msra.mxu0 0
  %3394 = vmatprep.subr.bf16.mxu0 0
  %3395 = vmatpush2.bf16.msra.mxu0 0
  %3396 = vmatprep.subr.bf16.mxu0 0
  %3397 = vmatpush2.bf16.msra.mxu0 0
  %3398 = vmatprep.subr.bf16.mxu0 0
  %3399 = vmatpush2.bf16.msra.mxu0 0
  %3400 = vmatprep.subr.bf16.mxu0 0
  %3401 = vmatpush2.bf16.msra.mxu0 0
  %3402 = vmatprep.subr.bf16.mxu0 0
  %3403 = vmatpush2.bf16.msra.mxu0 0
  %3404 = vmatprep.mubr.bf16.mxu0 0
  %3405 = vmatmul.mubr.bf16.gmra.mxu0 %v3361
  %v3406 = vpop.f32.mrf.mxu0
  %v3407 = vadd.f32 %v3319, %v3406
  %v3408 = vpop.f32.mrf.mxu0
  %v3409 = vpop.f32.mrf.mxu0
  %v3410 = vadd.f32 %v3322, %v3409
  %v3411 = vpop.f32.mrf.mxu0
  %3412 = vmatprep.mubr.bf16.mxu0 0
  %3413 = vmatmul.mubr.bf16.gmra.mxu0 %v3364
  %v3414 = vpop.f32.mrf.mxu0
  %v3415 = vadd.f32 %v3327, %v3414
  %v3416 = vpop.f32.mrf.mxu0
  %v3417 = vpop.f32.mrf.mxu0
  %v3418 = vadd.f32 %v3330, %v3417
  %v3419 = vpop.f32.mrf.mxu0
  %3420 = vmatprep.mubr.bf16.mxu0 0
  %3421 = vmatmul.mubr.bf16.gmra.mxu0 %v3367
  %v3422 = vpop.f32.mrf.mxu0
  %v3423 = vadd.f32 %v3335, %v3422
  %v3424 = vpop.f32.mrf.mxu0
  %v3425 = vpop.f32.mrf.mxu0
  %v3426 = vadd.f32 %v3338, %v3425
  %v3427 = vpop.f32.mrf.mxu0
  %3428 = vmatprep.mubr.bf16.mxu0 0
  %3429 = vmatmul.mubr.bf16.gmra.mxu0 %v3370
  %v3430 = vpop.f32.mrf.mxu0
  %v3431 = vadd.f32 %v3343, %v3430
  %v3432 = vpop.f32.mrf.mxu0
  %v3433 = vpop.f32.mrf.mxu0
  %v3434 = vpop.f32.mrf.mxu0
  %3435 = vdwg.mxu0
  %v3436 = vlaneseq
  %v3437 = vshrl.u32 %v3436, 7
  %v3438 = vsub.s32 0, %v3437
  %v3439 = vrot.slane %v3113, %v3438
  %v3440 = vadd.f32 %v3407, %v3439
  %v3441 = vadd.f32 %v3410, %v3439
  %v3442 = vadd.f32 %v3415, %v3439
  %v3443 = vadd.f32 %v3418, %v3439
  %v3444 = vadd.f32 %v3423, %v3439
  %v3445 = vadd.f32 %v3426, %v3439
  %v3446 = vadd.f32 %v3431, %v3439
  %v3447 = vsel %vm220, %v3440, 0.0
  %v3448 = vsel %vm220, %v3441, 0.0
  %v3449 = vadd.f32 %v3447, %v3448
  %v3450 = vsel %vm220, %v3442, 0.0
  %v3451 = vadd.f32 %v3449, %v3450
  %v3452 = vsel %vm220, %v3443, 0.0
  %v3453 = vadd.f32 %v3451, %v3452
  %v3454 = vsel %vm220, %v3444, 0.0
  %v3455 = vadd.f32 %v3453, %v3454
  %v3456 = vsel %vm220, %v3445, 0.0
  %v3457 = vadd.f32 %v3455, %v3456
  %v3458 = vsel %vm300, %v3446, 0.0
  %v3459 = vadd.f32 %v3457, %v3458
  %v3460 = vrot.slane %v3459, 4
  %v3461 = vadd.f32 %v3459, %v3460
  %v3462 = vrot.slane %v3461, 2
  %v3463 = vadd.f32 %v3461, %v3462
  %v3464 = vrot.slane %v3463, 1
  %v3465 = vadd.f32 %v3463, %v3464
  %v3466 = vmul.f32 %v3465, %v326
  %v3467 = vsub.f32 %v3440, %v3466
  %v3468 = vsub.f32 %v3441, %v3466
  %v3469 = vsub.f32 %v3442, %v3466
  %v3470 = vsub.f32 %v3443, %v3466
  %v3471 = vsub.f32 %v3444, %v3466
  %v3472 = vsub.f32 %v3445, %v3466
  %v3473 = vsub.f32 %v3446, %v3466
  %v3474 = vmul.f32 %v3467, %v3467
  %v3475 = vmul.f32 %v3468, %v3468
  %v3476 = vmul.f32 %v3469, %v3469
  %v3477 = vmul.f32 %v3470, %v3470
  %v3478 = vmul.f32 %v3471, %v3471
  %v3479 = vmul.f32 %v3472, %v3472
  %v3480 = vmul.f32 %v3473, %v3473
  %v3481 = vsel %vm220, %v3474, 0.0
  %v3482 = vsel %vm220, %v3475, 0.0
  %v3483 = vadd.f32 %v3481, %v3482
  %v3484 = vsel %vm220, %v3476, 0.0
  %v3485 = vadd.f32 %v3483, %v3484
  %v3486 = vsel %vm220, %v3477, 0.0
  %v3487 = vadd.f32 %v3485, %v3486
  %v3488 = vsel %vm220, %v3478, 0.0
  %v3489 = vadd.f32 %v3487, %v3488
  %v3490 = vsel %vm220, %v3479, 0.0
  %v3491 = vadd.f32 %v3489, %v3490
  %v3492 = vsel %vm300, %v3480, 0.0
  %v3493 = vadd.f32 %v3491, %v3492
  %v3494 = vrot.slane %v3493, 4
  %v3495 = vadd.f32 %v3493, %v3494
  %v3496 = vrot.slane %v3495, 2
  %v3497 = vadd.f32 %v3495, %v3496
  %v3498 = vrot.slane %v3497, 1
  %v3499 = vadd.f32 %v3497, %v3498
  %v3500 = vmul.f32 %v3499, %v326
  %v3501 = vadd.f32 %v3500, 1e-05
  %v3502 = vrsqrt.pop %v3501
  %v3503 = vmul.f32 %v3467, %v3502
  %v3504 = vmul.f32 %v3468, %v3502
  %v3505 = vmul.f32 %v3469, %v3502
  %v3506 = vmul.f32 %v3470, %v3502
  %v3507 = vmul.f32 %v3471, %v3502
  %v3508 = vmul.f32 %v3472, %v3502
  %v3509 = vmul.f32 %v3473, %v3502
  %v3510 = vlaneseq
  %v3511 = vshrl.u32 %v3510, 7
  %v3512 = vsub.s32 0, %v3511
  %v3513 = vrot.slane %v3114, %v3512
  %v3514 = vmul.f32 %v3503, %v3513
  %v3515 = vmul.f32 %v3504, %v3513
  %v3516 = vmul.f32 %v3505, %v3513
  %v3517 = vmul.f32 %v3506, %v3513
  %v3518 = vmul.f32 %v3507, %v3513
  %v3519 = vmul.f32 %v3508, %v3513
  %v3520 = vmul.f32 %v3509, %v3513
  %v3521 = vlaneseq
  %v3522 = vshrl.u32 %v3521, 7
  %v3523 = vsub.s32 0, %v3522
  %v3524 = vrot.slane %v3115, %v3523
  %v3525 = vadd.f32 %v3514, %v3524
  %v3526 = vadd.f32 %v3515, %v3524
  %v3527 = vadd.f32 %v3516, %v3524
  %v3528 = vadd.f32 %v3517, %v3524
  %v3529 = vadd.f32 %v3518, %v3524
  %v3530 = vadd.f32 %v3519, %v3524
  %v3531 = vadd.f32 %v3520, %v3524
  %v3532 = vmax.f32 %v3525, 0.0
  %v3533 = vmax.f32 %v3526, 0.0
  %v3534 = vmax.f32 %v3527, 0.0
  %v3535 = vmax.f32 %v3528, 0.0
  %v3536 = vmax.f32 %v3529, 0.0
  %v3537 = vmax.f32 %v3530, 0.0
  %v3538 = vmax.f32 %v3531, 0.0
  %v3539 = vpack.c.bf16 %v3095, %v3094
  %v3540 = vpack.c.bf16 %v3097, %v3096
  %v3543 = vunpack.c.l.b16 %v3539
  %v3544 = vunpack.c.h.b16 %v3539
  %v3545 = vunpack.c.l.b16 %v3540
  %v3546 = vunpack.c.h.b16 %v3540
  %v3547 = vpack.c.b16 %v3543, %v3543
  %v3548 = vpack.c.b16 %v3544, %v3544
  %v3549 = vpack.c.b16 %v3545, %v3545
  %v3550 = vpack.c.b16 %v3546, %v3546
  %3551 = vrot.lane.b32.xlu0 %v3547, 64
  %v3552 = vpop.permute.xlu0 %3551
  %3553 = vrot.lane.b32.xlu0 %v3548, 64
  %v3554 = vpop.permute.xlu0 %3553
  %3555 = vrot.lane.b32.xlu0 %v3549, 64
  %v3556 = vpop.permute.xlu0 %3555
  %3557 = vrot.lane.b32.xlu0 %v3550, 64
  %v3558 = vpop.permute.xlu0 %3557
  %vm3563 = vcmask 781824
  %3564 = vst.msk [vmem:[#allocation2] sm:$0xf] %vm3563, %v3552
  %3565 = vst.msk [vmem:[#allocation2 + $0x4] sm:$0xf] %vm3563, %v3554
  %3566 = vst.msk [vmem:[#allocation2 + $0x8] sm:$0xf] %vm3563, %v3556
  %3567 = vst.msk [vmem:[#allocation2 + $0xc] sm:$0xf] %vm3563, %v3558
  %v3568 = vpack.c.bf16 %v3533, %v3532
  %v3569 = vpack.c.bf16 %v3535, %v3534
  %v3570 = vpack.c.bf16 %v3537, %v3536
  %v3571 = vpack.c.bf16 %v3538, %v3538
  %v3576 = vunpack.c.l.b16 %v3568
  %v3577 = vunpack.c.h.b16 %v3568
  %v3578 = vunpack.c.l.b16 %v3569
  %v3579 = vunpack.c.h.b16 %v3569
  %v3580 = vunpack.c.l.b16 %v3570
  %v3581 = vunpack.c.h.b16 %v3570
  %v3582 = vunpack.c.l.b16 %v3571
  %v3583 = vpack.c.b16 %v3576, %v3576
  %v3584 = vpack.c.b16 %v3577, %v3577
  %v3585 = vpack.c.b16 %v3578, %v3578
  %v3586 = vpack.c.b16 %v3579, %v3579
  %v3587 = vpack.c.b16 %v3580, %v3580
  %v3588 = vpack.c.b16 %v3581, %v3581
  %v3589 = vpack.c.b16 %v3582, %v3582
  %3590 = vrot.lane.b32.xlu0 %v3583, 64
  %v3591 = vpop.permute.xlu0 %3590
  %3592 = vrot.lane.b32.xlu0 %v3584, 64
  %v3593 = vpop.permute.xlu0 %3592
  %3594 = vrot.lane.b32.xlu0 %v3585, 64
  %v3595 = vpop.permute.xlu0 %3594
  %3596 = vrot.lane.b32.xlu0 %v3586, 64
  %v3597 = vpop.permute.xlu0 %3596
  %3598 = vrot.lane.b32.xlu0 %v3587, 64
  %v3599 = vpop.permute.xlu0 %3598
  %3600 = vrot.lane.b32.xlu0 %v3588, 64
  %v3601 = vpop.permute.xlu0 %3600
  %3602 = vrot.lane.b32.xlu0 %v3589, 64
  %v3603 = vpop.permute.xlu0 %3602
  %3611 = vst.msk [vmem:[#allocation3] sm:$0xf] %vm3563, %v3591
  %3612 = vst.msk [vmem:[#allocation3 + $0x4] sm:$0xf] %vm3563, %v3593
  %3613 = vst.msk [vmem:[#allocation3 + $0x8] sm:$0xf] %vm3563, %v3595
  %3614 = vst.msk [vmem:[#allocation3 + $0xc] sm:$0xf] %vm3563, %v3597
  %3615 = vst.msk [vmem:[#allocation3 + $0x10] sm:$0xf] %vm3563, %v3599
  %3616 = vst.msk [vmem:[#allocation3 + $0x14] sm:$0xf] %vm3563, %v3601
  %vm3617 = vcmask 779776
  %3618 = vst.msk [vmem:[#allocation3 + $0x18] sm:$0x3] %vm3617, %v3603
  %v3619 = vld [vmem:[#allocation2] sm:$0xf]
  %v3620 = vld [vmem:[#allocation2 + $0x4] sm:$0xf]
  %v3621 = vld [vmem:[#allocation2 + $0x8] sm:$0xf]
  %v3622 = vld [vmem:[#allocation2 + $0xc] sm:$0xf]
  %v3623 = vld [vmem:[#allocation3] sm:$0xf]
  %v3624 = vld [vmem:[#allocation3 + $0x4] sm:$0xf]
  %v3625 = vld [vmem:[#allocation3 + $0x8] sm:$0xf]
  %v3626 = vld [vmem:[#allocation3 + $0xc] sm:$0xf]
  %v3627 = vld [vmem:[#allocation3 + $0x10] sm:$0xf]
  %v3628 = vld [vmem:[#allocation3 + $0x14] sm:$0xf]
  %v3629 = vld [vmem:[#allocation3 + $0x18] sm:$0x3]
  %v3630 = vld [vmem:[%s0 + $0x60] sm:$0xf]
  %v3631 = vld [vmem:[%s0 + $0x64] sm:$0xf]
  %v3632 = vld [vmem:[%s0 + $0x68] sm:$0xf]
  %v3633 = vld [vmem:[%s0 + $0x6c] sm:$0xf]
  %v3638 = vunpack.c.l.b16 %v3630
  %v3639 = vunpack.c.l.b16 %v3631
  %v3640 = vunpack.c.l.b16 %v3632
  %v3641 = vunpack.c.l.b16 %v3633
  %v3642 = vpack.c.b16 %v3639, %v3638
  %v3643 = vpack.c.b16 %v3641, %v3640
  %v3651 = vunpack.c.l.b16 %v3623
  %v3652 = vunpack.c.l.b16 %v3624
  %v3653 = vunpack.c.l.b16 %v3625
  %v3654 = vunpack.c.l.b16 %v3626
  %v3655 = vunpack.c.l.b16 %v3627
  %v3656 = vunpack.c.l.b16 %v3628
  %v3657 = vunpack.c.l.b16 %v3629
  %v3658 = vpack.c.b16 %v3652, %v3651
  %v3659 = vpack.c.b16 %v3654, %v3653
  %v3660 = vpack.c.b16 %v3656, %v3655
  %v3661 = vpack.c.b16 %v3657, %v3657
  %v3666 = vsel %vm483, %v3642, 0
  %v3669 = vsel %vm483, %v3643, 0
  %v3672 = vsel %vm490, %v3661, 0
  %3674 = vmatprep.subr.bf16.mxu0 0
  %3675 = vmatpush1.bf16.msra.mxu0 0
  %3676 = vmatprep.subr.bf16.mxu0 0
  %3677 = vmatpush1.bf16.msra.mxu0 0
  %3678 = vmatprep.subr.bf16.mxu0 0
  %3679 = vmatpush1.bf16.msra.mxu0 0
  %3680 = vmatprep.subr.bf16.mxu0 0
  %3681 = vmatpush1.bf16.msra.mxu0 0
  %3682 = vmatprep.subr.bf16.mxu0 0
  %3683 = vmatpush1.bf16.msra.mxu0 %v3672
  %3684 = vmatprep.subr.bf16.mxu0 0
  %3685 = vmatpush1.bf16.msra.mxu0 %v3660
  %3686 = vmatprep.subr.bf16.mxu0 0
  %3687 = vmatpush1.bf16.msra.mxu0 %v3659
  %3688 = vmatprep.subr.bf16.mxu0 0
  %3689 = vmatpush1.bf16.msra.mxu0 %v3658
  %3690 = vmatprep.subr.bf16.mxu0 0
  %3691 = vmatpush2.bf16.msra.mxu0 0
  %3692 = vmatprep.subr.bf16.mxu0 0
  %3693 = vmatpush2.bf16.msra.mxu0 0
  %3694 = vmatprep.subr.bf16.mxu0 0
  %3695 = vmatpush2.bf16.msra.mxu0 0
  %3696 = vmatprep.subr.bf16.mxu0 0
  %3697 = vmatpush2.bf16.msra.mxu0 0
  %3698 = vmatprep.subr.bf16.mxu0 0
  %3699 = vmatpush2.bf16.msra.mxu0 0
  %3700 = vmatprep.subr.bf16.mxu0 0
  %3701 = vmatpush2.bf16.msra.mxu0 0
  %3702 = vmatprep.subr.bf16.mxu0 0
  %3703 = vmatpush2.bf16.msra.mxu0 0
  %3704 = vmatprep.subr.bf16.mxu0 0
  %3705 = vmatpush2.bf16.msra.mxu0 0
  %3706 = vmatprep.mubr.bf16.mxu0 0
  %3707 = vmatmul.mubr.bf16.gmra.mxu0 %v3666
  %v3708 = vpop.f32.mrf.mxu0
  %v3709 = vadd.f32 0.0, %v3708
  %v3710 = vpop.f32.mrf.mxu0
  %v3711 = vpop.f32.mrf.mxu0
  %v3712 = vadd.f32 0.0, %v3711
  %v3713 = vpop.f32.mrf.mxu0
  %3714 = vmatprep.mubr.bf16.mxu0 0
  %3715 = vmatmul.mubr.bf16.gmra.mxu0 %v3669
  %v3716 = vpop.f32.mrf.mxu0
  %v3717 = vadd.f32 0.0, %v3716
  %v3718 = vpop.f32.mrf.mxu0
  %v3719 = vpop.f32.mrf.mxu0
  %v3720 = vadd.f32 0.0, %v3719
  %v3721 = vpop.f32.mrf.mxu0
  %3722 = vdwg.mxu0
  %v3723 = vld [vmem:[%s0 + $0x70] sm:$0xf]
  %v3724 = vld [vmem:[%s0 + $0x74] sm:$0xf]
  %v3725 = vld [vmem:[%s0 + $0x78] sm:$0xf]
  %v3726 = vld [vmem:[%s0 + $0x7c] sm:$0xf]
  %v3727 = vld [vmem:[%s0 + $0x80] sm:$0xf]
  %v3728 = vld [vmem:[%s0 + $0x84] sm:$0xf]
  %v3729 = vld [vmem:[%s0 + $0x88] sm:$0x3]
  %v3737 = vunpack.c.l.b16 %v3723
  %v3738 = vunpack.c.l.b16 %v3724
  %v3739 = vunpack.c.l.b16 %v3725
  %v3740 = vunpack.c.l.b16 %v3726
  %v3741 = vunpack.c.l.b16 %v3727
  %v3742 = vunpack.c.l.b16 %v3728
  %v3743 = vunpack.c.l.b16 %v3729
  %v3744 = vpack.c.b16 %v3738, %v3737
  %v3745 = vpack.c.b16 %v3740, %v3739
  %v3746 = vpack.c.b16 %v3742, %v3741
  %v3747 = vpack.c.b16 %v3743, %v3743
  %v3752 = vunpack.c.l.b16 %v3619
  %v3753 = vunpack.c.l.b16 %v3620
  %v3754 = vunpack.c.l.b16 %v3621
  %v3755 = vunpack.c.l.b16 %v3622
  %v3756 = vpack.c.b16 %v3753, %v3752
  %v3757 = vpack.c.b16 %v3755, %v3754
  %v3761 = vsel %vm220, %v3744, 0
  %v3764 = vsel %vm220, %v3745, 0
  %v3767 = vsel %vm220, %v3746, 0
  %v3770 = vsel %vm220, %v3747, 0
  %3772 = vmatprep.subr.bf16.mxu0 0
  %3773 = vmatpush1.bf16.msra.mxu0 0
  %3774 = vmatprep.subr.bf16.mxu0 0
  %3775 = vmatpush1.bf16.msra.mxu0 0
  %3776 = vmatprep.subr.bf16.mxu0 0
  %3777 = vmatpush1.bf16.msra.mxu0 0
  %3778 = vmatprep.subr.bf16.mxu0 0
  %3779 = vmatpush1.bf16.msra.mxu0 0
  %3780 = vmatprep.subr.bf16.mxu0 0
  %3781 = vmatpush1.bf16.msra.mxu0 0
  %3782 = vmatprep.subr.bf16.mxu0 0
  %3783 = vmatpush1.bf16.msra.mxu0 0
  %3784 = vmatprep.subr.bf16.mxu0 0
  %3785 = vmatpush1.bf16.msra.mxu0 %v3757
  %3786 = vmatprep.subr.bf16.mxu0 0
  %3787 = vmatpush1.bf16.msra.mxu0 %v3756
  %3788 = vmatprep.subr.bf16.mxu0 0
  %3789 = vmatpush2.bf16.msra.mxu0 0
  %3790 = vmatprep.subr.bf16.mxu0 0
  %3791 = vmatpush2.bf16.msra.mxu0 0
  %3792 = vmatprep.subr.bf16.mxu0 0
  %3793 = vmatpush2.bf16.msra.mxu0 0
  %3794 = vmatprep.subr.bf16.mxu0 0
  %3795 = vmatpush2.bf16.msra.mxu0 0
  %3796 = vmatprep.subr.bf16.mxu0 0
  %3797 = vmatpush2.bf16.msra.mxu0 0
  %3798 = vmatprep.subr.bf16.mxu0 0
  %3799 = vmatpush2.bf16.msra.mxu0 0
  %3800 = vmatprep.subr.bf16.mxu0 0
  %3801 = vmatpush2.bf16.msra.mxu0 0
  %3802 = vmatprep.subr.bf16.mxu0 0
  %3803 = vmatpush2.bf16.msra.mxu0 0
  %3804 = vmatprep.mubr.bf16.mxu0 0
  %3805 = vmatmul.mubr.bf16.gmra.mxu0 %v3761
  %v3806 = vpop.f32.mrf.mxu0
  %v3807 = vadd.f32 0.0, %v3806
  %v3808 = vpop.f32.mrf.mxu0
  %v3809 = vpop.f32.mrf.mxu0
  %v3810 = vadd.f32 0.0, %v3809
  %v3811 = vpop.f32.mrf.mxu0
  %3812 = vmatprep.mubr.bf16.mxu0 0
  %3813 = vmatmul.mubr.bf16.gmra.mxu0 %v3764
  %v3814 = vpop.f32.mrf.mxu0
  %v3815 = vadd.f32 0.0, %v3814
  %v3816 = vpop.f32.mrf.mxu0
  %v3817 = vpop.f32.mrf.mxu0
  %v3818 = vadd.f32 0.0, %v3817
  %v3819 = vpop.f32.mrf.mxu0
  %3820 = vmatprep.mubr.bf16.mxu0 0
  %3821 = vmatmul.mubr.bf16.gmra.mxu0 %v3767
  %v3822 = vpop.f32.mrf.mxu0
  %v3823 = vadd.f32 0.0, %v3822
  %v3824 = vpop.f32.mrf.mxu0
  %v3825 = vpop.f32.mrf.mxu0
  %v3826 = vadd.f32 0.0, %v3825
  %v3827 = vpop.f32.mrf.mxu0
  %3828 = vmatprep.mubr.bf16.mxu0 0
  %3829 = vmatmul.mubr.bf16.gmra.mxu0 %v3770
  %v3830 = vpop.f32.mrf.mxu0
  %v3831 = vadd.f32 0.0, %v3830
  %v3832 = vpop.f32.mrf.mxu0
  %v3833 = vpop.f32.mrf.mxu0
  %v3834 = vpop.f32.mrf.mxu0
  %3835 = vdwg.mxu0
  %v3836 = vld [vmem:[%s0 + $0x1e0] sm:$0xf]
  %v3837 = vld [vmem:[%s0 + $0x1e4] sm:$0xf]
  %v3838 = vld [vmem:[%s0 + $0x1e8] sm:$0xf]
  %v3839 = vld [vmem:[%s0 + $0x1ec] sm:$0xf]
  %v3840 = vld [vmem:[%s0 + $0x1f0] sm:$0xf]
  %v3841 = vld [vmem:[%s0 + $0x1f4] sm:$0xf]
  %v3842 = vld [vmem:[%s0 + $0x1f8] sm:$0xf]
  %v3843 = vld [vmem:[%s0 + $0x1fc] sm:$0xf]
  %v3844 = vld [vmem:[%s0 + $0x200] sm:$0xf]
  %v3845 = vld [vmem:[%s0 + $0x204] sm:$0xf]
  %v3846 = vld [vmem:[%s0 + $0x208] sm:$0xf]
  %v3847 = vld [vmem:[%s0 + $0x20c] sm:$0xf]
  %v3848 = vld [vmem:[%s0 + $0x210] sm:$0xf]
  %v3849 = vld [vmem:[%s0 + $0x214] sm:$0xf]
  %v3850 = vld [vmem:[%s0 + $0x218] sm:$0xf]
  %v3851 = vld [vmem:[%s0 + $0x21c] sm:$0xf]
  %v3852 = vld [vmem:[%s0 + $0x220] sm:$0xf]
  %v3853 = vld [vmem:[%s0 + $0x224] sm:$0xf]
  %v3854 = vld [vmem:[%s0 + $0x228] sm:$0xf]
  %v3855 = vld [vmem:[%s0 + $0x22c] sm:$0xf]
  %v3856 = vld [vmem:[%s0 + $0x230] sm:$0xf]
  %v3857 = vld [vmem:[%s0 + $0x234] sm:$0xf]
  %v3858 = vld [vmem:[%s0 + $0x238] sm:$0xf]
  %v3859 = vld [vmem:[%s0 + $0x23c] sm:$0xf]
  %v3860 = vpack.c.bf16 %v3712, %v3709
  %v3861 = vpack.c.bf16 %v3720, %v3717
  %v3874 = vunpack.c.l.b16 %v3848
  %v3875 = vunpack.c.l.b16 %v3849
  %v3876 = vunpack.c.l.b16 %v3850
  %v3877 = vunpack.c.l.b16 %v3851
  %v3878 = vunpack.c.l.b16 %v3852
  %v3879 = vunpack.c.l.b16 %v3853
  %v3880 = vunpack.c.l.b16 %v3854
  %v3881 = vunpack.c.l.b16 %v3855
  %v3882 = vunpack.c.l.b16 %v3856
  %v3883 = vunpack.c.l.b16 %v3857
  %v3884 = vunpack.c.l.b16 %v3858
  %v3885 = vunpack.c.l.b16 %v3859
  %v3886 = vpack.c.b16 %v3875, %v3874
  %v3887 = vpack.c.b16 %v3877, %v3876
  %v3888 = vpack.c.b16 %v3879, %v3878
  %v3889 = vpack.c.b16 %v3881, %v3880
  %v3890 = vpack.c.b16 %v3883, %v3882
  %v3891 = vpack.c.b16 %v3885, %v3884
  %vm3898 = vcmask 785408
  %v3900 = vsel %vm3898, %v3860, 0
  %v3903 = vsel %vm3898, %v3861, 0
  %3905 = vmatprep.subr.bf16.mxu0 0
  %3906 = vmatpush1.bf16.msra.mxu0 0
  %3907 = vmatprep.subr.bf16.mxu0 0
  %3908 = vmatpush1.bf16.msra.mxu0 0
  %3909 = vmatprep.subr.bf16.mxu0 0
  %3910 = vmatpush1.bf16.msra.mxu0 %v3891
  %3911 = vmatprep.subr.bf16.mxu0 0
  %3912 = vmatpush1.bf16.msra.mxu0 %v3890
  %3913 = vmatprep.subr.bf16.mxu0 0
  %3914 = vmatpush1.bf16.msra.mxu0 %v3889
  %3915 = vmatprep.subr.bf16.mxu0 0
  %3916 = vmatpush1.bf16.msra.mxu0 %v3888
  %3917 = vmatprep.subr.bf16.mxu0 0
  %3918 = vmatpush1.bf16.msra.mxu0 %v3887
  %3919 = vmatprep.subr.bf16.mxu0 0
  %3920 = vmatpush1.bf16.msra.mxu0 %v3886
  %3921 = vmatprep.subr.bf16.mxu0 0
  %3922 = vmatpush2.bf16.msra.mxu0 0
  %3923 = vmatprep.subr.bf16.mxu0 0
  %3924 = vmatpush2.bf16.msra.mxu0 0
  %3925 = vmatprep.subr.bf16.mxu0 0
  %3926 = vmatpush2.bf16.msra.mxu0 0
  %3927 = vmatprep.subr.bf16.mxu0 0
  %3928 = vmatpush2.bf16.msra.mxu0 0
  %3929 = vmatprep.subr.bf16.mxu0 0
  %3930 = vmatpush2.bf16.msra.mxu0 0
  %3931 = vmatprep.subr.bf16.mxu0 0
  %3932 = vmatpush2.bf16.msra.mxu0 0
  %3933 = vmatprep.subr.bf16.mxu0 0
  %3934 = vmatpush2.bf16.msra.mxu0 0
  %3935 = vmatprep.subr.bf16.mxu0 0
  %3936 = vmatpush2.bf16.msra.mxu0 0
  %3937 = vmatprep.mubr.bf16.mxu0 0
  %3938 = vmatmul.mubr.bf16.gmra.mxu0 %v3900
  %v3939 = vpop.f32.mrf.mxu0
  %v3940 = vadd.f32 0.0, %v3939
  %v3941 = vpop.f32.mrf.mxu0
  %v3942 = vpop.f32.mrf.mxu0
  %v3943 = vadd.f32 0.0, %v3942
  %v3944 = vpop.f32.mrf.mxu0
  %3945 = vmatprep.mubr.bf16.mxu0 0
  %3946 = vmatmul.mubr.bf16.gmra.mxu0 %v3903
  %v3947 = vpop.f32.mrf.mxu0
  %v3948 = vadd.f32 0.0, %v3947
  %v3949 = vpop.f32.mrf.mxu0
  %v3950 = vpop.f32.mrf.mxu0
  %v3951 = vadd.f32 0.0, %v3950
  %v3952 = vpop.f32.mrf.mxu0
  %3953 = vdwg.mxu0
  %v3966 = vunpack.c.l.b16 %v3836
  %v3967 = vunpack.c.l.b16 %v3837
  %v3968 = vunpack.c.l.b16 %v3838
  %v3969 = vunpack.c.l.b16 %v3839
  %v3970 = vunpack.c.l.b16 %v3840
  %v3971 = vunpack.c.l.b16 %v3841
  %v3972 = vunpack.c.l.b16 %v3842
  %v3973 = vunpack.c.l.b16 %v3843
  %v3974 = vunpack.c.l.b16 %v3844
  %v3975 = vunpack.c.l.b16 %v3845
  %v3976 = vunpack.c.l.b16 %v3846
  %v3977 = vunpack.c.l.b16 %v3847
  %v3978 = vpack.c.b16 %v3967, %v3966
  %v3979 = vpack.c.b16 %v3969, %v3968
  %v3980 = vpack.c.b16 %v3971, %v3970
  %v3981 = vpack.c.b16 %v3973, %v3972
  %v3982 = vpack.c.b16 %v3975, %v3974
  %v3983 = vpack.c.b16 %v3977, %v3976
  %v3991 = vsel %vm3898, %v3756, 0
  %v3994 = vsel %vm3898, %v3757, 0
  %3996 = vmatprep.subr.bf16.mxu0 0
  %3997 = vmatpush1.bf16.msra.mxu0 0
  %3998 = vmatprep.subr.bf16.mxu0 0
  %3999 = vmatpush1.bf16.msra.mxu0 0
  %4000 = vmatprep.subr.bf16.mxu0 0
  %4001 = vmatpush1.bf16.msra.mxu0 %v3983
  %4002 = vmatprep.subr.bf16.mxu0 0
  %4003 = vmatpush1.bf16.msra.mxu0 %v3982
  %4004 = vmatprep.subr.bf16.mxu0 0
  %4005 = vmatpush1.bf16.msra.mxu0 %v3981
  %4006 = vmatprep.subr.bf16.mxu0 0
  %4007 = vmatpush1.bf16.msra.mxu0 %v3980
  %4008 = vmatprep.subr.bf16.mxu0 0
  %4009 = vmatpush1.bf16.msra.mxu0 %v3979
  %4010 = vmatprep.subr.bf16.mxu0 0
  %4011 = vmatpush1.bf16.msra.mxu0 %v3978
  %4012 = vmatprep.subr.bf16.mxu0 0
  %4013 = vmatpush2.bf16.msra.mxu0 0
  %4014 = vmatprep.subr.bf16.mxu0 0
  %4015 = vmatpush2.bf16.msra.mxu0 0
  %4016 = vmatprep.subr.bf16.mxu0 0
  %4017 = vmatpush2.bf16.msra.mxu0 0
  %4018 = vmatprep.subr.bf16.mxu0 0
  %4019 = vmatpush2.bf16.msra.mxu0 0
  %4020 = vmatprep.subr.bf16.mxu0 0
  %4021 = vmatpush2.bf16.msra.mxu0 0
  %4022 = vmatprep.subr.bf16.mxu0 0
  %4023 = vmatpush2.bf16.msra.mxu0 0
  %4024 = vmatprep.subr.bf16.mxu0 0
  %4025 = vmatpush2.bf16.msra.mxu0 0
  %4026 = vmatprep.subr.bf16.mxu0 0
  %4027 = vmatpush2.bf16.msra.mxu0 0
  %4028 = vmatprep.mubr.bf16.mxu0 0
  %4029 = vmatmul.mubr.bf16.gmra.mxu0 %v3991
  %v4030 = vpop.f32.mrf.mxu0
  %v4031 = vadd.f32 %v3940, %v4030
  %v4032 = vpop.f32.mrf.mxu0
  %v4033 = vpop.f32.mrf.mxu0
  %v4034 = vadd.f32 %v3943, %v4033
  %v4035 = vpop.f32.mrf.mxu0
  %4036 = vmatprep.mubr.bf16.mxu0 0
  %4037 = vmatmul.mubr.bf16.gmra.mxu0 %v3994
  %v4038 = vpop.f32.mrf.mxu0
  %v4039 = vadd.f32 %v3948, %v4038
  %v4040 = vpop.f32.mrf.mxu0
  %v4041 = vpop.f32.mrf.mxu0
  %v4042 = vadd.f32 %v3951, %v4041
  %v4043 = vpop.f32.mrf.mxu0
  %4044 = vdwg.mxu0
  %v4045 = vld [vmem:[%s1 + $0xb0] sm:$0x1]
  %v4046 = vlaneseq
  %v4047 = vshrl.u32 %v4046, 7
  %v4048 = vsub.s32 0, %v4047
  %v4049 = vrot.slane %v4045, %v4048
  %v4050 = vadd.f32 %v4031, %v4049
  %v4051 = vadd.f32 %v4034, %v4049
  %v4052 = vadd.f32 %v4039, %v4049
  %v4053 = vadd.f32 %v4042, %v4049
  %v4054 = vsub.f32 0.0, %v4050
  %v4055 = vsub.f32 0.0, %v4051
  %v4056 = vsub.f32 0.0, %v4052
  %v4057 = vsub.f32 0.0, %v4053
  %v4058 = vmul.f32 %v4054, 1.442695
  %v4059 = vpow.pop %v4058
  %v4060 = vmul.f32 %v4055, 1.442695
  %v4061 = vpow.pop %v4060
  %v4062 = vmul.f32 %v4056, 1.442695
  %v4063 = vpow.pop %v4062
  %v4064 = vmul.f32 %v4057, 1.442695
  %v4065 = vpow.pop %v4064
  %v4066 = vadd.f32 %v4059, 1.0
  %v4067 = vadd.f32 %v4061, 1.0
  %v4068 = vadd.f32 %v4063, 1.0
  %v4069 = vadd.f32 %v4065, 1.0
  %v4070 = vrcp.pop %v4066
  %v4071 = vmul.f32 1.0, %v4070
  %v4072 = vrcp.pop %v4067
  %v4073 = vmul.f32 1.0, %v4072
  %v4074 = vrcp.pop %v4068
  %v4075 = vmul.f32 1.0, %v4074
  %v4076 = vrcp.pop %v4069
  %v4077 = vmul.f32 1.0, %v4076
  %v4078 = vld [vmem:[%s0 + $0x240] sm:$0xf]
  %v4079 = vld [vmem:[%s0 + $0x244] sm:$0xf]
  %v4080 = vld [vmem:[%s0 + $0x248] sm:$0xf]
  %v4081 = vld [vmem:[%s0 + $0x24c] sm:$0xf]
  %v4082 = vld [vmem:[%s0 + $0x250] sm:$0xf]
  %v4083 = vld [vmem:[%s0 + $0x254] sm:$0xf]
  %v4084 = vld [vmem:[%s0 + $0x258] sm:$0xf]
  %v4085 = vld [vmem:[%s0 + $0x25c] sm:$0xf]
  %v4086 = vld [vmem:[%s0 + $0x260] sm:$0xf]
  %v4087 = vld [vmem:[%s0 + $0x264] sm:$0xf]
  %v4088 = vld [vmem:[%s0 + $0x268] sm:$0xf]
  %v4089 = vld [vmem:[%s0 + $0x26c] sm:$0xf]
  %v4090 = vld [vmem:[%s0 + $0x270] sm:$0xf]
  %v4091 = vld [vmem:[%s0 + $0x274] sm:$0xf]
  %v4092 = vld [vmem:[%s0 + $0x278] sm:$0xf]
  %v4093 = vld [vmem:[%s0 + $0x27c] sm:$0xf]
  %v4094 = vld [vmem:[%s0 + $0x280] sm:$0xf]
  %v4095 = vld [vmem:[%s0 + $0x284] sm:$0xf]
  %v4096 = vld [vmem:[%s0 + $0x288] sm:$0xf]
  %v4097 = vld [vmem:[%s0 + $0x28c] sm:$0xf]
  %v4098 = vld [vmem:[%s0 + $0x290] sm:$0xf]
  %v4099 = vld [vmem:[%s0 + $0x294] sm:$0xf]
  %v4100 = vld [vmem:[%s0 + $0x298] sm:$0xf]
  %v4101 = vld [vmem:[%s0 + $0x29c] sm:$0xf]
  %v4102 = vpack.c.bf16 %v3810, %v3807
  %v4103 = vpack.c.bf16 %v3818, %v3815
  %v4104 = vpack.c.bf16 %v3826, %v3823
  %v4105 = vpack.c.bf16 %v3831, %v3831
  %v4118 = vunpack.c.l.b16 %v4090
  %v4119 = vunpack.c.l.b16 %v4091
  %v4120 = vunpack.c.l.b16 %v4092
  %v4121 = vunpack.c.l.b16 %v4093
  %v4122 = vunpack.c.l.b16 %v4094
  %v4123 = vunpack.c.l.b16 %v4095
  %v4124 = vunpack.c.l.b16 %v4096
  %v4125 = vunpack.c.l.b16 %v4097
  %v4126 = vunpack.c.l.b16 %v4098
  %v4127 = vunpack.c.l.b16 %v4099
  %v4128 = vunpack.c.l.b16 %v4100
  %v4129 = vunpack.c.l.b16 %v4101
  %v4130 = vpack.c.b16 %v4119, %v4118
  %v4131 = vpack.c.b16 %v4121, %v4120
  %v4132 = vpack.c.b16 %v4123, %v4122
  %v4133 = vpack.c.b16 %v4125, %v4124
  %v4134 = vpack.c.b16 %v4127, %v4126
  %v4135 = vpack.c.b16 %v4129, %v4128
  %v4143 = vsel %vm3898, %v4102, 0
  %v4146 = vsel %vm3898, %v4103, 0
  %v4149 = vsel %vm3898, %v4104, 0
  %v4152 = vsel %vm3898, %v4105, 0
  %4154 = vmatprep.subr.bf16.mxu0 0
  %4155 = vmatpush1.bf16.msra.mxu0 0
  %4156 = vmatprep.subr.bf16.mxu0 0
  %4157 = vmatpush1.bf16.msra.mxu0 0
  %4158 = vmatprep.subr.bf16.mxu0 0
  %4159 = vmatpush1.bf16.msra.mxu0 %v4135
  %4160 = vmatprep.subr.bf16.mxu0 0
  %4161 = vmatpush1.bf16.msra.mxu0 %v4134
  %4162 = vmatprep.subr.bf16.mxu0 0
  %4163 = vmatpush1.bf16.msra.mxu0 %v4133
  %4164 = vmatprep.subr.bf16.mxu0 0
  %4165 = vmatpush1.bf16.msra.mxu0 %v4132
  %4166 = vmatprep.subr.bf16.mxu0 0
  %4167 = vmatpush1.bf16.msra.mxu0 %v4131
  %4168 = vmatprep.subr.bf16.mxu0 0
  %4169 = vmatpush1.bf16.msra.mxu0 %v4130
  %4170 = vmatprep.subr.bf16.mxu0 0
  %4171 = vmatpush2.bf16.msra.mxu0 0
  %4172 = vmatprep.subr.bf16.mxu0 0
  %4173 = vmatpush2.bf16.msra.mxu0 0
  %4174 = vmatprep.subr.bf16.mxu0 0
  %4175 = vmatpush2.bf16.msra.mxu0 0
  %4176 = vmatprep.subr.bf16.mxu0 0
  %4177 = vmatpush2.bf16.msra.mxu0 0
  %4178 = vmatprep.subr.bf16.mxu0 0
  %4179 = vmatpush2.bf16.msra.mxu0 0
  %4180 = vmatprep.subr.bf16.mxu0 0
  %4181 = vmatpush2.bf16.msra.mxu0 0
  %4182 = vmatprep.subr.bf16.mxu0 0
  %4183 = vmatpush2.bf16.msra.mxu0 0
  %4184 = vmatprep.subr.bf16.mxu0 0
  %4185 = vmatpush2.bf16.msra.mxu0 0
  %4186 = vmatprep.mubr.bf16.mxu0 0
  %4187 = vmatmul.mubr.bf16.gmra.mxu0 %v4143
  %v4188 = vpop.f32.mrf.mxu0
  %v4189 = vadd.f32 0.0, %v4188
  %v4190 = vpop.f32.mrf.mxu0
  %v4191 = vpop.f32.mrf.mxu0
  %v4192 = vadd.f32 0.0, %v4191
  %v4193 = vpop.f32.mrf.mxu0
  %4194 = vmatprep.mubr.bf16.mxu0 0
  %4195 = vmatmul.mubr.bf16.gmra.mxu0 %v4146
  %v4196 = vpop.f32.mrf.mxu0
  %v4197 = vadd.f32 0.0, %v4196
  %v4198 = vpop.f32.mrf.mxu0
  %v4199 = vpop.f32.mrf.mxu0
  %v4200 = vadd.f32 0.0, %v4199
  %v4201 = vpop.f32.mrf.mxu0
  %4202 = vmatprep.mubr.bf16.mxu0 0
  %4203 = vmatmul.mubr.bf16.gmra.mxu0 %v4149
  %v4204 = vpop.f32.mrf.mxu0
  %v4205 = vadd.f32 0.0, %v4204
  %v4206 = vpop.f32.mrf.mxu0
  %v4207 = vpop.f32.mrf.mxu0
  %v4208 = vadd.f32 0.0, %v4207
  %v4209 = vpop.f32.mrf.mxu0
  %4210 = vmatprep.mubr.bf16.mxu0 0
  %4211 = vmatmul.mubr.bf16.gmra.mxu0 %v4152
  %v4212 = vpop.f32.mrf.mxu0
  %v4213 = vadd.f32 0.0, %v4212
  %v4214 = vpop.f32.mrf.mxu0
  %v4215 = vpop.f32.mrf.mxu0
  %v4216 = vpop.f32.mrf.mxu0
  %4217 = vdwg.mxu0
  %v4230 = vunpack.c.l.b16 %v4078
  %v4231 = vunpack.c.l.b16 %v4079
  %v4232 = vunpack.c.l.b16 %v4080
  %v4233 = vunpack.c.l.b16 %v4081
  %v4234 = vunpack.c.l.b16 %v4082
  %v4235 = vunpack.c.l.b16 %v4083
  %v4236 = vunpack.c.l.b16 %v4084
  %v4237 = vunpack.c.l.b16 %v4085
  %v4238 = vunpack.c.l.b16 %v4086
  %v4239 = vunpack.c.l.b16 %v4087
  %v4240 = vunpack.c.l.b16 %v4088
  %v4241 = vunpack.c.l.b16 %v4089
  %v4242 = vpack.c.b16 %v4231, %v4230
  %v4243 = vpack.c.b16 %v4233, %v4232
  %v4244 = vpack.c.b16 %v4235, %v4234
  %v4245 = vpack.c.b16 %v4237, %v4236
  %v4246 = vpack.c.b16 %v4239, %v4238
  %v4247 = vpack.c.b16 %v4241, %v4240
  %v4255 = vsel %vm3898, %v3658, 0
  %v4258 = vsel %vm3898, %v3659, 0
  %v4261 = vsel %vm3898, %v3660, 0
  %v4263 = vsel %vm3898, %v3661, 0
  %4265 = vmatprep.subr.bf16.mxu0 0
  %4266 = vmatpush1.bf16.msra.mxu0 0
  %4267 = vmatprep.subr.bf16.mxu0 0
  %4268 = vmatpush1.bf16.msra.mxu0 0
  %4269 = vmatprep.subr.bf16.mxu0 0
  %4270 = vmatpush1.bf16.msra.mxu0 %v4247
  %4271 = vmatprep.subr.bf16.mxu0 0
  %4272 = vmatpush1.bf16.msra.mxu0 %v4246
  %4273 = vmatprep.subr.bf16.mxu0 0
  %4274 = vmatpush1.bf16.msra.mxu0 %v4245
  %4275 = vmatprep.subr.bf16.mxu0 0
  %4276 = vmatpush1.bf16.msra.mxu0 %v4244
  %4277 = vmatprep.subr.bf16.mxu0 0
  %4278 = vmatpush1.bf16.msra.mxu0 %v4243
  %4279 = vmatprep.subr.bf16.mxu0 0
  %4280 = vmatpush1.bf16.msra.mxu0 %v4242
  %4281 = vmatprep.subr.bf16.mxu0 0
  %4282 = vmatpush2.bf16.msra.mxu0 0
  %4283 = vmatprep.subr.bf16.mxu0 0
  %4284 = vmatpush2.bf16.msra.mxu0 0
  %4285 = vmatprep.subr.bf16.mxu0 0
  %4286 = vmatpush2.bf16.msra.mxu0 0
  %4287 = vmatprep.subr.bf16.mxu0 0
  %4288 = vmatpush2.bf16.msra.mxu0 0
  %4289 = vmatprep.subr.bf16.mxu0 0
  %4290 = vmatpush2.bf16.msra.mxu0 0
  %4291 = vmatprep.subr.bf16.mxu0 0
  %4292 = vmatpush2.bf16.msra.mxu0 0
  %4293 = vmatprep.subr.bf16.mxu0 0
  %4294 = vmatpush2.bf16.msra.mxu0 0
  %4295 = vmatprep.subr.bf16.mxu0 0
  %4296 = vmatpush2.bf16.msra.mxu0 0
  %4297 = vmatprep.mubr.bf16.mxu0 0
  %4298 = vmatmul.mubr.bf16.gmra.mxu0 %v4255
  %v4299 = vpop.f32.mrf.mxu0
  %v4300 = vadd.f32 %v4189, %v4299
  %v4301 = vpop.f32.mrf.mxu0
  %v4302 = vpop.f32.mrf.mxu0
  %v4303 = vadd.f32 %v4192, %v4302
  %v4304 = vpop.f32.mrf.mxu0
  %4305 = vmatprep.mubr.bf16.mxu0 0
  %4306 = vmatmul.mubr.bf16.gmra.mxu0 %v4258
  %v4307 = vpop.f32.mrf.mxu0
  %v4308 = vadd.f32 %v4197, %v4307
  %v4309 = vpop.f32.mrf.mxu0
  %v4310 = vpop.f32.mrf.mxu0
  %v4311 = vadd.f32 %v4200, %v4310
  %v4312 = vpop.f32.mrf.mxu0
  %4313 = vmatprep.mubr.bf16.mxu0 0
  %4314 = vmatmul.mubr.bf16.gmra.mxu0 %v4261
  %v4315 = vpop.f32.mrf.mxu0
  %v4316 = vadd.f32 %v4205, %v4315
  %v4317 = vpop.f32.mrf.mxu0
  %v4318 = vpop.f32.mrf.mxu0
  %v4319 = vadd.f32 %v4208, %v4318
  %v4320 = vpop.f32.mrf.mxu0
  %4321 = vmatprep.mubr.bf16.mxu0 0
  %4322 = vmatmul.mubr.bf16.gmra.mxu0 %v4263
  %v4323 = vpop.f32.mrf.mxu0
  %v4324 = vadd.f32 %v4213, %v4323
  %v4325 = vpop.f32.mrf.mxu0
  %v4326 = vpop.f32.mrf.mxu0
  %v4327 = vpop.f32.mrf.mxu0
  %4328 = vdwg.mxu0
  %v4329 = vld [vmem:[%s1 + $0xb8] sm:$0x1]
  %v4330 = vlaneseq
  %v4331 = vshrl.u32 %v4330, 7
  %v4332 = vsub.s32 0, %v4331
  %v4333 = vrot.slane %v4329, %v4332
  %v4334 = vadd.f32 %v4300, %v4333
  %v4335 = vadd.f32 %v4303, %v4333
  %v4336 = vadd.f32 %v4308, %v4333
  %v4337 = vadd.f32 %v4311, %v4333
  %v4338 = vadd.f32 %v4316, %v4333
  %v4339 = vadd.f32 %v4319, %v4333
  %v4340 = vadd.f32 %v4324, %v4333
  %v4341 = vsub.f32 0.0, %v4334
  %v4342 = vsub.f32 0.0, %v4335
  %v4343 = vsub.f32 0.0, %v4336
  %v4344 = vsub.f32 0.0, %v4337
  %v4345 = vsub.f32 0.0, %v4338
  %v4346 = vsub.f32 0.0, %v4339
  %v4347 = vsub.f32 0.0, %v4340
  %v4348 = vmul.f32 %v4341, 1.442695
  %v4349 = vpow.pop %v4348
  %v4350 = vmul.f32 %v4342, 1.442695
  %v4351 = vpow.pop %v4350
  %v4352 = vmul.f32 %v4343, 1.442695
  %v4353 = vpow.pop %v4352
  %v4354 = vmul.f32 %v4344, 1.442695
  %v4355 = vpow.pop %v4354
  %v4356 = vmul.f32 %v4345, 1.442695
  %v4357 = vpow.pop %v4356
  %v4358 = vmul.f32 %v4346, 1.442695
  %v4359 = vpow.pop %v4358
  %v4360 = vmul.f32 %v4347, 1.442695
  %v4361 = vpow.pop %v4360
  %v4362 = vadd.f32 %v4349, 1.0
  %v4363 = vadd.f32 %v4351, 1.0
  %v4364 = vadd.f32 %v4353, 1.0
  %v4365 = vadd.f32 %v4355, 1.0
  %v4366 = vadd.f32 %v4357, 1.0
  %v4367 = vadd.f32 %v4359, 1.0
  %v4368 = vadd.f32 %v4361, 1.0
  %v4369 = vrcp.pop %v4362
  %v4370 = vmul.f32 1.0, %v4369
  %v4371 = vrcp.pop %v4363
  %v4372 = vmul.f32 1.0, %v4371
  %v4373 = vrcp.pop %v4364
  %v4374 = vmul.f32 1.0, %v4373
  %v4375 = vrcp.pop %v4365
  %v4376 = vmul.f32 1.0, %v4375
  %v4377 = vrcp.pop %v4366
  %v4378 = vmul.f32 1.0, %v4377
  %v4379 = vrcp.pop %v4367
  %v4380 = vmul.f32 1.0, %v4379
  %v4381 = vrcp.pop %v4368
  %v4382 = vmul.f32 1.0, %v4381
  %4383 = vst [vmem:[%s2] sm:$0xff] 0.0
  %4384 = vst [vmem:[%s2 + $0x8] sm:$0xff] 0.0
  %4385 = vst [vmem:[%s2 + $0x10] sm:$0xff] 0.0
  %4386 = vst [vmem:[%s2 + $0x18] sm:$0xff] 0.0
  %4387 = vst [vmem:[%s2 + $0x20] sm:$0xff] 0.0
  %4388 = vst [vmem:[%s2 + $0x28] sm:$0xff] 0.0
  %4389 = vst [vmem:[%s2 + $0x30] sm:$0xff] 0.0
  %4390 = vst [vmem:[%s2 + $0x38] sm:$0xff] 0.0
  %4391 = vst [vmem:[%s2 + $0x40] sm:$0xff] 0.0
  %4392 = vst [vmem:[%s2 + $0x48] sm:$0xff] 0.0
  %4393 = vst [vmem:[%s2 + $0x50] sm:$0xff] 0.0
  %4395 = vset.pattern.permute.xlu0 0
  %4396 = vperm.xlu0 %4395, %v4071
  %v4397 = vpop.permute.xlu0 %4396
  %4400 = vset.pattern.permute.xlu0 0
  %4401 = vperm.xlu0 %4400, %v4073
  %v4402 = vpop.permute.xlu0 %4401
  %4405 = vset.pattern.permute.xlu0 0
  %4406 = vperm.xlu0 %4405, %v4075
  %v4407 = vpop.permute.xlu0 %4406
  %4410 = vset.pattern.permute.xlu0 0
  %4411 = vperm.xlu0 %4410, %v4077
  %v4412 = vpop.permute.xlu0 %4411
  %4414 = vst [vmem:[%s2] sm:$0xff] %v4397
  %4415 = vst [vmem:[%s2 + $0x8] sm:$0xff] %v4402
  %4416 = vst [vmem:[%s2 + $0x10] sm:$0xff] %v4407
  %4417 = vst [vmem:[%s2 + $0x18] sm:$0xff] %v4412
  %4419 = vset.pattern.permute.xlu0 0
  %4420 = vperm.xlu0 %4419, %v4370
  %v4421 = vpop.permute.xlu0 %4420
  %4424 = vset.pattern.permute.xlu0 0
  %4425 = vperm.xlu0 %4424, %v4372
  %v4426 = vpop.permute.xlu0 %4425
  %4429 = vset.pattern.permute.xlu0 0
  %4430 = vperm.xlu0 %4429, %v4374
  %v4431 = vpop.permute.xlu0 %4430
  %4434 = vset.pattern.permute.xlu0 0
  %4435 = vperm.xlu0 %4434, %v4376
  %v4436 = vpop.permute.xlu0 %4435
  %4439 = vset.pattern.permute.xlu0 0
  %4440 = vperm.xlu0 %4439, %v4378
  %v4441 = vpop.permute.xlu0 %4440
  %4444 = vset.pattern.permute.xlu0 0
  %4445 = vperm.xlu0 %4444, %v4380
  %v4446 = vpop.permute.xlu0 %4445
  %4449 = vset.pattern.permute.xlu0 0
  %4450 = vperm.xlu0 %4449, %v4382
  %v4451 = vpop.permute.xlu0 %4450
  %4453 = vst [vmem:[%s2 + $0x20] sm:$0xff] %v4421
  %4454 = vst [vmem:[%s2 + $0x28] sm:$0xff] %v4426
  %4455 = vst [vmem:[%s2 + $0x30] sm:$0xff] %v4431
  %4456 = vst [vmem:[%s2 + $0x38] sm:$0xff] %v4436
  %4457 = vst [vmem:[%s2 + $0x40] sm:$0xff] %v4441
  %4458 = vst [vmem:[%s2 + $0x48] sm:$0xff] %v4446
  %4459 = vst [vmem:[%s2 + $0x50] sm:$0xf] %v4451
  // Predicated region
  $region10: #{hl_hgat_forward.1} parent=0 // pred_check
    _
  $region11: #{hl_hgat_forward.1} parent=0 // pred_check_branch
    %4461 = sbr.rel (0) target = $region13
  $region12: #{hl_hgat_forward.1} parent=0 // pred_region
    _
  $region13: #{hl_hgat_forward.1} parent=0 // pred_fallthru
    _
  // Predicated region
  $region14: #{hl_hgat_forward.1} parent=0 // pred_check
    _
  $region15: #{hl_hgat_forward.1} parent=0 // pred_check_branch
    %4463 = sbr.rel (0) target = $region17
  $region16: #{hl_hgat_forward.1} parent=0 // pred_region
    _
  $region17: #{hl_hgat_forward.1} parent=0 // pred_fallthru
    _

</llo_original>
